<compile_context>
chip_gen: v5e
topology: v5e:2x2
jax: 0.10.0
libtpu: 0.0.40
codegen_flags: <defaults>
</compile_context>

<pallas_src>
import math

import jax
import jax.numpy as jnp
from jax import lax
from jax.experimental import pallas as pl
from jax.experimental.pallas import tpu as pltpu

# ----- small, forward-consistent hyperparameters -----
FTR_NUM  = 4          # c_in
D_OUT    = 4
PRED_LEN = 8
D_MODEL  = 32
N_HEADS  = 4
E_LAYERS = 3
D_FF     = 64
SEQ_LEN  = 16
BATCH    = 2
HEAD_DIM = D_MODEL // N_HEADS
LN_EPS   = 1e-5

BL   = BATCH * SEQ_LEN            # 32 rows (batch folded into rows)
HBL  = N_HEADS * BL               # 128 head-stacked key rows
PADN = 128                        # lane-dense padded projection width

# stacked temporal sinusoid table layout: [month(13) | day(32) | weekday(7) | hour(24)]
MONTH_ROWS, DAY_ROWS, WEEKDAY_ROWS, HOUR_ROWS = 13, 32, 7, 24
OFF_DAY = MONTH_ROWS
OFF_WD  = MONTH_ROWS + DAY_ROWS
OFF_HR  = MONTH_ROWS + DAY_ROWS + WEEKDAY_ROWS
TT_ROWS = MONTH_ROWS + DAY_ROWS + WEEKDAY_ROWS + HOUR_ROWS   # 76


# ---------------------------------------------------------------------------
# fused Pallas kernel
# ---------------------------------------------------------------------------

def _layernorm(x, gamma, beta):
    # single-pass LN: E[x], E[x^2] together; gamma folded into the rsqrt factor
    m  = jnp.mean(x, axis=-1, keepdims=True)
    m2 = jnp.mean(x * x, axis=-1, keepdims=True)
    r  = lax.rsqrt(m2 - m * m + LN_EPS)
    return (x - m) * (r * gamma) + beta


def _informer_kernel(x_ref, bt_ref, wtok_ref, btok_ref, tt_ref, pos_ref,
                     kvm_ref, smask_ref, seg_ref,
                     wqkv_ref, bqkv_ref, wo_ref, bo_ref,
                     w1_ref, b1_ref, w2_ref, b2_ref,
                     g1_ref, be1_ref, g2_ref, be2_ref,
                     gf_ref, bf_ref, wp_ref, bp_ref, o_ref):
    # ---- DataEmbedding ----------------------------------------------------
    # circular Conv1d(k=3) re-expressed as [x[t-1], x[t], x[t+1]] @ W_tok;
    # the per-batch circular shifts are built from static row slices.
    xb = x_ref[...]                                            # (BL, C)
    prev_parts, next_parts = [], []
    for b in range(BATCH):
        r0 = b * SEQ_LEN
        prev_parts += [xb[r0 + SEQ_LEN - 1:r0 + SEQ_LEN, :], xb[r0:r0 + SEQ_LEN - 1, :]]
        next_parts += [xb[r0 + 1:r0 + SEQ_LEN, :], xb[r0:r0 + 1, :]]
    x_cat = jnp.concatenate(
        [jnp.concatenate(prev_parts, axis=0), xb,
         jnp.concatenate(next_parts, axis=0)], axis=1)         # (BL, 3C)
    x = jnp.dot(x_cat, wtok_ref[...], preferred_element_type=jnp.float32) + btok_ref[...]

    # temporal embedding: 4-hot row selector against the stacked sinusoid table
    # (index ranges are disjoint, so the 4 indicators never collide) -> ONE matmul
    btv = bt_ref[...]                                          # (BL, 4) int32
    i0 = btv[:, 0:1]
    i1 = btv[:, 1:2] + OFF_DAY
    i2 = btv[:, 2:3] + OFF_WD
    i3 = btv[:, 3:4] + OFF_HR
    lanes = lax.broadcasted_iota(jnp.int32, (BL, TT_ROWS), 1)
    fourhot = (jnp.where(lanes == i0, 1.0, 0.0) + jnp.where(lanes == i1, 1.0, 0.0) +
               jnp.where(lanes == i2, 1.0, 0.0) + jnp.where(lanes == i3, 1.0, 0.0))
    x = x + jnp.dot(fourhot, tt_ref[...], preferred_element_type=jnp.float32) + pos_ref[...]

    kv_mask = kvm_ref[...]        # (HBL, D)    1/0  : row block h keeps head-h channels
    s_mask  = smask_ref[...]      # (BL, HBL)   0/-1e30 : kills cross-batch pairs
    seg     = seg_ref[...]        # (HBL, HBL)  1/0  : per-head 32-lane segment sums

    # ---- E_LAYERS encoder layers, activation resident in VMEM/vregs --------
    for l in range(E_LAYERS):                                  # static unroll
        # one wide QKV matmul; 1/sqrt(HEAD_DIM) scale pre-folded into W_q / b_q
        qkv = jnp.dot(x, wqkv_ref[l], preferred_element_type=jnp.float32) + bqkv_ref[l]
        q = qkv[:, :D_MODEL]
        k = qkv[:, D_MODEL:2 * D_MODEL]
        v = qkv[:, 2 * D_MODEL:]

        # head-stacked K/V: row block h keeps only head-h channels (mask), so a
        # single dense contraction over all D channels gives per-head scores.
        k_big = jnp.concatenate([k] * N_HEADS, axis=0) * kv_mask   # (HBL, D)
        v_big = jnp.concatenate([v] * N_HEADS, axis=0) * kv_mask   # (HBL, D)

        # (BL, HBL) dense score slab: one NT matmul, full 128-lane rows
        s = lax.dot_general(q, k_big, (((1,), (1,)), ((), ())),
                            preferred_element_type=jnp.float32) + s_mask
        # per-row global max >= every head-segment max -> safe shift for exp
        m = jnp.max(s, axis=-1, keepdims=True)
        e = jnp.exp(s - m)
        denom = jnp.dot(e, seg, preferred_element_type=jnp.float32)  # per-head sums
        p_attn = e / denom                                           # exact divide

        # AV lands directly in heads-along-lanes (BL, D) layout
        attn = jnp.dot(p_attn, v_big, preferred_element_type=jnp.float32)
        attn = jnp.dot(attn, wo_ref[l], preferred_element_type=jnp.float32) + bo_ref[l]

        # residual + norm1
        x = _layernorm(x + attn, g1_ref[l], be1_ref[l])

        # position-wise FFN (conv1d kernel_size=1 == linear), batch folded in rows
        y = jnp.dot(x, w1_ref[l], preferred_element_type=jnp.float32) + b1_ref[l]
        # TODO(synk): PyTorch F.gelu is erf-exact; tanh approximation used here.
        y = jax.nn.gelu(y, approximate=True)
        y = jnp.dot(y, w2_ref[l], preferred_element_type=jnp.float32) + b2_ref[l]

        # residual + norm2
        x = _layernorm(x + y, g2_ref[l], be2_ref[l])

    # ---- final encoder norm + projection on the last PRED_LEN rows only ----
    tails = [x[b * SEQ_LEN + SEQ_LEN - PRED_LEN:(b + 1) * SEQ_LEN, :]
             for b in range(BATCH)]
    xt = _layernorm(jnp.concatenate(tails, axis=0), gf_ref[...], bf_ref[...])
    # projection padded to 128 output lanes -> unmasked lane-dense store
    o_ref[...] = jnp.dot(xt, wp_ref[...],
                         preferred_element_type=jnp.float32) + bp_ref[...]


def informer_fused_call(xb, bt, p):
    operands = (xb, bt, p["w_tok"], p["b_tok"], p["tt_tab"], p["pos_add"],
                p["kv_mask"], p["score_mask"], p["seg_sum"],
                p["wqkv"], p["bqkv"], p["wo"], p["bo"],
                p["w1"], p["b1"], p["w2"], p["b2"],
                p["g1"], p["be1"], p["g2"], p["be2"],
                p["g_f"], p["b_f"], p["w_proj"], p["b_proj"])
    vmem = pl.BlockSpec(memory_space=pltpu.MemorySpace.VMEM)
    return pl.pallas_call(
        _informer_kernel,
        out_shape=jax.ShapeDtypeStruct((BATCH * PRED_LEN, PADN), jnp.float32),
        in_specs=[vmem] * len(operands),
        out_specs=vmem,
        cost_estimate=pl.CostEstimate(flops=6_800_000,
                                      transcendentals=19_000,
                                      bytes_accessed=260_000),
    )(*operands)


# ---------------------------------------------------------------------------
# fixed (non-trainable) sinusoidal tables
# ---------------------------------------------------------------------------

def _sinusoid_table(n, d):
    pos = jnp.arange(n, dtype=jnp.float32)[:, None]
    div = jnp.exp(jnp.arange(0, d, 2, dtype=jnp.float32) * -(math.log(10000.0) / d))
    tab = jnp.zeros((n, d), dtype=jnp.float32)
    tab = tab.at[:, 0::2].set(jnp.sin(pos * div))
    tab = tab.at[:, 1::2].set(jnp.cos(pos * div))
    return tab


MONTH_TAB   = _sinusoid_table(MONTH_ROWS,   D_MODEL)
DAY_TAB     = _sinusoid_table(DAY_ROWS,     D_MODEL)
WEEKDAY_TAB = _sinusoid_table(WEEKDAY_ROWS, D_MODEL)
HOUR_TAB    = _sinusoid_table(HOUR_ROWS,    D_MODEL)
POS_TAB     = _sinusoid_table(SEQ_LEN,      D_MODEL)


# ---------------------------------------------------------------------------
# deterministic parameter init (weights pre-packed / pre-scaled for the kernel)
# ---------------------------------------------------------------------------

def _lin(key, fan_in, shape):
    return jax.random.normal(key, shape, jnp.float32) * (1.0 / math.sqrt(fan_in))


def init_params(key):
    ks = iter(jax.random.split(key, 64))
    p = {}
    # token Conv1d(c_in, d_model, k=3, circular) -> (3*C, D) matmul weight + bias
    p["w_tok"] = _lin(next(ks), 3 * FTR_NUM, (3 * FTR_NUM, D_MODEL))
    p["b_tok"] = jnp.zeros((1, D_MODEL), jnp.float32)

    # stacked temporal table + (constant) positional add, precomputed once
    p["tt_tab"]  = jnp.concatenate([MONTH_TAB, DAY_TAB, WEEKDAY_TAB, HOUR_TAB], axis=0)
    p["pos_add"] = jnp.tile(POS_TAB, (BATCH, 1))                       # (BL, D)

    # attention layout constants (compile-time masks, loaded once into VMEM)
    r = jnp.arange(HBL)
    c = jnp.arange(D_MODEL)
    p["kv_mask"] = ((c[None, :] // HEAD_DIM) == (r[:, None] // BL)).astype(jnp.float32)
    i = jnp.arange(BL)
    same_batch = (i[:, None] // SEQ_LEN) == ((r[None, :] % BL) // SEQ_LEN)
    p["score_mask"] = jnp.where(same_batch, 0.0, -1e30).astype(jnp.float32)   # (BL, HBL)
    p["seg_sum"] = ((r[:, None] // BL) == (r[None, :] // BL)).astype(jnp.float32)

    scale = 1.0 / math.sqrt(HEAD_DIM)
    stacks = {k: [] for k in ("wqkv", "bqkv", "wo", "bo", "w1", "b1", "w2", "b2",
                              "g1", "be1", "g2", "be2")}
    for _ in range(E_LAYERS):
        wq = _lin(next(ks), D_MODEL, (D_MODEL, D_MODEL)) * scale  # scale folded in
        wk = _lin(next(ks), D_MODEL, (D_MODEL, D_MODEL))
        wv = _lin(next(ks), D_MODEL, (D_MODEL, D_MODEL))
        bq = _lin(next(ks), D_MODEL, (1, D_MODEL)) * scale
        bk = _lin(next(ks), D_MODEL, (1, D_MODEL))
        bv = _lin(next(ks), D_MODEL, (1, D_MODEL))
        stacks["wqkv"].append(jnp.concatenate([wq, wk, wv], axis=1))   # (D, 3D)
        stacks["bqkv"].append(jnp.concatenate([bq, bk, bv], axis=1))   # (1, 3D)
        stacks["wo"].append(_lin(next(ks), D_MODEL, (D_MODEL, D_MODEL)))
        stacks["bo"].append(_lin(next(ks), D_MODEL, (1, D_MODEL)))
        stacks["w1"].append(_lin(next(ks), D_MODEL, (D_MODEL, D_FF)))
        stacks["b1"].append(_lin(next(ks), D_MODEL, (1, D_FF)))
        stacks["w2"].append(_lin(next(ks), D_FF, (D_FF, D_MODEL)))
        stacks["b2"].append(_lin(next(ks), D_FF, (1, D_MODEL)))
        stacks["g1"].append(jnp.ones((1, D_MODEL), jnp.float32))   # torch LN defaults
        stacks["be1"].append(jnp.zeros((1, D_MODEL), jnp.float32))
        stacks["g2"].append(jnp.ones((1, D_MODEL), jnp.float32))
        stacks["be2"].append(jnp.zeros((1, D_MODEL), jnp.float32))
    for k, v in stacks.items():
        p[k] = jnp.stack(v, axis=0)                                # (E_LAYERS, ...)

    p["g_f"] = jnp.ones((1, D_MODEL), jnp.float32)
    p["b_f"] = jnp.zeros((1, D_MODEL), jnp.float32)
    # projection zero-padded to 128 lanes for a lane-dense output store
    wp = _lin(next(ks), D_MODEL, (D_MODEL, D_OUT))
    p["w_proj"] = jnp.zeros((D_MODEL, PADN), jnp.float32).at[:, :D_OUT].set(wp)
    p["b_proj"] = jnp.zeros((1, PADN), jnp.float32)
    return p


# ---------------------------------------------------------------------------
# forward (wrapper is reshape / slice only — everything else is in the kernel)
# ---------------------------------------------------------------------------

def informer_forward(params, batch, batch_time):
    B, L, C = batch.shape
    xb = batch.reshape(B * L, C)
    bt = batch_time.reshape(B * L, 4).astype(jnp.int32)
    out = informer_fused_call(xb, bt, params)            # (B*PRED_LEN, 128)
    return out[:, :D_OUT].reshape(B, PRED_LEN, D_OUT)


if __name__ == "__main__":
    key = jax.random.PRNGKey(0)
    k_p, k_x, k_m, k_d, k_w, k_h = jax.random.split(key, 6)

    params = init_params(k_p)
    batch = jax.random.normal(k_x, (BATCH, SEQ_LEN, FTR_NUM), jnp.float32)
    batch_time = jnp.stack([
        jax.random.randint(k_m, (BATCH, SEQ_LEN), 1, 13),   # month
        jax.random.randint(k_d, (BATCH, SEQ_LEN), 1, 32),   # day
        jax.random.randint(k_w, (BATCH, SEQ_LEN), 0, 7),    # weekday
        jax.random.randint(k_h, (BATCH, SEQ_LEN), 0, 24),   # hour
    ], axis=-1).astype(jnp.int32)

    out = jax.jit(informer_forward)(params, batch, batch_time)
    out = jax.block_until_ready(out)

    assert out.shape == (BATCH, PRED_LEN, D_OUT), out.shape
    assert bool(jnp.all(jnp.isfinite(out)))
    print("KERNEL_OK")
</pallas_src>

<mosaic_0001>
module attributes {stable_mosaic.version = 11 : i64} {
  func.func @_informer_kernel(%arg0: memref<32x4xf32, #tpu.memory_space<vmem>>, %arg1: memref<32x4xi32, #tpu.memory_space<vmem>>, %arg2: memref<12x32xf32, #tpu.memory_space<vmem>>, %arg3: memref<1x32xf32, #tpu.memory_space<vmem>>, %arg4: memref<76x32xf32, #tpu.memory_space<vmem>>, %arg5: memref<32x32xf32, #tpu.memory_space<vmem>>, %arg6: memref<128x32xf32, #tpu.memory_space<vmem>>, %arg7: memref<32x128xf32, #tpu.memory_space<vmem>>, %arg8: memref<128x128xf32, #tpu.memory_space<vmem>>, %arg9: memref<3x32x96xf32, #tpu.memory_space<vmem>>, %arg10: memref<3x1x96xf32, #tpu.memory_space<vmem>>, %arg11: memref<3x32x32xf32, #tpu.memory_space<vmem>>, %arg12: memref<3x1x32xf32, #tpu.memory_space<vmem>>, %arg13: memref<3x32x64xf32, #tpu.memory_space<vmem>>, %arg14: memref<3x1x64xf32, #tpu.memory_space<vmem>>, %arg15: memref<3x64x32xf32, #tpu.memory_space<vmem>>, %arg16: memref<3x1x32xf32, #tpu.memory_space<vmem>>, %arg17: memref<3x1x32xf32, #tpu.memory_space<vmem>>, %arg18: memref<3x1x32xf32, #tpu.memory_space<vmem>>, %arg19: memref<3x1x32xf32, #tpu.memory_space<vmem>>, %arg20: memref<3x1x32xf32, #tpu.memory_space<vmem>>, %arg21: memref<1x32xf32, #tpu.memory_space<vmem>>, %arg22: memref<1x32xf32, #tpu.memory_space<vmem>>, %arg23: memref<32x128xf32, #tpu.memory_space<vmem>>, %arg24: memref<1x128xf32, #tpu.memory_space<vmem>>, %arg25: memref<16x128xf32, #tpu.memory_space<vmem>>) attributes {dimension_semantics = [], scalar_prefetch = 0 : i64, scratch_operands = 0 : i64, tpu.core_type = #tpu.core_type<tc>} {
    %c0 = arith.constant 0 : index
    %c0_0 = arith.constant 0 : index
    %0 = vector.load %arg0[%c0, %c0_0] : memref<32x4xf32, #tpu.memory_space<vmem>>, vector<32x4xf32>
    %1 = vector.extract_strided_slice %0 {offsets = [15, 0], sizes = [1, 4], strides = [1, 1]} : vector<32x4xf32> to vector<1x4xf32>
    %2 = vector.extract_strided_slice %0 {offsets = [0, 0], sizes = [15, 4], strides = [1, 1]} : vector<32x4xf32> to vector<15x4xf32>
    %3 = vector.extract_strided_slice %0 {offsets = [1, 0], sizes = [15, 4], strides = [1, 1]} : vector<32x4xf32> to vector<15x4xf32>
    %4 = vector.extract_strided_slice %0 {offsets = [0, 0], sizes = [1, 4], strides = [1, 1]} : vector<32x4xf32> to vector<1x4xf32>
    %5 = vector.extract_strided_slice %0 {offsets = [31, 0], sizes = [1, 4], strides = [1, 1]} : vector<32x4xf32> to vector<1x4xf32>
    %6 = vector.extract_strided_slice %0 {offsets = [16, 0], sizes = [15, 4], strides = [1, 1]} : vector<32x4xf32> to vector<15x4xf32>
    %7 = vector.extract_strided_slice %0 {offsets = [17, 0], sizes = [15, 4], strides = [1, 1]} : vector<32x4xf32> to vector<15x4xf32>
    %8 = vector.extract_strided_slice %0 {offsets = [16, 0], sizes = [1, 4], strides = [1, 1]} : vector<32x4xf32> to vector<1x4xf32>
    %9 = tpu.concatenate %1, %2, %5, %6 in 0 : vector<1x4xf32>, vector<15x4xf32>, vector<1x4xf32>, vector<15x4xf32> -> vector<32x4xf32>
    %10 = tpu.concatenate %3, %4, %7, %8 in 0 : vector<15x4xf32>, vector<1x4xf32>, vector<15x4xf32>, vector<1x4xf32> -> vector<32x4xf32>
    %11 = tpu.concatenate %9, %0, %10 in 1 : vector<32x4xf32>, vector<32x4xf32>, vector<32x4xf32> -> vector<32x12xf32>
    %c0_1 = arith.constant 0 : index
    %c0_2 = arith.constant 0 : index
    %12 = vector.load %arg2[%c0_1, %c0_2] : memref<12x32xf32, #tpu.memory_space<vmem>>, vector<12x32xf32>
    %cst = arith.constant dense<0.000000e+00> : vector<32x32xf32>
    %13 = tpu.matmul %11, %12, %cst {dimension_numbers = #tpu.dot_dimension_numbers<[1], [0], [0], [1], [0, 0, 1, 1], [], []>} : vector<32x12xf32>, vector<12x32xf32>, vector<32x32xf32> -> vector<32x32xf32>
    %c0_3 = arith.constant 0 : index
    %c0_4 = arith.constant 0 : index
    %14 = vector.load %arg3[%c0_3, %c0_4] : memref<1x32xf32, #tpu.memory_space<vmem>>, vector<1x32xf32>
    %15 = vector.broadcast %14 : vector<1x32xf32> to vector<32x32xf32>
    %16 = arith.addf %13, %15 : vector<32x32xf32>
    %c0_5 = arith.constant 0 : index
    %c0_6 = arith.constant 0 : index
    %17 = vector.load %arg1[%c0_5, %c0_6] : memref<32x4xi32, #tpu.memory_space<vmem>>, vector<32x4xi32>
    %18 = vector.extract_strided_slice %17 {offsets = [0, 0], sizes = [32, 1], strides = [1, 1]} : vector<32x4xi32> to vector<32x1xi32>
    %19 = vector.extract_strided_slice %17 {offsets = [0, 1], sizes = [32, 1], strides = [1, 1]} : vector<32x4xi32> to vector<32x1xi32>
    %c13_i32 = arith.constant 13 : i32
    %20 = vector.broadcast %c13_i32 : i32 to vector<32x1xi32>
    %21 = arith.addi %19, %20 : vector<32x1xi32>
    %22 = vector.extract_strided_slice %17 {offsets = [0, 2], sizes = [32, 1], strides = [1, 1]} : vector<32x4xi32> to vector<32x1xi32>
    %c45_i32 = arith.constant 45 : i32
    %23 = vector.broadcast %c45_i32 : i32 to vector<32x1xi32>
    %24 = arith.addi %22, %23 : vector<32x1xi32>
    %25 = vector.extract_strided_slice %17 {offsets = [0, 3], sizes = [32, 1], strides = [1, 1]} : vector<32x4xi32> to vector<32x1xi32>
    %c52_i32 = arith.constant 52 : i32
    %26 = vector.broadcast %c52_i32 : i32 to vector<32x1xi32>
    %27 = arith.addi %25, %26 : vector<32x1xi32>
    %28 = tpu.iota {dimensions = array<i32: 1>} : vector<32x76xi32>
    %29 = vector.broadcast %18 : vector<32x1xi32> to vector<32x76xi32>
    %30 = arith.cmpi eq, %28, %29 : vector<32x76xi32>
    %cst_7 = arith.constant 1.000000e+00 : f32
    %cst_8 = arith.constant 0.000000e+00 : f32
    %31 = vector.broadcast %cst_7 : f32 to vector<32x76xf32>
    %32 = vector.broadcast %cst_8 : f32 to vector<32x76xf32>
    %33 = arith.select %30, %31, %32 : vector<32x76xi1>, vector<32x76xf32>
    %34 = vector.broadcast %21 : vector<32x1xi32> to vector<32x76xi32>
    %35 = arith.cmpi eq, %28, %34 : vector<32x76xi32>
    %cst_9 = arith.constant 1.000000e+00 : f32
    %cst_10 = arith.constant 0.000000e+00 : f32
    %36 = vector.broadcast %cst_9 : f32 to vector<32x76xf32>
    %37 = vector.broadcast %cst_10 : f32 to vector<32x76xf32>
    %38 = arith.select %35, %36, %37 : vector<32x76xi1>, vector<32x76xf32>
    %39 = arith.addf %33, %38 : vector<32x76xf32>
    %40 = vector.broadcast %24 : vector<32x1xi32> to vector<32x76xi32>
    %41 = arith.cmpi eq, %28, %40 : vector<32x76xi32>
    %cst_11 = arith.constant 1.000000e+00 : f32
    %cst_12 = arith.constant 0.000000e+00 : f32
    %42 = vector.broadcast %cst_11 : f32 to vector<32x76xf32>
    %43 = vector.broadcast %cst_12 : f32 to vector<32x76xf32>
    %44 = arith.select %41, %42, %43 : vector<32x76xi1>, vector<32x76xf32>
    %45 = arith.addf %39, %44 : vector<32x76xf32>
    %46 = vector.broadcast %27 : vector<32x1xi32> to vector<32x76xi32>
    %47 = arith.cmpi eq, %28, %46 : vector<32x76xi32>
    %cst_13 = arith.constant 1.000000e+00 : f32
    %cst_14 = arith.constant 0.000000e+00 : f32
    %48 = vector.broadcast %cst_13 : f32 to vector<32x76xf32>
    %49 = vector.broadcast %cst_14 : f32 to vector<32x76xf32>
    %50 = arith.select %47, %48, %49 : vector<32x76xi1>, vector<32x76xf32>
    %51 = arith.addf %45, %50 : vector<32x76xf32>
    %c0_15 = arith.constant 0 : index
    %c0_16 = arith.constant 0 : index
    %52 = vector.load %arg4[%c0_15, %c0_16] : memref<76x32xf32, #tpu.memory_space<vmem>>, vector<76x32xf32>
    %cst_17 = arith.constant dense<0.000000e+00> : vector<32x32xf32>
    %53 = tpu.matmul %51, %52, %cst_17 {dimension_numbers = #tpu.dot_dimension_numbers<[1], [0], [0], [1], [0, 0, 1, 1], [], []>} : vector<32x76xf32>, vector<76x32xf32>, vector<32x32xf32> -> vector<32x32xf32>
    %54 = arith.addf %16, %53 : vector<32x32xf32>
    %c0_18 = arith.constant 0 : index
    %c0_19 = arith.constant 0 : index
    %55 = vector.load %arg5[%c0_18, %c0_19] : memref<32x32xf32, #tpu.memory_space<vmem>>, vector<32x32xf32>
    %56 = arith.addf %54, %55 : vector<32x32xf32>
    %c0_20 = arith.constant 0 : index
    %c0_21 = arith.constant 0 : index
    %57 = vector.load %arg6[%c0_20, %c0_21] : memref<128x32xf32, #tpu.memory_space<vmem>>, vector<128x32xf32>
    %c0_22 = arith.constant 0 : index
    %c0_23 = arith.constant 0 : index
    %58 = vector.load %arg7[%c0_22, %c0_23] : memref<32x128xf32, #tpu.memory_space<vmem>>, vector<32x128xf32>
    %c0_24 = arith.constant 0 : index
    %c0_25 = arith.constant 0 : index
    %59 = vector.load %arg8[%c0_24, %c0_25] : memref<128x128xf32, #tpu.memory_space<vmem>>, vector<128x128xf32>
    %c0_26 = arith.constant 0 : index
    %c0_27 = arith.constant 0 : index
    %c0_28 = arith.constant 0 : index
    %60 = vector.load %arg9[%c0_26, %c0_27, %c0_28] : memref<3x32x96xf32, #tpu.memory_space<vmem>>, vector<1x32x96xf32>
    %61 = vector.shape_cast %60 : vector<1x32x96xf32> to vector<32x96xf32>
    %cst_29 = arith.constant dense<0.000000e+00> : vector<32x96xf32>
    %62 = tpu.matmul %56, %61, %cst_29 {dimension_numbers = #tpu.dot_dimension_numbers<[1], [0], [0], [1], [0, 0, 1, 1], [], []>} : vector<32x32xf32>, vector<32x96xf32>, vector<32x96xf32> -> vector<32x96xf32>
    %c0_30 = arith.constant 0 : index
    %c0_31 = arith.constant 0 : index
    %c0_32 = arith.constant 0 : index
    %63 = vector.load %arg10[%c0_30, %c0_31, %c0_32] : memref<3x1x96xf32, #tpu.memory_space<vmem>>, vector<1x1x96xf32>
    %64 = vector.shape_cast %63 : vector<1x1x96xf32> to vector<1x96xf32>
    %65 = vector.broadcast %64 : vector<1x96xf32> to vector<32x96xf32>
    %66 = arith.addf %62, %65 : vector<32x96xf32>
    %67 = vector.extract_strided_slice %66 {offsets = [0, 0], sizes = [32, 32], strides = [1, 1]} : vector<32x96xf32> to vector<32x32xf32>
    %68 = vector.extract_strided_slice %66 {offsets = [0, 32], sizes = [32, 32], strides = [1, 1]} : vector<32x96xf32> to vector<32x32xf32>
    %69 = vector.extract_strided_slice %66 {offsets = [0, 64], sizes = [32, 32], strides = [1, 1]} : vector<32x96xf32> to vector<32x32xf32>
    %70 = tpu.concatenate %68, %68, %68, %68 in 0 : vector<32x32xf32>, vector<32x32xf32>, vector<32x32xf32>, vector<32x32xf32> -> vector<128x32xf32>
    %71 = arith.mulf %70, %57 : vector<128x32xf32>
    %72 = tpu.concatenate %69, %69, %69, %69 in 0 : vector<32x32xf32>, vector<32x32xf32>, vector<32x32xf32>, vector<32x32xf32> -> vector<128x32xf32>
    %73 = arith.mulf %72, %57 : vector<128x32xf32>
    %cst_33 = arith.constant dense<0.000000e+00> : vector<32x128xf32>
    %74 = tpu.matmul %67, %71, %cst_33 {dimension_numbers = #tpu.dot_dimension_numbers<[1], [1], [0], [0], [0, 0, 1, 0], [], []>} : vector<32x32xf32>, vector<128x32xf32>, vector<32x128xf32> -> vector<32x128xf32>
    %75 = arith.addf %74, %58 : vector<32x128xf32>
    %cst_34 = arith.constant dense<0xFF800000> : vector<32xf32>
    %76 = vector.multi_reduction <maximumf>, %75, %cst_34 [1] : vector<32x128xf32> to vector<32xf32>
    %77 = vector.shape_cast %76 : vector<32xf32> to vector<32x1xf32>
    %78 = vector.broadcast %77 : vector<32x1xf32> to vector<32x128xf32>
    %79 = arith.subf %75, %78 : vector<32x128xf32>
    %80 = math.exp %79 : vector<32x128xf32>
    %cst_35 = arith.constant dense<0.000000e+00> : vector<32x128xf32>
    %81 = tpu.matmul %80, %59, %cst_35 {dimension_numbers = #tpu.dot_dimension_numbers<[1], [0], [0], [1], [0, 0, 1, 1], [], []>} : vector<32x128xf32>, vector<128x128xf32>, vector<32x128xf32> -> vector<32x128xf32>
    %82 = arith.divf %80, %81 : vector<32x128xf32>
    %cst_36 = arith.constant dense<0.000000e+00> : vector<32x32xf32>
    %83 = tpu.matmul %82, %73, %cst_36 {dimension_numbers = #tpu.dot_dimension_numbers<[1], [0], [0], [1], [0, 0, 1, 1], [], []>} : vector<32x128xf32>, vector<128x32xf32>, vector<32x32xf32> -> vector<32x32xf32>
    %c0_37 = arith.constant 0 : index
    %c0_38 = arith.constant 0 : index
    %c0_39 = arith.constant 0 : index
    %84 = vector.load %arg11[%c0_37, %c0_38, %c0_39] : memref<3x32x32xf32, #tpu.memory_space<vmem>>, vector<1x32x32xf32>
    %85 = vector.shape_cast %84 : vector<1x32x32xf32> to vector<32x32xf32>
    %cst_40 = arith.constant dense<0.000000e+00> : vector<32x32xf32>
    %86 = tpu.matmul %83, %85, %cst_40 {dimension_numbers = #tpu.dot_dimension_numbers<[1], [0], [0], [1], [0, 0, 1, 1], [], []>} : vector<32x32xf32>, vector<32x32xf32>, vector<32x32xf32> -> vector<32x32xf32>
    %c0_41 = arith.constant 0 : index
    %c0_42 = arith.constant 0 : index
    %c0_43 = arith.constant 0 : index
    %87 = vector.load %arg12[%c0_41, %c0_42, %c0_43] : memref<3x1x32xf32, #tpu.memory_space<vmem>>, vector<1x1x32xf32>
    %88 = vector.shape_cast %87 : vector<1x1x32xf32> to vector<1x32xf32>
    %89 = vector.broadcast %88 : vector<1x32xf32> to vector<32x32xf32>
    %90 = arith.addf %86, %89 : vector<32x32xf32>
    %91 = arith.addf %56, %90 : vector<32x32xf32>
    %c0_44 = arith.constant 0 : index
    %c0_45 = arith.constant 0 : index
    %c0_46 = arith.constant 0 : index
    %92 = vector.load %arg17[%c0_44, %c0_45, %c0_46] : memref<3x1x32xf32, #tpu.memory_space<vmem>>, vector<1x1x32xf32>
    %93 = vector.shape_cast %92 : vector<1x1x32xf32> to vector<1x32xf32>
    %c0_47 = arith.constant 0 : index
    %c0_48 = arith.constant 0 : index
    %c0_49 = arith.constant 0 : index
    %94 = vector.load %arg18[%c0_47, %c0_48, %c0_49] : memref<3x1x32xf32, #tpu.memory_space<vmem>>, vector<1x1x32xf32>
    %95 = vector.shape_cast %94 : vector<1x1x32xf32> to vector<1x32xf32>
    %cst_50 = arith.constant dense<0.000000e+00> : vector<32xf32>
    %96 = vector.multi_reduction <add>, %91, %cst_50 [1] : vector<32x32xf32> to vector<32xf32>
    %97 = vector.shape_cast %96 : vector<32xf32> to vector<32x1xf32>
    %cst_51 = arith.constant 3.200000e+01 : f32
    %98 = vector.broadcast %cst_51 : f32 to vector<32x1xf32>
    %99 = arith.divf %97, %98 : vector<32x1xf32>
    %100 = arith.mulf %91, %91 : vector<32x32xf32>
    %cst_52 = arith.constant dense<0.000000e+00> : vector<32xf32>
    %101 = vector.multi_reduction <add>, %100, %cst_52 [1] : vector<32x32xf32> to vector<32xf32>
    %102 = vector.shape_cast %101 : vector<32xf32> to vector<32x1xf32>
    %cst_53 = arith.constant 3.200000e+01 : f32
    %103 = vector.broadcast %cst_53 : f32 to vector<32x1xf32>
    %104 = arith.divf %102, %103 : vector<32x1xf32>
    %105 = arith.mulf %99, %99 : vector<32x1xf32>
    %106 = arith.subf %104, %105 : vector<32x1xf32>
    %cst_54 = arith.constant 9.99999974E-6 : f32
    %107 = vector.broadcast %cst_54 : f32 to vector<32x1xf32>
    %108 = arith.addf %106, %107 : vector<32x1xf32>
    %109 = math.rsqrt %108 : vector<32x1xf32>
    %110 = vector.broadcast %99 : vector<32x1xf32> to vector<32x32xf32>
    %111 = arith.subf %91, %110 : vector<32x32xf32>
    %112 = vector.broadcast %109 : vector<32x1xf32> to vector<32x32xf32>
    %113 = vector.broadcast %93 : vector<1x32xf32> to vector<32x32xf32>
    %114 = arith.mulf %112, %113 : vector<32x32xf32>
    %115 = arith.mulf %111, %114 : vector<32x32xf32>
    %116 = vector.broadcast %95 : vector<1x32xf32> to vector<32x32xf32>
    %117 = arith.addf %115, %116 : vector<32x32xf32>
    %c0_55 = arith.constant 0 : index
    %c0_56 = arith.constant 0 : index
    %c0_57 = arith.constant 0 : index
    %118 = vector.load %arg13[%c0_55, %c0_56, %c0_57] : memref<3x32x64xf32, #tpu.memory_space<vmem>>, vector<1x32x64xf32>
    %119 = vector.shape_cast %118 : vector<1x32x64xf32> to vector<32x64xf32>
    %cst_58 = arith.constant dense<0.000000e+00> : vector<32x64xf32>
    %120 = tpu.matmul %117, %119, %cst_58 {dimension_numbers = #tpu.dot_dimension_numbers<[1], [0], [0], [1], [0, 0, 1, 1], [], []>} : vector<32x32xf32>, vector<32x64xf32>, vector<32x64xf32> -> vector<32x64xf32>
    %c0_59 = arith.constant 0 : index
    %c0_60 = arith.constant 0 : index
    %c0_61 = arith.constant 0 : index
    %121 = vector.load %arg14[%c0_59, %c0_60, %c0_61] : memref<3x1x64xf32, #tpu.memory_space<vmem>>, vector<1x1x64xf32>
    %122 = vector.shape_cast %121 : vector<1x1x64xf32> to vector<1x64xf32>
    %123 = vector.broadcast %122 : vector<1x64xf32> to vector<32x64xf32>
    %124 = arith.addf %120, %123 : vector<32x64xf32>
    %125 = arith.mulf %124, %124 : vector<32x64xf32>
    %126 = arith.mulf %124, %125 : vector<32x64xf32>
    %cst_62 = arith.constant 4.471500e-02 : f32
    %127 = vector.broadcast %cst_62 : f32 to vector<32x64xf32>
    %128 = arith.mulf %127, %126 : vector<32x64xf32>
    %129 = arith.addf %124, %128 : vector<32x64xf32>
    %cst_63 = arith.constant 0.797884583 : f32
    %130 = vector.broadcast %cst_63 : f32 to vector<32x64xf32>
    %131 = arith.mulf %130, %129 : vector<32x64xf32>
    %132 = math.tanh %131 : vector<32x64xf32>
    %cst_64 = arith.constant 1.000000e+00 : f32
    %133 = vector.broadcast %cst_64 : f32 to vector<32x64xf32>
    %134 = arith.addf %133, %132 : vector<32x64xf32>
    %cst_65 = arith.constant 5.000000e-01 : f32
    %135 = vector.broadcast %cst_65 : f32 to vector<32x64xf32>
    %136 = arith.mulf %135, %134 : vector<32x64xf32>
    %137 = arith.mulf %124, %136 : vector<32x64xf32>
    %c0_66 = arith.constant 0 : index
    %c0_67 = arith.constant 0 : index
    %c0_68 = arith.constant 0 : index
    %138 = vector.load %arg15[%c0_66, %c0_67, %c0_68] : memref<3x64x32xf32, #tpu.memory_space<vmem>>, vector<1x64x32xf32>
    %139 = vector.shape_cast %138 : vector<1x64x32xf32> to vector<64x32xf32>
    %cst_69 = arith.constant dense<0.000000e+00> : vector<32x32xf32>
    %140 = tpu.matmul %137, %139, %cst_69 {dimension_numbers = #tpu.dot_dimension_numbers<[1], [0], [0], [1], [0, 0, 1, 1], [], []>} : vector<32x64xf32>, vector<64x32xf32>, vector<32x32xf32> -> vector<32x32xf32>
    %c0_70 = arith.constant 0 : index
    %c0_71 = arith.constant 0 : index
    %c0_72 = arith.constant 0 : index
    %141 = vector.load %arg16[%c0_70, %c0_71, %c0_72] : memref<3x1x32xf32, #tpu.memory_space<vmem>>, vector<1x1x32xf32>
    %142 = vector.shape_cast %141 : vector<1x1x32xf32> to vector<1x32xf32>
    %143 = vector.broadcast %142 : vector<1x32xf32> to vector<32x32xf32>
    %144 = arith.addf %140, %143 : vector<32x32xf32>
    %145 = arith.addf %117, %144 : vector<32x32xf32>
    %c0_73 = arith.constant 0 : index
    %c0_74 = arith.constant 0 : index
    %c0_75 = arith.constant 0 : index
    %146 = vector.load %arg19[%c0_73, %c0_74, %c0_75] : memref<3x1x32xf32, #tpu.memory_space<vmem>>, vector<1x1x32xf32>
    %147 = vector.shape_cast %146 : vector<1x1x32xf32> to vector<1x32xf32>
    %c0_76 = arith.constant 0 : index
    %c0_77 = arith.constant 0 : index
    %c0_78 = arith.constant 0 : index
    %148 = vector.load %arg20[%c0_76, %c0_77, %c0_78] : memref<3x1x32xf32, #tpu.memory_space<vmem>>, vector<1x1x32xf32>
    %149 = vector.shape_cast %148 : vector<1x1x32xf32> to vector<1x32xf32>
    %cst_79 = arith.constant dense<0.000000e+00> : vector<32xf32>
    %150 = vector.multi_reduction <add>, %145, %cst_79 [1] : vector<32x32xf32> to vector<32xf32>
    %151 = vector.shape_cast %150 : vector<32xf32> to vector<32x1xf32>
    %cst_80 = arith.constant 3.200000e+01 : f32
    %152 = vector.broadcast %cst_80 : f32 to vector<32x1xf32>
    %153 = arith.divf %151, %152 : vector<32x1xf32>
    %154 = arith.mulf %145, %145 : vector<32x32xf32>
    %cst_81 = arith.constant dense<0.000000e+00> : vector<32xf32>
    %155 = vector.multi_reduction <add>, %154, %cst_81 [1] : vector<32x32xf32> to vector<32xf32>
    %156 = vector.shape_cast %155 : vector<32xf32> to vector<32x1xf32>
    %cst_82 = arith.constant 3.200000e+01 : f32
    %157 = vector.broadcast %cst_82 : f32 to vector<32x1xf32>
    %158 = arith.divf %156, %157 : vector<32x1xf32>
    %159 = arith.mulf %153, %153 : vector<32x1xf32>
    %160 = arith.subf %158, %159 : vector<32x1xf32>
    %cst_83 = arith.constant 9.99999974E-6 : f32
    %161 = vector.broadcast %cst_83 : f32 to vector<32x1xf32>
    %162 = arith.addf %160, %161 : vector<32x1xf32>
    %163 = math.rsqrt %162 : vector<32x1xf32>
    %164 = vector.broadcast %153 : vector<32x1xf32> to vector<32x32xf32>
    %165 = arith.subf %145, %164 : vector<32x32xf32>
    %166 = vector.broadcast %163 : vector<32x1xf32> to vector<32x32xf32>
    %167 = vector.broadcast %147 : vector<1x32xf32> to vector<32x32xf32>
    %168 = arith.mulf %166, %167 : vector<32x32xf32>
    %169 = arith.mulf %165, %168 : vector<32x32xf32>
    %170 = vector.broadcast %149 : vector<1x32xf32> to vector<32x32xf32>
    %171 = arith.addf %169, %170 : vector<32x32xf32>
    %c1 = arith.constant 1 : index
    %c0_84 = arith.constant 0 : index
    %c0_85 = arith.constant 0 : index
    %172 = vector.load %arg9[%c1, %c0_84, %c0_85] : memref<3x32x96xf32, #tpu.memory_space<vmem>>, vector<1x32x96xf32>
    %173 = vector.shape_cast %172 : vector<1x32x96xf32> to vector<32x96xf32>
    %cst_86 = arith.constant dense<0.000000e+00> : vector<32x96xf32>
    %174 = tpu.matmul %171, %173, %cst_86 {dimension_numbers = #tpu.dot_dimension_numbers<[1], [0], [0], [1], [0, 0, 1, 1], [], []>} : vector<32x32xf32>, vector<32x96xf32>, vector<32x96xf32> -> vector<32x96xf32>
    %c1_87 = arith.constant 1 : index
    %c0_88 = arith.constant 0 : index
    %c0_89 = arith.constant 0 : index
    %175 = vector.load %arg10[%c1_87, %c0_88, %c0_89] : memref<3x1x96xf32, #tpu.memory_space<vmem>>, vector<1x1x96xf32>
    %176 = vector.shape_cast %175 : vector<1x1x96xf32> to vector<1x96xf32>
    %177 = vector.broadcast %176 : vector<1x96xf32> to vector<32x96xf32>
    %178 = arith.addf %174, %177 : vector<32x96xf32>
    %179 = vector.extract_strided_slice %178 {offsets = [0, 0], sizes = [32, 32], strides = [1, 1]} : vector<32x96xf32> to vector<32x32xf32>
    %180 = vector.extract_strided_slice %178 {offsets = [0, 32], sizes = [32, 32], strides = [1, 1]} : vector<32x96xf32> to vector<32x32xf32>
    %181 = vector.extract_strided_slice %178 {offsets = [0, 64], sizes = [32, 32], strides = [1, 1]} : vector<32x96xf32> to vector<32x32xf32>
    %182 = tpu.concatenate %180, %180, %180, %180 in 0 : vector<32x32xf32>, vector<32x32xf32>, vector<32x32xf32>, vector<32x32xf32> -> vector<128x32xf32>
    %183 = arith.mulf %182, %57 : vector<128x32xf32>
    %184 = tpu.concatenate %181, %181, %181, %181 in 0 : vector<32x32xf32>, vector<32x32xf32>, vector<32x32xf32>, vector<32x32xf32> -> vector<128x32xf32>
    %185 = arith.mulf %184, %57 : vector<128x32xf32>
    %cst_90 = arith.constant dense<0.000000e+00> : vector<32x128xf32>
    %186 = tpu.matmul %179, %183, %cst_90 {dimension_numbers = #tpu.dot_dimension_numbers<[1], [1], [0], [0], [0, 0, 1, 0], [], []>} : vector<32x32xf32>, vector<128x32xf32>, vector<32x128xf32> -> vector<32x128xf32>
    %187 = arith.addf %186, %58 : vector<32x128xf32>
    %cst_91 = arith.constant dense<0xFF800000> : vector<32xf32>
    %188 = vector.multi_reduction <maximumf>, %187, %cst_91 [1] : vector<32x128xf32> to vector<32xf32>
    %189 = vector.shape_cast %188 : vector<32xf32> to vector<32x1xf32>
    %190 = vector.broadcast %189 : vector<32x1xf32> to vector<32x128xf32>
    %191 = arith.subf %187, %190 : vector<32x128xf32>
    %192 = math.exp %191 : vector<32x128xf32>
    %cst_92 = arith.constant dense<0.000000e+00> : vector<32x128xf32>
    %193 = tpu.matmul %192, %59, %cst_92 {dimension_numbers = #tpu.dot_dimension_numbers<[1], [0], [0], [1], [0, 0, 1, 1], [], []>} : vector<32x128xf32>, vector<128x128xf32>, vector<32x128xf32> -> vector<32x128xf32>
    %194 = arith.divf %192, %193 : vector<32x128xf32>
    %cst_93 = arith.constant dense<0.000000e+00> : vector<32x32xf32>
    %195 = tpu.matmul %194, %185, %cst_93 {dimension_numbers = #tpu.dot_dimension_numbers<[1], [0], [0], [1], [0, 0, 1, 1], [], []>} : vector<32x128xf32>, vector<128x32xf32>, vector<32x32xf32> -> vector<32x32xf32>
    %c1_94 = arith.constant 1 : index
    %c0_95 = arith.constant 0 : index
    %c0_96 = arith.constant 0 : index
    %196 = vector.load %arg11[%c1_94, %c0_95, %c0_96] : memref<3x32x32xf32, #tpu.memory_space<vmem>>, vector<1x32x32xf32>
    %197 = vector.shape_cast %196 : vector<1x32x32xf32> to vector<32x32xf32>
    %cst_97 = arith.constant dense<0.000000e+00> : vector<32x32xf32>
    %198 = tpu.matmul %195, %197, %cst_97 {dimension_numbers = #tpu.dot_dimension_numbers<[1], [0], [0], [1], [0, 0, 1, 1], [], []>} : vector<32x32xf32>, vector<32x32xf32>, vector<32x32xf32> -> vector<32x32xf32>
    %c1_98 = arith.constant 1 : index
    %c0_99 = arith.constant 0 : index
    %c0_100 = arith.constant 0 : index
    %199 = vector.load %arg12[%c1_98, %c0_99, %c0_100] : memref<3x1x32xf32, #tpu.memory_space<vmem>>, vector<1x1x32xf32>
    %200 = vector.shape_cast %199 : vector<1x1x32xf32> to vector<1x32xf32>
    %201 = vector.broadcast %200 : vector<1x32xf32> to vector<32x32xf32>
    %202 = arith.addf %198, %201 : vector<32x32xf32>
    %203 = arith.addf %171, %202 : vector<32x32xf32>
    %c1_101 = arith.constant 1 : index
    %c0_102 = arith.constant 0 : index
    %c0_103 = arith.constant 0 : index
    %204 = vector.load %arg17[%c1_101, %c0_102, %c0_103] : memref<3x1x32xf32, #tpu.memory_space<vmem>>, vector<1x1x32xf32>
    %205 = vector.shape_cast %204 : vector<1x1x32xf32> to vector<1x32xf32>
    %c1_104 = arith.constant 1 : index
    %c0_105 = arith.constant 0 : index
    %c0_106 = arith.constant 0 : index
    %206 = vector.load %arg18[%c1_104, %c0_105, %c0_106] : memref<3x1x32xf32, #tpu.memory_space<vmem>>, vector<1x1x32xf32>
    %207 = vector.shape_cast %206 : vector<1x1x32xf32> to vector<1x32xf32>
    %cst_107 = arith.constant dense<0.000000e+00> : vector<32xf32>
    %208 = vector.multi_reduction <add>, %203, %cst_107 [1] : vector<32x32xf32> to vector<32xf32>
    %209 = vector.shape_cast %208 : vector<32xf32> to vector<32x1xf32>
    %cst_108 = arith.constant 3.200000e+01 : f32
    %210 = vector.broadcast %cst_108 : f32 to vector<32x1xf32>
    %211 = arith.divf %209, %210 : vector<32x1xf32>
    %212 = arith.mulf %203, %203 : vector<32x32xf32>
    %cst_109 = arith.constant dense<0.000000e+00> : vector<32xf32>
    %213 = vector.multi_reduction <add>, %212, %cst_109 [1] : vector<32x32xf32> to vector<32xf32>
    %214 = vector.shape_cast %213 : vector<32xf32> to vector<32x1xf32>
    %cst_110 = arith.constant 3.200000e+01 : f32
    %215 = vector.broadcast %cst_110 : f32 to vector<32x1xf32>
    %216 = arith.divf %214, %215 : vector<32x1xf32>
    %217 = arith.mulf %211, %211 : vector<32x1xf32>
    %218 = arith.subf %216, %217 : vector<32x1xf32>
    %cst_111 = arith.constant 9.99999974E-6 : f32
    %219 = vector.broadcast %cst_111 : f32 to vector<32x1xf32>
    %220 = arith.addf %218, %219 : vector<32x1xf32>
    %221 = math.rsqrt %220 : vector<32x1xf32>
    %222 = vector.broadcast %211 : vector<32x1xf32> to vector<32x32xf32>
    %223 = arith.subf %203, %222 : vector<32x32xf32>
    %224 = vector.broadcast %221 : vector<32x1xf32> to vector<32x32xf32>
    %225 = vector.broadcast %205 : vector<1x32xf32> to vector<32x32xf32>
    %226 = arith.mulf %224, %225 : vector<32x32xf32>
    %227 = arith.mulf %223, %226 : vector<32x32xf32>
    %228 = vector.broadcast %207 : vector<1x32xf32> to vector<32x32xf32>
    %229 = arith.addf %227, %228 : vector<32x32xf32>
    %c1_112 = arith.constant 1 : index
    %c0_113 = arith.constant 0 : index
    %c0_114 = arith.constant 0 : index
    %230 = vector.load %arg13[%c1_112, %c0_113, %c0_114] : memref<3x32x64xf32, #tpu.memory_space<vmem>>, vector<1x32x64xf32>
    %231 = vector.shape_cast %230 : vector<1x32x64xf32> to vector<32x64xf32>
    %cst_115 = arith.constant dense<0.000000e+00> : vector<32x64xf32>
    %232 = tpu.matmul %229, %231, %cst_115 {dimension_numbers = #tpu.dot_dimension_numbers<[1], [0], [0], [1], [0, 0, 1, 1], [], []>} : vector<32x32xf32>, vector<32x64xf32>, vector<32x64xf32> -> vector<32x64xf32>
    %c1_116 = arith.constant 1 : index
    %c0_117 = arith.constant 0 : index
    %c0_118 = arith.constant 0 : index
    %233 = vector.load %arg14[%c1_116, %c0_117, %c0_118] : memref<3x1x64xf32, #tpu.memory_space<vmem>>, vector<1x1x64xf32>
    %234 = vector.shape_cast %233 : vector<1x1x64xf32> to vector<1x64xf32>
    %235 = vector.broadcast %234 : vector<1x64xf32> to vector<32x64xf32>
    %236 = arith.addf %232, %235 : vector<32x64xf32>
    %237 = arith.mulf %236, %236 : vector<32x64xf32>
    %238 = arith.mulf %236, %237 : vector<32x64xf32>
    %cst_119 = arith.constant 4.471500e-02 : f32
    %239 = vector.broadcast %cst_119 : f32 to vector<32x64xf32>
    %240 = arith.mulf %239, %238 : vector<32x64xf32>
    %241 = arith.addf %236, %240 : vector<32x64xf32>
    %cst_120 = arith.constant 0.797884583 : f32
    %242 = vector.broadcast %cst_120 : f32 to vector<32x64xf32>
    %243 = arith.mulf %242, %241 : vector<32x64xf32>
    %244 = math.tanh %243 : vector<32x64xf32>
    %cst_121 = arith.constant 1.000000e+00 : f32
    %245 = vector.broadcast %cst_121 : f32 to vector<32x64xf32>
    %246 = arith.addf %245, %244 : vector<32x64xf32>
    %cst_122 = arith.constant 5.000000e-01 : f32
    %247 = vector.broadcast %cst_122 : f32 to vector<32x64xf32>
    %248 = arith.mulf %247, %246 : vector<32x64xf32>
    %249 = arith.mulf %236, %248 : vector<32x64xf32>
    %c1_123 = arith.constant 1 : index
    %c0_124 = arith.constant 0 : index
    %c0_125 = arith.constant 0 : index
    %250 = vector.load %arg15[%c1_123, %c0_124, %c0_125] : memref<3x64x32xf32, #tpu.memory_space<vmem>>, vector<1x64x32xf32>
    %251 = vector.shape_cast %250 : vector<1x64x32xf32> to vector<64x32xf32>
    %cst_126 = arith.constant dense<0.000000e+00> : vector<32x32xf32>
    %252 = tpu.matmul %249, %251, %cst_126 {dimension_numbers = #tpu.dot_dimension_numbers<[1], [0], [0], [1], [0, 0, 1, 1], [], []>} : vector<32x64xf32>, vector<64x32xf32>, vector<32x32xf32> -> vector<32x32xf32>
    %c1_127 = arith.constant 1 : index
    %c0_128 = arith.constant 0 : index
    %c0_129 = arith.constant 0 : index
    %253 = vector.load %arg16[%c1_127, %c0_128, %c0_129] : memref<3x1x32xf32, #tpu.memory_space<vmem>>, vector<1x1x32xf32>
    %254 = vector.shape_cast %253 : vector<1x1x32xf32> to vector<1x32xf32>
    %255 = vector.broadcast %254 : vector<1x32xf32> to vector<32x32xf32>
    %256 = arith.addf %252, %255 : vector<32x32xf32>
    %257 = arith.addf %229, %256 : vector<32x32xf32>
    %c1_130 = arith.constant 1 : index
    %c0_131 = arith.constant 0 : index
    %c0_132 = arith.constant 0 : index
    %258 = vector.load %arg19[%c1_130, %c0_131, %c0_132] : memref<3x1x32xf32, #tpu.memory_space<vmem>>, vector<1x1x32xf32>
    %259 = vector.shape_cast %258 : vector<1x1x32xf32> to vector<1x32xf32>
    %c1_133 = arith.constant 1 : index
    %c0_134 = arith.constant 0 : index
    %c0_135 = arith.constant 0 : index
    %260 = vector.load %arg20[%c1_133, %c0_134, %c0_135] : memref<3x1x32xf32, #tpu.memory_space<vmem>>, vector<1x1x32xf32>
    %261 = vector.shape_cast %260 : vector<1x1x32xf32> to vector<1x32xf32>
    %cst_136 = arith.constant dense<0.000000e+00> : vector<32xf32>
    %262 = vector.multi_reduction <add>, %257, %cst_136 [1] : vector<32x32xf32> to vector<32xf32>
    %263 = vector.shape_cast %262 : vector<32xf32> to vector<32x1xf32>
    %cst_137 = arith.constant 3.200000e+01 : f32
    %264 = vector.broadcast %cst_137 : f32 to vector<32x1xf32>
    %265 = arith.divf %263, %264 : vector<32x1xf32>
    %266 = arith.mulf %257, %257 : vector<32x32xf32>
    %cst_138 = arith.constant dense<0.000000e+00> : vector<32xf32>
    %267 = vector.multi_reduction <add>, %266, %cst_138 [1] : vector<32x32xf32> to vector<32xf32>
    %268 = vector.shape_cast %267 : vector<32xf32> to vector<32x1xf32>
    %cst_139 = arith.constant 3.200000e+01 : f32
    %269 = vector.broadcast %cst_139 : f32 to vector<32x1xf32>
    %270 = arith.divf %268, %269 : vector<32x1xf32>
    %271 = arith.mulf %265, %265 : vector<32x1xf32>
    %272 = arith.subf %270, %271 : vector<32x1xf32>
    %cst_140 = arith.constant 9.99999974E-6 : f32
    %273 = vector.broadcast %cst_140 : f32 to vector<32x1xf32>
    %274 = arith.addf %272, %273 : vector<32x1xf32>
    %275 = math.rsqrt %274 : vector<32x1xf32>
    %276 = vector.broadcast %265 : vector<32x1xf32> to vector<32x32xf32>
    %277 = arith.subf %257, %276 : vector<32x32xf32>
    %278 = vector.broadcast %275 : vector<32x1xf32> to vector<32x32xf32>
    %279 = vector.broadcast %259 : vector<1x32xf32> to vector<32x32xf32>
    %280 = arith.mulf %278, %279 : vector<32x32xf32>
    %281 = arith.mulf %277, %280 : vector<32x32xf32>
    %282 = vector.broadcast %261 : vector<1x32xf32> to vector<32x32xf32>
    %283 = arith.addf %281, %282 : vector<32x32xf32>
    %c2 = arith.constant 2 : index
    %c0_141 = arith.constant 0 : index
    %c0_142 = arith.constant 0 : index
    %284 = vector.load %arg9[%c2, %c0_141, %c0_142] : memref<3x32x96xf32, #tpu.memory_space<vmem>>, vector<1x32x96xf32>
    %285 = vector.shape_cast %284 : vector<1x32x96xf32> to vector<32x96xf32>
    %cst_143 = arith.constant dense<0.000000e+00> : vector<32x96xf32>
    %286 = tpu.matmul %283, %285, %cst_143 {dimension_numbers = #tpu.dot_dimension_numbers<[1], [0], [0], [1], [0, 0, 1, 1], [], []>} : vector<32x32xf32>, vector<32x96xf32>, vector<32x96xf32> -> vector<32x96xf32>
    %c2_144 = arith.constant 2 : index
    %c0_145 = arith.constant 0 : index
    %c0_146 = arith.constant 0 : index
    %287 = vector.load %arg10[%c2_144, %c0_145, %c0_146] : memref<3x1x96xf32, #tpu.memory_space<vmem>>, vector<1x1x96xf32>
    %288 = vector.shape_cast %287 : vector<1x1x96xf32> to vector<1x96xf32>
    %289 = vector.broadcast %288 : vector<1x96xf32> to vector<32x96xf32>
    %290 = arith.addf %286, %289 : vector<32x96xf32>
    %291 = vector.extract_strided_slice %290 {offsets = [0, 0], sizes = [32, 32], strides = [1, 1]} : vector<32x96xf32> to vector<32x32xf32>
    %292 = vector.extract_strided_slice %290 {offsets = [0, 32], sizes = [32, 32], strides = [1, 1]} : vector<32x96xf32> to vector<32x32xf32>
    %293 = vector.extract_strided_slice %290 {offsets = [0, 64], sizes = [32, 32], strides = [1, 1]} : vector<32x96xf32> to vector<32x32xf32>
    %294 = tpu.concatenate %292, %292, %292, %292 in 0 : vector<32x32xf32>, vector<32x32xf32>, vector<32x32xf32>, vector<32x32xf32> -> vector<128x32xf32>
    %295 = arith.mulf %294, %57 : vector<128x32xf32>
    %296 = tpu.concatenate %293, %293, %293, %293 in 0 : vector<32x32xf32>, vector<32x32xf32>, vector<32x32xf32>, vector<32x32xf32> -> vector<128x32xf32>
    %297 = arith.mulf %296, %57 : vector<128x32xf32>
    %cst_147 = arith.constant dense<0.000000e+00> : vector<32x128xf32>
    %298 = tpu.matmul %291, %295, %cst_147 {dimension_numbers = #tpu.dot_dimension_numbers<[1], [1], [0], [0], [0, 0, 1, 0], [], []>} : vector<32x32xf32>, vector<128x32xf32>, vector<32x128xf32> -> vector<32x128xf32>
    %299 = arith.addf %298, %58 : vector<32x128xf32>
    %cst_148 = arith.constant dense<0xFF800000> : vector<32xf32>
    %300 = vector.multi_reduction <maximumf>, %299, %cst_148 [1] : vector<32x128xf32> to vector<32xf32>
    %301 = vector.shape_cast %300 : vector<32xf32> to vector<32x1xf32>
    %302 = vector.broadcast %301 : vector<32x1xf32> to vector<32x128xf32>
    %303 = arith.subf %299, %302 : vector<32x128xf32>
    %304 = math.exp %303 : vector<32x128xf32>
    %cst_149 = arith.constant dense<0.000000e+00> : vector<32x128xf32>
    %305 = tpu.matmul %304, %59, %cst_149 {dimension_numbers = #tpu.dot_dimension_numbers<[1], [0], [0], [1], [0, 0, 1, 1], [], []>} : vector<32x128xf32>, vector<128x128xf32>, vector<32x128xf32> -> vector<32x128xf32>
    %306 = arith.divf %304, %305 : vector<32x128xf32>
    %cst_150 = arith.constant dense<0.000000e+00> : vector<32x32xf32>
    %307 = tpu.matmul %306, %297, %cst_150 {dimension_numbers = #tpu.dot_dimension_numbers<[1], [0], [0], [1], [0, 0, 1, 1], [], []>} : vector<32x128xf32>, vector<128x32xf32>, vector<32x32xf32> -> vector<32x32xf32>
    %c2_151 = arith.constant 2 : index
    %c0_152 = arith.constant 0 : index
    %c0_153 = arith.constant 0 : index
    %308 = vector.load %arg11[%c2_151, %c0_152, %c0_153] : memref<3x32x32xf32, #tpu.memory_space<vmem>>, vector<1x32x32xf32>
    %309 = vector.shape_cast %308 : vector<1x32x32xf32> to vector<32x32xf32>
    %cst_154 = arith.constant dense<0.000000e+00> : vector<32x32xf32>
    %310 = tpu.matmul %307, %309, %cst_154 {dimension_numbers = #tpu.dot_dimension_numbers<[1], [0], [0], [1], [0, 0, 1, 1], [], []>} : vector<32x32xf32>, vector<32x32xf32>, vector<32x32xf32> -> vector<32x32xf32>
    %c2_155 = arith.constant 2 : index
    %c0_156 = arith.constant 0 : index
    %c0_157 = arith.constant 0 : index
    %311 = vector.load %arg12[%c2_155, %c0_156, %c0_157] : memref<3x1x32xf32, #tpu.memory_space<vmem>>, vector<1x1x32xf32>
    %312 = vector.shape_cast %311 : vector<1x1x32xf32> to vector<1x32xf32>
    %313 = vector.broadcast %312 : vector<1x32xf32> to vector<32x32xf32>
    %314 = arith.addf %310, %313 : vector<32x32xf32>
    %315 = arith.addf %283, %314 : vector<32x32xf32>
    %c2_158 = arith.constant 2 : index
    %c0_159 = arith.constant 0 : index
    %c0_160 = arith.constant 0 : index
    %316 = vector.load %arg17[%c2_158, %c0_159, %c0_160] : memref<3x1x32xf32, #tpu.memory_space<vmem>>, vector<1x1x32xf32>
    %317 = vector.shape_cast %316 : vector<1x1x32xf32> to vector<1x32xf32>
    %c2_161 = arith.constant 2 : index
    %c0_162 = arith.constant 0 : index
    %c0_163 = arith.constant 0 : index
    %318 = vector.load %arg18[%c2_161, %c0_162, %c0_163] : memref<3x1x32xf32, #tpu.memory_space<vmem>>, vector<1x1x32xf32>
    %319 = vector.shape_cast %318 : vector<1x1x32xf32> to vector<1x32xf32>
    %cst_164 = arith.constant dense<0.000000e+00> : vector<32xf32>
    %320 = vector.multi_reduction <add>, %315, %cst_164 [1] : vector<32x32xf32> to vector<32xf32>
    %321 = vector.shape_cast %320 : vector<32xf32> to vector<32x1xf32>
    %cst_165 = arith.constant 3.200000e+01 : f32
    %322 = vector.broadcast %cst_165 : f32 to vector<32x1xf32>
    %323 = arith.divf %321, %322 : vector<32x1xf32>
    %324 = arith.mulf %315, %315 : vector<32x32xf32>
    %cst_166 = arith.constant dense<0.000000e+00> : vector<32xf32>
    %325 = vector.multi_reduction <add>, %324, %cst_166 [1] : vector<32x32xf32> to vector<32xf32>
    %326 = vector.shape_cast %325 : vector<32xf32> to vector<32x1xf32>
    %cst_167 = arith.constant 3.200000e+01 : f32
    %327 = vector.broadcast %cst_167 : f32 to vector<32x1xf32>
    %328 = arith.divf %326, %327 : vector<32x1xf32>
    %329 = arith.mulf %323, %323 : vector<32x1xf32>
    %330 = arith.subf %328, %329 : vector<32x1xf32>
    %cst_168 = arith.constant 9.99999974E-6 : f32
    %331 = vector.broadcast %cst_168 : f32 to vector<32x1xf32>
    %332 = arith.addf %330, %331 : vector<32x1xf32>
    %333 = math.rsqrt %332 : vector<32x1xf32>
    %334 = vector.broadcast %323 : vector<32x1xf32> to vector<32x32xf32>
    %335 = arith.subf %315, %334 : vector<32x32xf32>
    %336 = vector.broadcast %333 : vector<32x1xf32> to vector<32x32xf32>
    %337 = vector.broadcast %317 : vector<1x32xf32> to vector<32x32xf32>
    %338 = arith.mulf %336, %337 : vector<32x32xf32>
    %339 = arith.mulf %335, %338 : vector<32x32xf32>
    %340 = vector.broadcast %319 : vector<1x32xf32> to vector<32x32xf32>
    %341 = arith.addf %339, %340 : vector<32x32xf32>
    %c2_169 = arith.constant 2 : index
    %c0_170 = arith.constant 0 : index
    %c0_171 = arith.constant 0 : index
    %342 = vector.load %arg13[%c2_169, %c0_170, %c0_171] : memref<3x32x64xf32, #tpu.memory_space<vmem>>, vector<1x32x64xf32>
    %343 = vector.shape_cast %342 : vector<1x32x64xf32> to vector<32x64xf32>
    %cst_172 = arith.constant dense<0.000000e+00> : vector<32x64xf32>
    %344 = tpu.matmul %341, %343, %cst_172 {dimension_numbers = #tpu.dot_dimension_numbers<[1], [0], [0], [1], [0, 0, 1, 1], [], []>} : vector<32x32xf32>, vector<32x64xf32>, vector<32x64xf32> -> vector<32x64xf32>
    %c2_173 = arith.constant 2 : index
    %c0_174 = arith.constant 0 : index
    %c0_175 = arith.constant 0 : index
    %345 = vector.load %arg14[%c2_173, %c0_174, %c0_175] : memref<3x1x64xf32, #tpu.memory_space<vmem>>, vector<1x1x64xf32>
    %346 = vector.shape_cast %345 : vector<1x1x64xf32> to vector<1x64xf32>
    %347 = vector.broadcast %346 : vector<1x64xf32> to vector<32x64xf32>
    %348 = arith.addf %344, %347 : vector<32x64xf32>
    %349 = arith.mulf %348, %348 : vector<32x64xf32>
    %350 = arith.mulf %348, %349 : vector<32x64xf32>
    %cst_176 = arith.constant 4.471500e-02 : f32
    %351 = vector.broadcast %cst_176 : f32 to vector<32x64xf32>
    %352 = arith.mulf %351, %350 : vector<32x64xf32>
    %353 = arith.addf %348, %352 : vector<32x64xf32>
    %cst_177 = arith.constant 0.797884583 : f32
    %354 = vector.broadcast %cst_177 : f32 to vector<32x64xf32>
    %355 = arith.mulf %354, %353 : vector<32x64xf32>
    %356 = math.tanh %355 : vector<32x64xf32>
    %cst_178 = arith.constant 1.000000e+00 : f32
    %357 = vector.broadcast %cst_178 : f32 to vector<32x64xf32>
    %358 = arith.addf %357, %356 : vector<32x64xf32>
    %cst_179 = arith.constant 5.000000e-01 : f32
    %359 = vector.broadcast %cst_179 : f32 to vector<32x64xf32>
    %360 = arith.mulf %359, %358 : vector<32x64xf32>
    %361 = arith.mulf %348, %360 : vector<32x64xf32>
    %c2_180 = arith.constant 2 : index
    %c0_181 = arith.constant 0 : index
    %c0_182 = arith.constant 0 : index
    %362 = vector.load %arg15[%c2_180, %c0_181, %c0_182] : memref<3x64x32xf32, #tpu.memory_space<vmem>>, vector<1x64x32xf32>
    %363 = vector.shape_cast %362 : vector<1x64x32xf32> to vector<64x32xf32>
    %cst_183 = arith.constant dense<0.000000e+00> : vector<32x32xf32>
    %364 = tpu.matmul %361, %363, %cst_183 {dimension_numbers = #tpu.dot_dimension_numbers<[1], [0], [0], [1], [0, 0, 1, 1], [], []>} : vector<32x64xf32>, vector<64x32xf32>, vector<32x32xf32> -> vector<32x32xf32>
    %c2_184 = arith.constant 2 : index
    %c0_185 = arith.constant 0 : index
    %c0_186 = arith.constant 0 : index
    %365 = vector.load %arg16[%c2_184, %c0_185, %c0_186] : memref<3x1x32xf32, #tpu.memory_space<vmem>>, vector<1x1x32xf32>
    %366 = vector.shape_cast %365 : vector<1x1x32xf32> to vector<1x32xf32>
    %367 = vector.broadcast %366 : vector<1x32xf32> to vector<32x32xf32>
    %368 = arith.addf %364, %367 : vector<32x32xf32>
    %369 = arith.addf %341, %368 : vector<32x32xf32>
    %c2_187 = arith.constant 2 : index
    %c0_188 = arith.constant 0 : index
    %c0_189 = arith.constant 0 : index
    %370 = vector.load %arg19[%c2_187, %c0_188, %c0_189] : memref<3x1x32xf32, #tpu.memory_space<vmem>>, vector<1x1x32xf32>
    %371 = vector.shape_cast %370 : vector<1x1x32xf32> to vector<1x32xf32>
    %c2_190 = arith.constant 2 : index
    %c0_191 = arith.constant 0 : index
    %c0_192 = arith.constant 0 : index
    %372 = vector.load %arg20[%c2_190, %c0_191, %c0_192] : memref<3x1x32xf32, #tpu.memory_space<vmem>>, vector<1x1x32xf32>
    %373 = vector.shape_cast %372 : vector<1x1x32xf32> to vector<1x32xf32>
    %cst_193 = arith.constant dense<0.000000e+00> : vector<32xf32>
    %374 = vector.multi_reduction <add>, %369, %cst_193 [1] : vector<32x32xf32> to vector<32xf32>
    %375 = vector.shape_cast %374 : vector<32xf32> to vector<32x1xf32>
    %cst_194 = arith.constant 3.200000e+01 : f32
    %376 = vector.broadcast %cst_194 : f32 to vector<32x1xf32>
    %377 = arith.divf %375, %376 : vector<32x1xf32>
    %378 = arith.mulf %369, %369 : vector<32x32xf32>
    %cst_195 = arith.constant dense<0.000000e+00> : vector<32xf32>
    %379 = vector.multi_reduction <add>, %378, %cst_195 [1] : vector<32x32xf32> to vector<32xf32>
    %380 = vector.shape_cast %379 : vector<32xf32> to vector<32x1xf32>
    %cst_196 = arith.constant 3.200000e+01 : f32
    %381 = vector.broadcast %cst_196 : f32 to vector<32x1xf32>
    %382 = arith.divf %380, %381 : vector<32x1xf32>
    %383 = arith.mulf %377, %377 : vector<32x1xf32>
    %384 = arith.subf %382, %383 : vector<32x1xf32>
    %cst_197 = arith.constant 9.99999974E-6 : f32
    %385 = vector.broadcast %cst_197 : f32 to vector<32x1xf32>
    %386 = arith.addf %384, %385 : vector<32x1xf32>
    %387 = math.rsqrt %386 : vector<32x1xf32>
    %388 = vector.broadcast %377 : vector<32x1xf32> to vector<32x32xf32>
    %389 = arith.subf %369, %388 : vector<32x32xf32>
    %390 = vector.broadcast %387 : vector<32x1xf32> to vector<32x32xf32>
    %391 = vector.broadcast %371 : vector<1x32xf32> to vector<32x32xf32>
    %392 = arith.mulf %390, %391 : vector<32x32xf32>
    %393 = arith.mulf %389, %392 : vector<32x32xf32>
    %394 = vector.broadcast %373 : vector<1x32xf32> to vector<32x32xf32>
    %395 = arith.addf %393, %394 : vector<32x32xf32>
    %396 = vector.extract_strided_slice %395 {offsets = [8, 0], sizes = [8, 32], strides = [1, 1]} : vector<32x32xf32> to vector<8x32xf32>
    %397 = vector.extract_strided_slice %395 {offsets = [24, 0], sizes = [8, 32], strides = [1, 1]} : vector<32x32xf32> to vector<8x32xf32>
    %398 = tpu.concatenate %396, %397 in 0 : vector<8x32xf32>, vector<8x32xf32> -> vector<16x32xf32>
    %c0_198 = arith.constant 0 : index
    %c0_199 = arith.constant 0 : index
    %399 = vector.load %arg21[%c0_198, %c0_199] : memref<1x32xf32, #tpu.memory_space<vmem>>, vector<1x32xf32>
    %c0_200 = arith.constant 0 : index
    %c0_201 = arith.constant 0 : index
    %400 = vector.load %arg22[%c0_200, %c0_201] : memref<1x32xf32, #tpu.memory_space<vmem>>, vector<1x32xf32>
    %cst_202 = arith.constant dense<0.000000e+00> : vector<16xf32>
    %401 = vector.multi_reduction <add>, %398, %cst_202 [1] : vector<16x32xf32> to vector<16xf32>
    %402 = vector.shape_cast %401 : vector<16xf32> to vector<16x1xf32>
    %cst_203 = arith.constant 3.200000e+01 : f32
    %403 = vector.broadcast %cst_203 : f32 to vector<16x1xf32>
    %404 = arith.divf %402, %403 : vector<16x1xf32>
    %405 = arith.mulf %398, %398 : vector<16x32xf32>
    %cst_204 = arith.constant dense<0.000000e+00> : vector<16xf32>
    %406 = vector.multi_reduction <add>, %405, %cst_204 [1] : vector<16x32xf32> to vector<16xf32>
    %407 = vector.shape_cast %406 : vector<16xf32> to vector<16x1xf32>
    %cst_205 = arith.constant 3.200000e+01 : f32
    %408 = vector.broadcast %cst_205 : f32 to vector<16x1xf32>
    %409 = arith.divf %407, %408 : vector<16x1xf32>
    %410 = arith.mulf %404, %404 : vector<16x1xf32>
    %411 = arith.subf %409, %410 : vector<16x1xf32>
    %cst_206 = arith.constant 9.99999974E-6 : f32
    %412 = vector.broadcast %cst_206 : f32 to vector<16x1xf32>
    %413 = arith.addf %411, %412 : vector<16x1xf32>
    %414 = math.rsqrt %413 : vector<16x1xf32>
    %415 = vector.broadcast %404 : vector<16x1xf32> to vector<16x32xf32>
    %416 = arith.subf %398, %415 : vector<16x32xf32>
    %417 = vector.broadcast %414 : vector<16x1xf32> to vector<16x32xf32>
    %418 = vector.broadcast %399 : vector<1x32xf32> to vector<16x32xf32>
    %419 = arith.mulf %417, %418 : vector<16x32xf32>
    %420 = arith.mulf %416, %419 : vector<16x32xf32>
    %421 = vector.broadcast %400 : vector<1x32xf32> to vector<16x32xf32>
    %422 = arith.addf %420, %421 : vector<16x32xf32>
    %c0_207 = arith.constant 0 : index
    %c0_208 = arith.constant 0 : index
    %423 = vector.load %arg23[%c0_207, %c0_208] : memref<32x128xf32, #tpu.memory_space<vmem>>, vector<32x128xf32>
    %cst_209 = arith.constant dense<0.000000e+00> : vector<16x128xf32>
    %424 = tpu.matmul %422, %423, %cst_209 {dimension_numbers = #tpu.dot_dimension_numbers<[1], [0], [0], [1], [0, 0, 1, 1], [], []>} : vector<16x32xf32>, vector<32x128xf32>, vector<16x128xf32> -> vector<16x128xf32>
    %c0_210 = arith.constant 0 : index
    %c0_211 = arith.constant 0 : index
    %425 = vector.load %arg24[%c0_210, %c0_211] : memref<1x128xf32, #tpu.memory_space<vmem>>, vector<1x128xf32>
    %426 = vector.broadcast %425 : vector<1x128xf32> to vector<16x128xf32>
    %427 = arith.addf %424, %426 : vector<16x128xf32>
    %c0_212 = arith.constant 0 : index
    %c0_213 = arith.constant 0 : index
    %428 = vector.load %arg25[%c0_212, %c0_213] : memref<16x128xf32, #tpu.memory_space<vmem>>, vector<16x128xf32>
    tpu.vector_store %arg25[%c0_212, %c0_213], %427 {strides = array<i32>} : memref<16x128xf32, #tpu.memory_space<vmem>>, vector<16x128xf32>,
    return
  }
}

</mosaic_0001>

<llo_original>
// kernel: informer_forward.1
$region0: #{informer_forward.1}
  #allocation0 [shape = 'u32[]', space=smem, size = 0x4, offset = 0x4, fixed_abs, tag = 'smem constant byte address 0x4 - core index']
  #allocation1 [shape = 'u32[72,128]{1,0:T(1,128)}', space=vmem, size = 0x9000, scoped, tag = 'internal scratch']
  %s0 = inlined_call_operand.vmem [shape: f32[32,4], index: 0, kind: input, shape index: {}]
  %s1 = inlined_call_operand.vmem [shape: s32[32,4], index: 1, kind: input, shape index: {}]
  %s2 = inlined_call_operand.hbm [shape: f32[12,32], index: 2, kind: input, shape index: {}]
  %s3 = inlined_call_operand.hbm [shape: f32[1,32], index: 3, kind: input, shape index: {}]
  %s4 = inlined_call_operand.vmem [shape: f32[76,32], index: 4, kind: input, shape index: {}]
  %s5 = inlined_call_operand.vmem [shape: f32[32,32], index: 5, kind: input, shape index: {}]
  %s6 = inlined_call_operand.vmem [shape: f32[128,32], index: 6, kind: input, shape index: {}]
  %s7 = inlined_call_operand.vmem [shape: f32[32,128], index: 7, kind: input, shape index: {}]
  %s8 = inlined_call_operand.vmem [shape: f32[128,128], index: 8, kind: input, shape index: {}]
  %s9 = inlined_call_operand.vmem [shape: f32[3,32,96], index: 9, kind: input, shape index: {}]
  %s10 = inlined_call_operand.hbm [shape: f32[3,1,96], index: 10, kind: input, shape index: {}]
  %s11 = inlined_call_operand.vmem [shape: f32[3,32,32], index: 11, kind: input, shape index: {}]
  %s12 = inlined_call_operand.hbm [shape: f32[3,1,32], index: 12, kind: input, shape index: {}]
  %s13 = inlined_call_operand.vmem [shape: f32[3,32,64], index: 13, kind: input, shape index: {}]
  %s14 = inlined_call_operand.hbm [shape: f32[3,1,64], index: 14, kind: input, shape index: {}]
  %s15 = inlined_call_operand.vmem [shape: f32[3,64,32], index: 15, kind: input, shape index: {}]
  %s16 = inlined_call_operand.hbm [shape: f32[3,1,32], index: 16, kind: input, shape index: {}]
  %s17 = inlined_call_operand.hbm [shape: f32[3,1,32], index: 17, kind: input, shape index: {}]
  %s18 = inlined_call_operand.hbm [shape: f32[3,1,32], index: 18, kind: input, shape index: {}]
  %s19 = inlined_call_operand.hbm [shape: f32[3,1,32], index: 19, kind: input, shape index: {}]
  %s20 = inlined_call_operand.hbm [shape: f32[3,1,32], index: 20, kind: input, shape index: {}]
  %s21 = inlined_call_operand.hbm [shape: f32[1,32], index: 21, kind: input, shape index: {}]
  %s22 = inlined_call_operand.hbm [shape: f32[1,32], index: 22, kind: input, shape index: {}]
  %s23 = inlined_call_operand.vmem [shape: f32[32,128], index: 23, kind: input, shape index: {}]
  %s24 = inlined_call_operand.hbm [shape: f32[1,128], index: 24, kind: input, shape index: {}]
  %s25 = inlined_call_operand.vmem [shape: f32[16,128], index: 25, kind: output, shape index: {}]
  %s26 = sld [smem:[#allocation0]]
  $region162: #{informer_forward.1} parent=0
    _
  %s28 = ssub.s32 1, %s26
  %s29 = scalar_select 0, %s28, %s26
  $region1: #{informer_forward.1} parent=0
    #allocation2 [shape = 'u8[8192]{0}', space=vmem, size = 0x2000, scoped, tag = 'input window, operand 2, single buffered']
    #allocation3 [shape = 's32[1]{0}', space=sflag, size = 0x4, scoped, tag = 'scoped memory for informer_forward.1']
    #allocation4 [shape = 'u8[512]{0}', space=vmem, size = 0x400, scoped, tag = 'input window, operand 3, single buffered']
    #allocation5 [shape = 's32[1]{0}', space=sflag, size = 0x4, scoped, tag = 'scoped memory for informer_forward.1']
    #allocation6 [shape = 'u8[1536]{0}', space=vmem, size = 0x800, scoped, tag = 'input window, operand 10, single buffered']
    #allocation7 [shape = 'u8[1536]{0}', space=vmem, size = 0x800, scoped, tag = 'input window, operand 12, single buffered']
    #allocation8 [shape = 's32[1]{0}', space=sflag, size = 0x4, scoped, tag = 'scoped memory for informer_forward.1']
    #allocation9 [shape = 'u8[1536]{0}', space=vmem, size = 0x800, scoped, tag = 'input window, operand 14, single buffered']
    #allocation10 [shape = 'u8[1536]{0}', space=vmem, size = 0x800, scoped, tag = 'input window, operand 16, single buffered']
    #allocation11 [shape = 's32[1]{0}', space=sflag, size = 0x4, scoped, tag = 'scoped memory for informer_forward.1']
    #allocation12 [shape = 'u8[1536]{0}', space=vmem, size = 0x800, scoped, tag = 'input window, operand 17, single buffered']
    #allocation13 [shape = 'u8[1536]{0}', space=vmem, size = 0x800, scoped, tag = 'input window, operand 18, single buffered']
    #allocation14 [shape = 's32[1]{0}', space=sflag, size = 0x4, scoped, tag = 'scoped memory for informer_forward.1']
    #allocation15 [shape = 'u8[1536]{0}', space=vmem, size = 0x800, scoped, tag = 'input window, operand 19, single buffered']
    #allocation16 [shape = 'u8[1536]{0}', space=vmem, size = 0x800, scoped, tag = 'input window, operand 20, single buffered']
    #allocation17 [shape = 's32[1]{0}', space=sflag, size = 0x4, scoped, tag = 'scoped memory for informer_forward.1']
    #allocation18 [shape = 'u8[512]{0}', space=vmem, size = 0x400, scoped, tag = 'input window, operand 21, single buffered']
    #allocation19 [shape = 'u8[512]{0}', space=vmem, size = 0x400, scoped, tag = 'input window, operand 22, single buffered']
    #allocation20 [shape = 's32[1]{0}', space=sflag, size = 0x4, scoped, tag = 'scoped memory for informer_forward.1']
    #allocation21 [shape = 'u8[512]{0}', space=vmem, size = 0x400, scoped, tag = 'input window, operand 24, single buffered']
    %30 = vsyncpa [#allocation3], 0
    %31 = vsyncpa [#allocation5], 0
    %32 = vsyncpa [#allocation8], 0
    %33 = vsyncpa [#allocation11], 0
    %34 = vsyncpa [#allocation14], 0
    %35 = vsyncpa [#allocation17], 0
    %36 = vsyncpa [#allocation20], 0
    // Predicated region
    $region2: #{informer_forward.1} parent=1 // pred_check
      _
    $region3: #{informer_forward.1} parent=1 // pred_check_branch
      %38 = sbr.rel (0) target = $region5
    $region4: #{informer_forward.1} parent=1 // pred_region
      _
    $region5: #{informer_forward.1} parent=1 // pred_fallthru
      _
    // Predicated region
    $region6: #{informer_forward.1} parent=1 // pred_check
      _
    $region7: #{informer_forward.1} parent=1 // pred_check_branch
      %40 = sbr.rel (0) target = $region9
    $region8: #{informer_forward.1} parent=1 // pred_region
      _
    $region9: #{informer_forward.1} parent=1 // pred_fallthru
      _
    // Predicated region
    $region10: #{informer_forward.1} parent=1 // pred_check
      _
    $region11: #{informer_forward.1} parent=1 // pred_check_branch
      %42 = sbr.rel (0) target = $region13
    $region12: #{informer_forward.1} parent=1 // pred_region
      %44 = vsyncadd [#allocation3], 0
      %s45 = sshll.u32 %s2, 4
      %s46 = int_to_ptr.hbm [resolvable:$true] %s45
      %s47 = sshll.u32 [#allocation2], 4
      %s48 = int_to_ptr.vmem [resolvable:$true] %s47
      %53 = dma.hbm_to_vmem [thread:$0]  %s46, 256, %s48, [#allocation3], 128, 128, 8
    $region13: #{informer_forward.1} parent=1 // pred_fallthru
      _
    // Predicated region
    $region14: #{informer_forward.1} parent=1 // pred_check
      _
    $region15: #{informer_forward.1} parent=1 // pred_check_branch
      %55 = sbr.rel (0) target = $region17
    $region16: #{informer_forward.1} parent=1 // pred_region
      %57 = vsyncadd [#allocation5], 0
      %s59 = sshll.u32 %s3, 4
      %s60 = int_to_ptr.hbm [resolvable:$true] %s59
      %s61 = sshll.u32 [#allocation4], 4
      %s62 = int_to_ptr.vmem [resolvable:$true] %s61
      %64 = dma.hbm_to_vmem [thread:$0]  %s60, 16, %s62, [#allocation5]
    $region17: #{informer_forward.1} parent=1 // pred_fallthru
      _
    // Predicated region
    $region18: #{informer_forward.1} parent=1 // pred_check
      _
    $region19: #{informer_forward.1} parent=1 // pred_check_branch
      %66 = sbr.rel (0) target = $region21
    $region20: #{informer_forward.1} parent=1 // pred_region
      _
    $region21: #{informer_forward.1} parent=1 // pred_fallthru
      _
    // Predicated region
    $region22: #{informer_forward.1} parent=1 // pred_check
      _
    $region23: #{informer_forward.1} parent=1 // pred_check_branch
      %68 = sbr.rel (0) target = $region25
    $region24: #{informer_forward.1} parent=1 // pred_region
      _
    $region25: #{informer_forward.1} parent=1 // pred_fallthru
      _
    // Predicated region
    $region26: #{informer_forward.1} parent=1 // pred_check
      _
    $region27: #{informer_forward.1} parent=1 // pred_check_branch
      %70 = sbr.rel (0) target = $region29
    $region28: #{informer_forward.1} parent=1 // pred_region
      _
    $region29: #{informer_forward.1} parent=1 // pred_fallthru
      _
    // Predicated region
    $region30: #{informer_forward.1} parent=1 // pred_check
      _
    $region31: #{informer_forward.1} parent=1 // pred_check_branch
      %72 = sbr.rel (0) target = $region33
    $region32: #{informer_forward.1} parent=1 // pred_region
      _
    $region33: #{informer_forward.1} parent=1 // pred_fallthru
      _
    // Predicated region
    $region34: #{informer_forward.1} parent=1 // pred_check
      _
    $region35: #{informer_forward.1} parent=1 // pred_check_branch
      %74 = sbr.rel (0) target = $region37
    $region36: #{informer_forward.1} parent=1 // pred_region
      _
    $region37: #{informer_forward.1} parent=1 // pred_fallthru
      _
    // Predicated region
    $region38: #{informer_forward.1} parent=1 // pred_check
      _
    $region39: #{informer_forward.1} parent=1 // pred_check_branch
      %76 = sbr.rel (0) target = $region41
    $region40: #{informer_forward.1} parent=1 // pred_region
      _
    $region41: #{informer_forward.1} parent=1 // pred_fallthru
      _
    // Predicated region
    $region42: #{informer_forward.1} parent=1 // pred_check
      _
    $region43: #{informer_forward.1} parent=1 // pred_check_branch
      %78 = sbr.rel (0) target = $region45
    $region44: #{informer_forward.1} parent=1 // pred_region
      %80 = vsyncadd [#allocation5], 0
      %s81 = sshll.u32 %s10, 4
      %s82 = int_to_ptr.hbm [resolvable:$true] %s81
      %s83 = sshll.u32 [#allocation6], 4
      %s84 = int_to_ptr.vmem [resolvable:$true] %s83
      %89 = dma.hbm_to_vmem [thread:$0]  %s82, 48, %s84, [#allocation5], 16, 16, 1
    $region45: #{informer_forward.1} parent=1 // pred_fallthru
      _
    // Predicated region
    $region46: #{informer_forward.1} parent=1 // pred_check
      _
    $region47: #{informer_forward.1} parent=1 // pred_check_branch
      %91 = sbr.rel (0) target = $region49
    $region48: #{informer_forward.1} parent=1 // pred_region
      _
    $region49: #{informer_forward.1} parent=1 // pred_fallthru
      _
    // Predicated region
    $region50: #{informer_forward.1} parent=1 // pred_check
      _
    $region51: #{informer_forward.1} parent=1 // pred_check_branch
      %93 = sbr.rel (0) target = $region53
    $region52: #{informer_forward.1} parent=1 // pred_region
      %95 = vsyncadd [#allocation8], 0
      %s96 = sshll.u32 %s12, 4
      %s97 = int_to_ptr.hbm [resolvable:$true] %s96
      %s98 = sshll.u32 [#allocation7], 4
      %s99 = int_to_ptr.vmem [resolvable:$true] %s98
      %104 = dma.hbm_to_vmem [thread:$0]  %s97, 48, %s99, [#allocation8], 16, 16, 1
    $region53: #{informer_forward.1} parent=1 // pred_fallthru
      _
    // Predicated region
    $region54: #{informer_forward.1} parent=1 // pred_check
      _
    $region55: #{informer_forward.1} parent=1 // pred_check_branch
      %106 = sbr.rel (0) target = $region57
    $region56: #{informer_forward.1} parent=1 // pred_region
      _
    $region57: #{informer_forward.1} parent=1 // pred_fallthru
      _
    // Predicated region
    $region58: #{informer_forward.1} parent=1 // pred_check
      _
    $region59: #{informer_forward.1} parent=1 // pred_check_branch
      %108 = sbr.rel (0) target = $region61
    $region60: #{informer_forward.1} parent=1 // pred_region
      %110 = vsyncadd [#allocation8], 0
      %s111 = sshll.u32 %s14, 4
      %s112 = int_to_ptr.hbm [resolvable:$true] %s111
      %s113 = sshll.u32 [#allocation9], 4
      %s114 = int_to_ptr.vmem [resolvable:$true] %s113
      %119 = dma.hbm_to_vmem [thread:$0]  %s112, 48, %s114, [#allocation8], 16, 16, 1
    $region61: #{informer_forward.1} parent=1 // pred_fallthru
      _
    // Predicated region
    $region62: #{informer_forward.1} parent=1 // pred_check
      _
    $region63: #{informer_forward.1} parent=1 // pred_check_branch
      %121 = sbr.rel (0) target = $region65
    $region64: #{informer_forward.1} parent=1 // pred_region
      _
    $region65: #{informer_forward.1} parent=1 // pred_fallthru
      _
    // Predicated region
    $region66: #{informer_forward.1} parent=1 // pred_check
      _
    $region67: #{informer_forward.1} parent=1 // pred_check_branch
      %123 = sbr.rel (0) target = $region69
    $region68: #{informer_forward.1} parent=1 // pred_region
      %125 = vsyncadd [#allocation11], 0
      %s126 = sshll.u32 %s16, 4
      %s127 = int_to_ptr.hbm [resolvable:$true] %s126
      %s128 = sshll.u32 [#allocation10], 4
      %s129 = int_to_ptr.vmem [resolvable:$true] %s128
      %134 = dma.hbm_to_vmem [thread:$0]  %s127, 48, %s129, [#allocation11], 16, 16, 1
    $region69: #{informer_forward.1} parent=1 // pred_fallthru
      _
    // Predicated region
    $region70: #{informer_forward.1} parent=1 // pred_check
      _
    $region71: #{informer_forward.1} parent=1 // pred_check_branch
      %136 = sbr.rel (0) target = $region73
    $region72: #{informer_forward.1} parent=1 // pred_region
      %138 = vsyncadd [#allocation11], 0
      %s139 = sshll.u32 %s17, 4
      %s140 = int_to_ptr.hbm [resolvable:$true] %s139
      %s141 = sshll.u32 [#allocation12], 4
      %s142 = int_to_ptr.vmem [resolvable:$true] %s141
      %147 = dma.hbm_to_vmem [thread:$0]  %s140, 48, %s142, [#allocation11], 16, 16, 1
    $region73: #{informer_forward.1} parent=1 // pred_fallthru
      _
    // Predicated region
    $region74: #{informer_forward.1} parent=1 // pred_check
      _
    $region75: #{informer_forward.1} parent=1 // pred_check_branch
      %149 = sbr.rel (0) target = $region77
    $region76: #{informer_forward.1} parent=1 // pred_region
      %151 = vsyncadd [#allocation14], 0
      %s152 = sshll.u32 %s18, 4
      %s153 = int_to_ptr.hbm [resolvable:$true] %s152
      %s154 = sshll.u32 [#allocation13], 4
      %s155 = int_to_ptr.vmem [resolvable:$true] %s154
      %160 = dma.hbm_to_vmem [thread:$0]  %s153, 48, %s155, [#allocation14], 16, 16, 1
    $region77: #{informer_forward.1} parent=1 // pred_fallthru
      _
    // Predicated region
    $region78: #{informer_forward.1} parent=1 // pred_check
      _
    $region79: #{informer_forward.1} parent=1 // pred_check_branch
      %162 = sbr.rel (0) target = $region81
    $region80: #{informer_forward.1} parent=1 // pred_region
      %164 = vsyncadd [#allocation14], 0
      %s165 = sshll.u32 %s19, 4
      %s166 = int_to_ptr.hbm [resolvable:$true] %s165
      %s167 = sshll.u32 [#allocation15], 4
      %s168 = int_to_ptr.vmem [resolvable:$true] %s167
      %173 = dma.hbm_to_vmem [thread:$0]  %s166, 48, %s168, [#allocation14], 16, 16, 1
    $region81: #{informer_forward.1} parent=1 // pred_fallthru
      _
    // Predicated region
    $region82: #{informer_forward.1} parent=1 // pred_check
      _
    $region83: #{informer_forward.1} parent=1 // pred_check_branch
      %175 = sbr.rel (0) target = $region85
    $region84: #{informer_forward.1} parent=1 // pred_region
      %177 = vsyncadd [#allocation17], 0
      %s178 = sshll.u32 %s20, 4
      %s179 = int_to_ptr.hbm [resolvable:$true] %s178
      %s180 = sshll.u32 [#allocation16], 4
      %s181 = int_to_ptr.vmem [resolvable:$true] %s180
      %186 = dma.hbm_to_vmem [thread:$0]  %s179, 48, %s181, [#allocation17], 16, 16, 1
    $region85: #{informer_forward.1} parent=1 // pred_fallthru
      _
    // Predicated region
    $region86: #{informer_forward.1} parent=1 // pred_check
      _
    $region87: #{informer_forward.1} parent=1 // pred_check_branch
      %188 = sbr.rel (0) target = $region89
    $region88: #{informer_forward.1} parent=1 // pred_region
      %190 = vsyncadd [#allocation17], 0
      %s192 = sshll.u32 %s21, 4
      %s193 = int_to_ptr.hbm [resolvable:$true] %s192
      %s194 = sshll.u32 [#allocation18], 4
      %s195 = int_to_ptr.vmem [resolvable:$true] %s194
      %197 = dma.hbm_to_vmem [thread:$0]  %s193, 16, %s195, [#allocation17]
    $region89: #{informer_forward.1} parent=1 // pred_fallthru
      _
    // Predicated region
    $region90: #{informer_forward.1} parent=1 // pred_check
      _
    $region91: #{informer_forward.1} parent=1 // pred_check_branch
      %199 = sbr.rel (0) target = $region93
    $region92: #{informer_forward.1} parent=1 // pred_region
      %201 = vsyncadd [#allocation20], 0
      %s203 = sshll.u32 %s22, 4
      %s204 = int_to_ptr.hbm [resolvable:$true] %s203
      %s205 = sshll.u32 [#allocation19], 4
      %s206 = int_to_ptr.vmem [resolvable:$true] %s205
      %208 = dma.hbm_to_vmem [thread:$0]  %s204, 16, %s206, [#allocation20]
    $region93: #{informer_forward.1} parent=1 // pred_fallthru
      _
    // Predicated region
    $region94: #{informer_forward.1} parent=1 // pred_check
      _
    $region95: #{informer_forward.1} parent=1 // pred_check_branch
      %210 = sbr.rel (0) target = $region97
    $region96: #{informer_forward.1} parent=1 // pred_region
      _
    $region97: #{informer_forward.1} parent=1 // pred_fallthru
      _
    // Predicated region
    $region98: #{informer_forward.1} parent=1 // pred_check
      _
    $region99: #{informer_forward.1} parent=1 // pred_check_branch
      %212 = sbr.rel (0) target = $region101
    $region100: #{informer_forward.1} parent=1 // pred_region
      %214 = vsyncadd [#allocation20], 0
      %s216 = sshll.u32 %s24, 4
      %s217 = int_to_ptr.hbm [resolvable:$true] %s216
      %s218 = sshll.u32 [#allocation21], 4
      %s219 = int_to_ptr.vmem [resolvable:$true] %s218
      %221 = dma.hbm_to_vmem [thread:$0]  %s217, 16, %s219, [#allocation20]
    $region101: #{informer_forward.1} parent=1 // pred_fallthru
      _
    // Predicated region
    $region102: #{informer_forward.1} parent=1 // pred_check
      _
    $region103: #{informer_forward.1} parent=1 // pred_check_branch
      %223 = sbr.rel (0) target = $region105
    $region104: #{informer_forward.1} parent=1 // pred_region
      %225 = dma.done [#allocation3], 256
    $region105: #{informer_forward.1} parent=1 // pred_fallthru
      _
    // Predicated region
    $region106: #{informer_forward.1} parent=1 // pred_check
      _
    $region107: #{informer_forward.1} parent=1 // pred_check_branch
      %227 = sbr.rel (0) target = $region109
    $region108: #{informer_forward.1} parent=1 // pred_region
      %229 = dma.done [#allocation5], 16
    $region109: #{informer_forward.1} parent=1 // pred_fallthru
      _
    // Predicated region
    $region110: #{informer_forward.1} parent=1 // pred_check
      _
    $region111: #{informer_forward.1} parent=1 // pred_check_branch
      %231 = sbr.rel (0) target = $region113
    $region112: #{informer_forward.1} parent=1 // pred_region
      %233 = dma.done [#allocation5], 48
    $region113: #{informer_forward.1} parent=1 // pred_fallthru
      _
    // Predicated region
    $region114: #{informer_forward.1} parent=1 // pred_check
      _
    $region115: #{informer_forward.1} parent=1 // pred_check_branch
      %235 = sbr.rel (0) target = $region117
    $region116: #{informer_forward.1} parent=1 // pred_region
      %237 = dma.done [#allocation8], 48
    $region117: #{informer_forward.1} parent=1 // pred_fallthru
      _
    // Predicated region
    $region118: #{informer_forward.1} parent=1 // pred_check
      _
    $region119: #{informer_forward.1} parent=1 // pred_check_branch
      %239 = sbr.rel (0) target = $region121
    $region120: #{informer_forward.1} parent=1 // pred_region
      %241 = dma.done [#allocation8], 48
    $region121: #{informer_forward.1} parent=1 // pred_fallthru
      _
    // Predicated region
    $region122: #{informer_forward.1} parent=1 // pred_check
      _
    $region123: #{informer_forward.1} parent=1 // pred_check_branch
      %243 = sbr.rel (0) target = $region125
    $region124: #{informer_forward.1} parent=1 // pred_region
      %245 = dma.done [#allocation11], 48
    $region125: #{informer_forward.1} parent=1 // pred_fallthru
      _
    // Predicated region
    $region126: #{informer_forward.1} parent=1 // pred_check
      _
    $region127: #{informer_forward.1} parent=1 // pred_check_branch
      %247 = sbr.rel (0) target = $region129
    $region128: #{informer_forward.1} parent=1 // pred_region
      %249 = dma.done [#allocation11], 48
    $region129: #{informer_forward.1} parent=1 // pred_fallthru
      _
    // Predicated region
    $region130: #{informer_forward.1} parent=1 // pred_check
      _
    $region131: #{informer_forward.1} parent=1 // pred_check_branch
      %251 = sbr.rel (0) target = $region133
    $region132: #{informer_forward.1} parent=1 // pred_region
      %253 = dma.done [#allocation14], 48
    $region133: #{informer_forward.1} parent=1 // pred_fallthru
      _
    // Predicated region
    $region134: #{informer_forward.1} parent=1 // pred_check
      _
    $region135: #{informer_forward.1} parent=1 // pred_check_branch
      %255 = sbr.rel (0) target = $region137
    $region136: #{informer_forward.1} parent=1 // pred_region
      %257 = dma.done [#allocation14], 48
    $region137: #{informer_forward.1} parent=1 // pred_fallthru
      _
    // Predicated region
    $region138: #{informer_forward.1} parent=1 // pred_check
      _
    $region139: #{informer_forward.1} parent=1 // pred_check_branch
      %259 = sbr.rel (0) target = $region141
    $region140: #{informer_forward.1} parent=1 // pred_region
      %261 = dma.done [#allocation17], 48
    $region141: #{informer_forward.1} parent=1 // pred_fallthru
      _
    // Predicated region
    $region142: #{informer_forward.1} parent=1 // pred_check
      _
    $region143: #{informer_forward.1} parent=1 // pred_check_branch
      %263 = sbr.rel (0) target = $region145
    $region144: #{informer_forward.1} parent=1 // pred_region
      %265 = dma.done [#allocation17], 16
    $region145: #{informer_forward.1} parent=1 // pred_fallthru
      _
    // Predicated region
    $region146: #{informer_forward.1} parent=1 // pred_check
      _
    $region147: #{informer_forward.1} parent=1 // pred_check_branch
      %267 = sbr.rel (0) target = $region149
    $region148: #{informer_forward.1} parent=1 // pred_region
      %269 = dma.done [#allocation20], 16
    $region149: #{informer_forward.1} parent=1 // pred_fallthru
      _
    // Predicated region
    $region150: #{informer_forward.1} parent=1 // pred_check
      _
    $region151: #{informer_forward.1} parent=1 // pred_check_branch
      %271 = sbr.rel (0) target = $region153
    $region152: #{informer_forward.1} parent=1 // pred_region
      %273 = dma.done [#allocation20], 16
    $region153: #{informer_forward.1} parent=1 // pred_fallthru
      _
    %v274 = vld [vmem:[%s0] sm:$0xff]
    %v275 = vld [vmem:[%s0 + $0x8] sm:$0xff]
    %v276 = vld [vmem:[%s0 + $0x10] sm:$0xff]
    %v277 = vld [vmem:[%s0 + $0x18] sm:$0xff]
    %v279 = vrot.slane %v275, 7
    %vm282 = vcmask 1040384
    %v283 = vrot.slane %v274, 7
    %v284 = vsel %vm282, %v283, %v279
    %v288 = vrot.slane %v277, 7
    %v291 = vrot.slane %v276, 7
    %v292 = vsel %vm282, %v291, %v288
    %v295 = vsel %vm282, %v279, %v283
    %v296 = vsel %vm282, %v288, %v291
    %vm297 = vcmask 1046528
    %v298 = vrot.slane %v274, 1
    %v299 = vrot.slane %v275, 1
    %v300 = vsel %vm297, %v298, %v299
    %v303 = vrot.slane %v276, 1
    %v304 = vrot.slane %v277, 1
    %v305 = vsel %vm297, %v303, %v304
    %v308 = vsel %vm297, %v299, %v298
    %v309 = vsel %vm297, %v304, %v303
    %310 = vrot.lane.b32.xlu0 %v274, 4
    %v311 = vpop.permute.xlu0 %310
    %312 = vrot.lane.b32.xlu0 %v275, 4
    %v313 = vpop.permute.xlu0 %312
    %314 = vrot.lane.b32.xlu0 %v276, 4
    %v315 = vpop.permute.xlu0 %314
    %316 = vrot.lane.b32.xlu0 %v277, 4
    %v317 = vpop.permute.xlu0 %316
    %324 = vrot.lane.b32.xlu0 %v300, 8
    %v325 = vpop.permute.xlu0 %324
    %326 = vrot.lane.b32.xlu0 %v308, 8
    %v327 = vpop.permute.xlu0 %326
    %328 = vrot.lane.b32.xlu0 %v305, 8
    %v329 = vpop.permute.xlu0 %328
    %330 = vrot.lane.b32.xlu0 %v309, 8
    %v331 = vpop.permute.xlu0 %330
    %vm336 = vcmask 31744
    %v337 = vsel %vm336, %v295, %v311
    %v338 = vsel %vm336, %v284, %v313
    %v339 = vsel %vm336, %v296, %v315
    %v340 = vsel %vm336, %v292, %v317
    %vm341 = vcmask 64512
    %v342 = vsel %vm341, %v337, %v325
    %v343 = vsel %vm341, %v338, %v327
    %v344 = vsel %vm341, %v339, %v329
    %v345 = vsel %vm341, %v340, %v331
    %v346 = vld [vmem:[#allocation2] sm:$0xff]
    %v347 = vld [vmem:[#allocation2 + $0x8] sm:$0xf]
    %v348 = vld [vmem:[#allocation4] sm:$0x1]
    %v350 = vperm.slane %v348, 0
    %vm352 = vcmask 97280
    %v354 = vsel %vm352, %v342, 0
    %v357 = vsel %vm352, %v343, 0
    %v360 = vsel %vm352, %v344, 0
    %v363 = vsel %vm352, %v345, 0
    %vm365 = vcmask 1043456
    %v367 = vsel %vm365, %v347, 0
    %369 = vmatpush.msra.mxu0 0.0
    %370 = vmatpush.msra.mxu0 0.0
    %371 = vmatpush.msra.mxu0 0.0
    %372 = vmatpush.msra.mxu0 0.0
    %373 = vmatpush.msra.mxu0 0.0
    %374 = vmatpush.msra.mxu0 0.0
    %375 = vmatpush.msra.mxu0 0.0
    %376 = vmatpush.msra.mxu0 0.0
    %377 = vmatpush.msra.mxu0 0.0
    %378 = vmatpush.msra.mxu0 0.0
    %379 = vmatpush.msra.mxu0 0.0
    %380 = vmatpush.msra.mxu0 0.0
    %381 = vmatpush.msra.mxu0 0.0
    %382 = vmatpush.msra.mxu0 0.0
    %383 = vmatpush.msra.mxu0 %v367
    %384 = vmatpush.msra.mxu0 %v346
    %385 = vmatmul.f32.gmra.mxu0 %v354
    %v386 = vpop.f32.mrf.mxu0
    %v387 = vadd.f32 %v350, %v386
    %388 = vmatmul.f32.gmra.mxu0 %v357
    %v389 = vpop.f32.mrf.mxu0
    %v390 = vadd.f32 %v350, %v389
    %391 = vmatmul.f32.gmra.mxu0 %v360
    %v392 = vpop.f32.mrf.mxu0
    %v393 = vadd.f32 %v350, %v392
    %394 = vmatmul.f32.gmra.mxu0 %v363
    %v395 = vpop.f32.mrf.mxu0
    %v396 = vadd.f32 %v350, %v395
    %397 = vdwg.mxu0
    %v398 = vld [vmem:[%s1] sm:$0xff]
    %v399 = vld [vmem:[%s1 + $0x8] sm:$0xff]
    %v400 = vld [vmem:[%s1 + $0x10] sm:$0xff]
    %v401 = vld [vmem:[%s1 + $0x18] sm:$0xff]
    %v402 = vadd.s32 %v398, 13
    %v403 = vadd.s32 %v399, 13
    %v404 = vadd.s32 %v400, 13
    %v405 = vadd.s32 %v401, 13
    %v406 = vadd.s32 %v398, 45
    %v407 = vadd.s32 %v399, 45
    %v408 = vadd.s32 %v400, 45
    %v409 = vadd.s32 %v401, 45
    %v410 = vadd.s32 %v398, 52
    %v411 = vadd.s32 %v399, 52
    %v412 = vadd.s32 %v400, 52
    %v413 = vadd.s32 %v401, 52
    %v414 = vlaneseq
    %v415 = vand.u32 %v414, 127
    %416 = vset.pattern.permute.xlu0 0
    %417 = vperm.xlu0 %416, %v398
    %v418 = vpop.permute.xlu0 %417
    %419 = vset.pattern.permute.xlu0 0
    %420 = vperm.xlu0 %419, %v399
    %v421 = vpop.permute.xlu0 %420
    %422 = vset.pattern.permute.xlu0 0
    %423 = vperm.xlu0 %422, %v400
    %v424 = vpop.permute.xlu0 %423
    %425 = vset.pattern.permute.xlu0 0
    %426 = vperm.xlu0 %425, %v401
    %v427 = vpop.permute.xlu0 %426
    %vm428 = vcmp.eq.s32.totalorder %v415, %v418
    %vm429 = vcmp.eq.s32.totalorder %v415, %v421
    %vm430 = vcmp.eq.s32.totalorder %v415, %v424
    %vm431 = vcmp.eq.s32.totalorder %v415, %v427
    %v432 = vsel %vm428, 1.0, 0.0
    %v433 = vsel %vm429, 1.0, 0.0
    %v434 = vsel %vm430, 1.0, 0.0
    %v435 = vsel %vm431, 1.0, 0.0
    %436 = vset.pattern.permute.xlu0 1
    %437 = vperm.xlu0 %436, %v402
    %v438 = vpop.permute.xlu0 %437
    %439 = vset.pattern.permute.xlu0 1
    %440 = vperm.xlu0 %439, %v403
    %v441 = vpop.permute.xlu0 %440
    %442 = vset.pattern.permute.xlu0 1
    %443 = vperm.xlu0 %442, %v404
    %v444 = vpop.permute.xlu0 %443
    %445 = vset.pattern.permute.xlu0 1
    %446 = vperm.xlu0 %445, %v405
    %v447 = vpop.permute.xlu0 %446
    %vm448 = vcmp.eq.s32.totalorder %v415, %v438
    %vm449 = vcmp.eq.s32.totalorder %v415, %v441
    %vm450 = vcmp.eq.s32.totalorder %v415, %v444
    %vm451 = vcmp.eq.s32.totalorder %v415, %v447
    %v452 = vsel %vm448, 1.0, 0.0
    %v453 = vsel %vm449, 1.0, 0.0
    %v454 = vsel %vm450, 1.0, 0.0
    %v455 = vsel %vm451, 1.0, 0.0
    %v456 = vadd.f32 %v432, %v452
    %v457 = vadd.f32 %v433, %v453
    %v458 = vadd.f32 %v434, %v454
    %v459 = vadd.f32 %v435, %v455
    %460 = vset.pattern.permute.xlu0 2
    %461 = vperm.xlu0 %460, %v406
    %v462 = vpop.permute.xlu0 %461
    %463 = vset.pattern.permute.xlu0 2
    %464 = vperm.xlu0 %463, %v407
    %v465 = vpop.permute.xlu0 %464
    %466 = vset.pattern.permute.xlu0 2
    %467 = vperm.xlu0 %466, %v408
    %v468 = vpop.permute.xlu0 %467
    %469 = vset.pattern.permute.xlu0 2
    %470 = vperm.xlu0 %469, %v409
    %v471 = vpop.permute.xlu0 %470
    %vm472 = vcmp.eq.s32.totalorder %v415, %v462
    %vm473 = vcmp.eq.s32.totalorder %v415, %v465
    %vm474 = vcmp.eq.s32.totalorder %v415, %v468
    %vm475 = vcmp.eq.s32.totalorder %v415, %v471
    %v476 = vsel %vm472, 1.0, 0.0
    %v477 = vsel %vm473, 1.0, 0.0
    %v478 = vsel %vm474, 1.0, 0.0
    %v479 = vsel %vm475, 1.0, 0.0
    %v480 = vadd.f32 %v456, %v476
    %v481 = vadd.f32 %v457, %v477
    %v482 = vadd.f32 %v458, %v478
    %v483 = vadd.f32 %v459, %v479
    %484 = vset.pattern.permute.xlu0 3
    %485 = vperm.xlu0 %484, %v410
    %v486 = vpop.permute.xlu0 %485
    %487 = vset.pattern.permute.xlu0 3
    %488 = vperm.xlu0 %487, %v411
    %v489 = vpop.permute.xlu0 %488
    %490 = vset.pattern.permute.xlu0 3
    %491 = vperm.xlu0 %490, %v412
    %v492 = vpop.permute.xlu0 %491
    %493 = vset.pattern.permute.xlu0 3
    %494 = vperm.xlu0 %493, %v413
    %v495 = vpop.permute.xlu0 %494
    %vm496 = vcmp.eq.s32.totalorder %v415, %v486
    %vm497 = vcmp.eq.s32.totalorder %v415, %v489
    %vm498 = vcmp.eq.s32.totalorder %v415, %v492
    %vm499 = vcmp.eq.s32.totalorder %v415, %v495
    %v500 = vsel %vm496, 1.0, 0.0
    %v501 = vsel %vm497, 1.0, 0.0
    %v502 = vsel %vm498, 1.0, 0.0
    %v503 = vsel %vm499, 1.0, 0.0
    %v504 = vadd.f32 %v480, %v500
    %v505 = vadd.f32 %v481, %v501
    %v506 = vadd.f32 %v482, %v502
    %v507 = vadd.f32 %v483, %v503
    %v508 = vld [vmem:[%s4] sm:$0xff]
    %v509 = vld [vmem:[%s4 + $0x8] sm:$0xff]
    %v510 = vld [vmem:[%s4 + $0x10] sm:$0xff]
    %v511 = vld [vmem:[%s4 + $0x18] sm:$0xff]
    %v512 = vld [vmem:[%s4 + $0x20] sm:$0xff]
    %v513 = vld [vmem:[%s4 + $0x28] sm:$0xff]
    %v514 = vld [vmem:[%s4 + $0x30] sm:$0xff]
    %v515 = vld [vmem:[%s4 + $0x38] sm:$0xff]
    %v516 = vld [vmem:[%s4 + $0x40] sm:$0xff]
    %v517 = vld [vmem:[%s4 + $0x48] sm:$0xf]
    %vm518 = vcmask 621568
    %v520 = vsel %vm518, %v504, 0
    %v523 = vsel %vm518, %v505, 0
    %v526 = vsel %vm518, %v506, 0
    %v529 = vsel %vm518, %v507, 0
    %v532 = vsel %vm365, %v517, 0
    %534 = vmatpush.msra.mxu0 0.0
    %535 = vmatpush.msra.mxu0 0.0
    %536 = vmatpush.msra.mxu0 0.0
    %537 = vmatpush.msra.mxu0 0.0
    %538 = vmatpush.msra.mxu0 0.0
    %539 = vmatpush.msra.mxu0 0.0
    %540 = vmatpush.msra.mxu0 %v532
    %541 = vmatpush.msra.mxu0 %v516
    %542 = vmatpush.msra.mxu0 %v515
    %543 = vmatpush.msra.mxu0 %v514
    %544 = vmatpush.msra.mxu0 %v513
    %545 = vmatpush.msra.mxu0 %v512
    %546 = vmatpush.msra.mxu0 %v511
    %547 = vmatpush.msra.mxu0 %v510
    %548 = vmatpush.msra.mxu0 %v509
    %549 = vmatpush.msra.mxu0 %v508
    %550 = vmatmul.f32.gmra.mxu0 %v520
    %v551 = vpop.f32.mrf.mxu0
    %v552 = vadd.f32 0.0, %v551
    %553 = vmatmul.f32.gmra.mxu0 %v523
    %v554 = vpop.f32.mrf.mxu0
    %v555 = vadd.f32 0.0, %v554
    %556 = vmatmul.f32.gmra.mxu0 %v526
    %v557 = vpop.f32.mrf.mxu0
    %v558 = vadd.f32 0.0, %v557
    %559 = vmatmul.f32.gmra.mxu0 %v529
    %v560 = vpop.f32.mrf.mxu0
    %v561 = vadd.f32 0.0, %v560
    %562 = vdwg.mxu0
    %v563 = vadd.f32 %v387, %v552
    %v564 = vadd.f32 %v390, %v555
    %v565 = vadd.f32 %v393, %v558
    %v566 = vadd.f32 %v396, %v561
    %v567 = vld [vmem:[%s5] sm:$0xff]
    %v568 = vld [vmem:[%s5 + $0x8] sm:$0xff]
    %v569 = vld [vmem:[%s5 + $0x10] sm:$0xff]
    %v570 = vld [vmem:[%s5 + $0x18] sm:$0xff]
    %v571 = vadd.f32 %v563, %v567
    %v572 = vadd.f32 %v564, %v568
    %v573 = vadd.f32 %v565, %v569
    %v574 = vadd.f32 %v566, %v570
    %v575 = vld [vmem:[%s6] sm:$0xff]
    %v576 = vld [vmem:[%s6 + $0x8] sm:$0xff]
    %v577 = vld [vmem:[%s6 + $0x10] sm:$0xff]
    %v578 = vld [vmem:[%s6 + $0x18] sm:$0xff]
    %v579 = vld [vmem:[%s6 + $0x20] sm:$0xff]
    %v580 = vld [vmem:[%s6 + $0x28] sm:$0xff]
    %v581 = vld [vmem:[%s6 + $0x30] sm:$0xff]
    %v582 = vld [vmem:[%s6 + $0x38] sm:$0xff]
    %v583 = vld [vmem:[%s6 + $0x40] sm:$0xff]
    %v584 = vld [vmem:[%s6 + $0x48] sm:$0xff]
    %v585 = vld [vmem:[%s6 + $0x50] sm:$0xff]
    %v586 = vld [vmem:[%s6 + $0x58] sm:$0xff]
    %v587 = vld [vmem:[%s6 + $0x60] sm:$0xff]
    %v588 = vld [vmem:[%s6 + $0x68] sm:$0xff]
    %v589 = vld [vmem:[%s6 + $0x70] sm:$0xff]
    %v590 = vld [vmem:[%s6 + $0x78] sm:$0xff]
    %v591 = vld [vmem:[%s7] sm:$0xff]
    %v592 = vld [vmem:[%s7 + $0x8] sm:$0xff]
    %v593 = vld [vmem:[%s7 + $0x10] sm:$0xff]
    %v594 = vld [vmem:[%s7 + $0x18] sm:$0xff]
    %v595 = vld [vmem:[%s8] sm:$0xff]
    %v596 = vld [vmem:[%s8 + $0x8] sm:$0xff]
    %v597 = vld [vmem:[%s8 + $0x10] sm:$0xff]
    %v598 = vld [vmem:[%s8 + $0x18] sm:$0xff]
    %v599 = vld [vmem:[%s8 + $0x20] sm:$0xff]
    %v600 = vld [vmem:[%s8 + $0x28] sm:$0xff]
    %v601 = vld [vmem:[%s8 + $0x30] sm:$0xff]
    %v602 = vld [vmem:[%s8 + $0x38] sm:$0xff]
    %v603 = vld [vmem:[%s8 + $0x40] sm:$0xff]
    %v604 = vld [vmem:[%s8 + $0x48] sm:$0xff]
    %v605 = vld [vmem:[%s8 + $0x50] sm:$0xff]
    %v606 = vld [vmem:[%s8 + $0x58] sm:$0xff]
    %v607 = vld [vmem:[%s8 + $0x60] sm:$0xff]
    %v608 = vld [vmem:[%s8 + $0x68] sm:$0xff]
    %v609 = vld [vmem:[%s8 + $0x70] sm:$0xff]
    %v610 = vld [vmem:[%s8 + $0x78] sm:$0xff]
    %v611 = vld [vmem:[%s9] sm:$0xff]
    %v612 = vld [vmem:[%s9 + $0x8] sm:$0xff]
    %v613 = vld [vmem:[%s9 + $0x10] sm:$0xff]
    %v614 = vld [vmem:[%s9 + $0x18] sm:$0xff]
    %v615 = vld [vmem:[#allocation6] sm:$0x1]
    %v617 = vperm.slane %v615, 0
    %vm619 = vcmask 261120
    %v621 = vsel %vm619, %v571, 0
    %v624 = vsel %vm619, %v572, 0
    %v627 = vsel %vm619, %v573, 0
    %v630 = vsel %vm619, %v574, 0
    %632 = vmatpush.msra.mxu0 0.0
    %633 = vmatpush.msra.mxu0 0.0
    %634 = vmatpush.msra.mxu0 0.0
    %635 = vmatpush.msra.mxu0 0.0
    %636 = vmatpush.msra.mxu0 0.0
    %637 = vmatpush.msra.mxu0 0.0
    %638 = vmatpush.msra.mxu0 0.0
    %639 = vmatpush.msra.mxu0 0.0
    %640 = vmatpush.msra.mxu0 0.0
    %641 = vmatpush.msra.mxu0 0.0
    %642 = vmatpush.msra.mxu0 0.0
    %643 = vmatpush.msra.mxu0 0.0
    %644 = vmatpush.msra.mxu0 %v614
    %645 = vmatpush.msra.mxu0 %v613
    %646 = vmatpush.msra.mxu0 %v612
    %647 = vmatpush.msra.mxu0 %v611
    %648 = vmatmul.f32.gmra.mxu0 %v621
    %v649 = vpop.f32.mrf.mxu0
    %v650 = vadd.f32 %v617, %v649
    %651 = vmatmul.f32.gmra.mxu0 %v624
    %v652 = vpop.f32.mrf.mxu0
    %v653 = vadd.f32 %v617, %v652
    %654 = vmatmul.f32.gmra.mxu0 %v627
    %v655 = vpop.f32.mrf.mxu0
    %v656 = vadd.f32 %v617, %v655
    %657 = vmatmul.f32.gmra.mxu0 %v630
    %v658 = vpop.f32.mrf.mxu0
    %v659 = vadd.f32 %v617, %v658
    %660 = vdwg.mxu0
    %677 = vrot.lane.b32.xlu0 %v575, 32
    %v678 = vpop.permute.xlu0 %677
    %679 = vrot.lane.b32.xlu0 %v576, 32
    %v680 = vpop.permute.xlu0 %679
    %681 = vrot.lane.b32.xlu0 %v577, 32
    %v682 = vpop.permute.xlu0 %681
    %683 = vrot.lane.b32.xlu0 %v578, 32
    %v684 = vpop.permute.xlu0 %683
    %685 = vrot.lane.b32.xlu0 %v579, 32
    %v686 = vpop.permute.xlu0 %685
    %687 = vrot.lane.b32.xlu0 %v580, 32
    %v688 = vpop.permute.xlu0 %687
    %689 = vrot.lane.b32.xlu0 %v581, 32
    %v690 = vpop.permute.xlu0 %689
    %691 = vrot.lane.b32.xlu0 %v582, 32
    %v692 = vpop.permute.xlu0 %691
    %693 = vrot.lane.b32.xlu0 %v583, 32
    %v694 = vpop.permute.xlu0 %693
    %695 = vrot.lane.b32.xlu0 %v584, 32
    %v696 = vpop.permute.xlu0 %695
    %697 = vrot.lane.b32.xlu0 %v585, 32
    %v698 = vpop.permute.xlu0 %697
    %699 = vrot.lane.b32.xlu0 %v586, 32
    %v700 = vpop.permute.xlu0 %699
    %701 = vrot.lane.b32.xlu0 %v587, 32
    %v702 = vpop.permute.xlu0 %701
    %703 = vrot.lane.b32.xlu0 %v588, 32
    %v704 = vpop.permute.xlu0 %703
    %705 = vrot.lane.b32.xlu0 %v589, 32
    %v706 = vpop.permute.xlu0 %705
    %707 = vrot.lane.b32.xlu0 %v590, 32
    %v708 = vpop.permute.xlu0 %707
    %v725 = vmul.f32 %v650, %v678
    %v726 = vmul.f32 %v653, %v680
    %v727 = vmul.f32 %v656, %v682
    %v728 = vmul.f32 %v659, %v684
    %v729 = vmul.f32 %v650, %v686
    %v730 = vmul.f32 %v653, %v688
    %v731 = vmul.f32 %v656, %v690
    %v732 = vmul.f32 %v659, %v692
    %v733 = vmul.f32 %v650, %v694
    %v734 = vmul.f32 %v653, %v696
    %v735 = vmul.f32 %v656, %v698
    %v736 = vmul.f32 %v659, %v700
    %v737 = vmul.f32 %v650, %v702
    %v738 = vmul.f32 %v653, %v704
    %v739 = vmul.f32 %v656, %v706
    %v740 = vmul.f32 %v659, %v708
    %741 = vrot.lane.b32.xlu0 %v575, 64
    %v742 = vpop.permute.xlu0 %741
    %743 = vrot.lane.b32.xlu0 %v576, 64
    %v744 = vpop.permute.xlu0 %743
    %745 = vrot.lane.b32.xlu0 %v577, 64
    %v746 = vpop.permute.xlu0 %745
    %747 = vrot.lane.b32.xlu0 %v578, 64
    %v748 = vpop.permute.xlu0 %747
    %749 = vrot.lane.b32.xlu0 %v579, 64
    %v750 = vpop.permute.xlu0 %749
    %751 = vrot.lane.b32.xlu0 %v580, 64
    %v752 = vpop.permute.xlu0 %751
    %753 = vrot.lane.b32.xlu0 %v581, 64
    %v754 = vpop.permute.xlu0 %753
    %755 = vrot.lane.b32.xlu0 %v582, 64
    %v756 = vpop.permute.xlu0 %755
    %757 = vrot.lane.b32.xlu0 %v583, 64
    %v758 = vpop.permute.xlu0 %757
    %759 = vrot.lane.b32.xlu0 %v584, 64
    %v760 = vpop.permute.xlu0 %759
    %761 = vrot.lane.b32.xlu0 %v585, 64
    %v762 = vpop.permute.xlu0 %761
    %763 = vrot.lane.b32.xlu0 %v586, 64
    %v764 = vpop.permute.xlu0 %763
    %765 = vrot.lane.b32.xlu0 %v587, 64
    %v766 = vpop.permute.xlu0 %765
    %767 = vrot.lane.b32.xlu0 %v588, 64
    %v768 = vpop.permute.xlu0 %767
    %769 = vrot.lane.b32.xlu0 %v589, 64
    %v770 = vpop.permute.xlu0 %769
    %771 = vrot.lane.b32.xlu0 %v590, 64
    %v772 = vpop.permute.xlu0 %771
    %v789 = vmul.f32 %v650, %v742
    %v790 = vmul.f32 %v653, %v744
    %v791 = vmul.f32 %v656, %v746
    %v792 = vmul.f32 %v659, %v748
    %v793 = vmul.f32 %v650, %v750
    %v794 = vmul.f32 %v653, %v752
    %v795 = vmul.f32 %v656, %v754
    %v796 = vmul.f32 %v659, %v756
    %v797 = vmul.f32 %v650, %v758
    %v798 = vmul.f32 %v653, %v760
    %v799 = vmul.f32 %v656, %v762
    %v800 = vmul.f32 %v659, %v764
    %v801 = vmul.f32 %v650, %v766
    %v802 = vmul.f32 %v653, %v768
    %v803 = vmul.f32 %v656, %v770
    %v804 = vmul.f32 %v659, %v772
    %821 = vrot.lane.b32.xlu0 %v725, 96
    %v822 = vpop.permute.xlu0 %821
    %823 = vrot.lane.b32.xlu0 %v726, 96
    %v824 = vpop.permute.xlu0 %823
    %825 = vrot.lane.b32.xlu0 %v727, 96
    %v826 = vpop.permute.xlu0 %825
    %827 = vrot.lane.b32.xlu0 %v728, 96
    %v828 = vpop.permute.xlu0 %827
    %829 = vrot.lane.b32.xlu0 %v729, 96
    %v830 = vpop.permute.xlu0 %829
    %831 = vrot.lane.b32.xlu0 %v730, 96
    %v832 = vpop.permute.xlu0 %831
    %833 = vrot.lane.b32.xlu0 %v731, 96
    %v834 = vpop.permute.xlu0 %833
    %835 = vrot.lane.b32.xlu0 %v732, 96
    %v836 = vpop.permute.xlu0 %835
    %837 = vrot.lane.b32.xlu0 %v733, 96
    %v838 = vpop.permute.xlu0 %837
    %839 = vrot.lane.b32.xlu0 %v734, 96
    %v840 = vpop.permute.xlu0 %839
    %841 = vrot.lane.b32.xlu0 %v735, 96
    %v842 = vpop.permute.xlu0 %841
    %843 = vrot.lane.b32.xlu0 %v736, 96
    %v844 = vpop.permute.xlu0 %843
    %845 = vrot.lane.b32.xlu0 %v737, 96
    %v846 = vpop.permute.xlu0 %845
    %847 = vrot.lane.b32.xlu0 %v738, 96
    %v848 = vpop.permute.xlu0 %847
    %849 = vrot.lane.b32.xlu0 %v739, 96
    %v850 = vpop.permute.xlu0 %849
    %851 = vrot.lane.b32.xlu0 %v740, 96
    %v852 = vpop.permute.xlu0 %851
    %v854 = vsel %vm619, %v650, 0
    %v857 = vsel %vm619, %v653, 0
    %v860 = vsel %vm619, %v656, 0
    %v863 = vsel %vm619, %v659, 0
    %v865 = vsel %vm619, %v822, 0
    %v867 = vsel %vm619, %v824, 0
    %v869 = vsel %vm619, %v826, 0
    %v871 = vsel %vm619, %v828, 0
    %v873 = vsel %vm619, %v830, 0
    %v875 = vsel %vm619, %v832, 0
    %v877 = vsel %vm619, %v834, 0
    %v879 = vsel %vm619, %v836, 0
    %v881 = vsel %vm619, %v838, 0
    %v883 = vsel %vm619, %v840, 0
    %v885 = vsel %vm619, %v842, 0
    %v887 = vsel %vm619, %v844, 0
    %v889 = vsel %vm619, %v846, 0
    %v891 = vsel %vm619, %v848, 0
    %v893 = vsel %vm619, %v850, 0
    %v895 = vsel %vm619, %v852, 0
    %897 = vmatpush.xpose.msra.mxu0 %v895
    %898 = vmatpush.xpose.msra.mxu0 %v893
    %899 = vmatpush.xpose.msra.mxu0 %v891
    %900 = vmatpush.xpose.msra.mxu0 %v889
    %901 = vmatpush.xpose.msra.mxu0 %v887
    %902 = vmatpush.xpose.msra.mxu0 %v885
    %903 = vmatpush.xpose.msra.mxu0 %v883
    %904 = vmatpush.xpose.msra.mxu0 %v881
    %905 = vmatpush.xpose.msra.mxu0 %v879
    %906 = vmatpush.xpose.msra.mxu0 %v877
    %907 = vmatpush.xpose.msra.mxu0 %v875
    %908 = vmatpush.xpose.msra.mxu0 %v873
    %909 = vmatpush.xpose.msra.mxu0 %v871
    %910 = vmatpush.xpose.msra.mxu0 %v869
    %911 = vmatpush.xpose.msra.mxu0 %v867
    %912 = vmatpush.xpose.msra.mxu0 %v865
    %913 = vmatmul.f32.gmra.mxu0 %v854
    %v914 = vpop.f32.mrf.mxu0
    %v915 = vadd.f32 %v591, %v914
    %916 = vmatmul.f32.gmra.mxu0 %v857
    %v917 = vpop.f32.mrf.mxu0
    %v918 = vadd.f32 %v592, %v917
    %919 = vmatmul.f32.gmra.mxu0 %v860
    %v920 = vpop.f32.mrf.mxu0
    %v921 = vadd.f32 %v593, %v920
    %922 = vmatmul.f32.gmra.mxu0 %v863
    %v923 = vpop.f32.mrf.mxu0
    %v924 = vadd.f32 %v594, %v923
    %925 = vdwg.mxu0
    %926 = vmax.xlane.f32.xlu0 %v915
    %v927 = vpop.xlane.xlu0 %926
    %928 = vmax.xlane.f32.xlu0 %v918
    %v929 = vpop.xlane.xlu0 %928
    %930 = vmax.xlane.f32.xlu0 %v921
    %v931 = vpop.xlane.xlu0 %930
    %932 = vmax.xlane.f32.xlu0 %v924
    %v933 = vpop.xlane.xlu0 %932
    %v934 = vsub.f32 %v915, %v927
    %v935 = vsub.f32 %v918, %v929
    %v936 = vsub.f32 %v921, %v931
    %v937 = vsub.f32 %v924, %v933
    %v938 = vmul.f32 %v934, 1.442695
    %v939 = vpow.pop %v938
    %v940 = vmul.f32 %v935, 1.442695
    %v941 = vpow.pop %v940
    %v942 = vmul.f32 %v936, 1.442695
    %v943 = vpow.pop %v942
    %v944 = vmul.f32 %v937, 1.442695
    %v945 = vpow.pop %v944
    %946 = vmatpush.msra.mxu0 %v610
    %947 = vmatpush.msra.mxu0 %v609
    %948 = vmatpush.msra.mxu0 %v608
    %949 = vmatpush.msra.mxu0 %v607
    %950 = vmatpush.msra.mxu0 %v606
    %951 = vmatpush.msra.mxu0 %v605
    %952 = vmatpush.msra.mxu0 %v604
    %953 = vmatpush.msra.mxu0 %v603
    %954 = vmatpush.msra.mxu0 %v602
    %955 = vmatpush.msra.mxu0 %v601
    %956 = vmatpush.msra.mxu0 %v600
    %957 = vmatpush.msra.mxu0 %v599
    %958 = vmatpush.msra.mxu0 %v598
    %959 = vmatpush.msra.mxu0 %v597
    %960 = vmatpush.msra.mxu0 %v596
    %961 = vmatpush.msra.mxu0 %v595
    %962 = vmatmul.f32.gmra.mxu0 %v939
    %v963 = vpop.f32.mrf.mxu0
    %v964 = vadd.f32 0.0, %v963
    %965 = vmatmul.f32.gmra.mxu0 %v941
    %v966 = vpop.f32.mrf.mxu0
    %v967 = vadd.f32 0.0, %v966
    %968 = vmatmul.f32.gmra.mxu0 %v943
    %v969 = vpop.f32.mrf.mxu0
    %v970 = vadd.f32 0.0, %v969
    %971 = vmatmul.f32.gmra.mxu0 %v945
    %v972 = vpop.f32.mrf.mxu0
    %v973 = vadd.f32 0.0, %v972
    %974 = vdwg.mxu0
    %v975 = vrcp.pop %v964
    %v976 = vmul.f32 %v964, %v975
    %v977 = vsub.f32 1.0, %v976
    %v978 = vmul.f32 %v975, %v977
    %v979 = vadd.f32 %v975, %v978
    %vm980 = vweird.f32 %v964
    %vm981 = vweird.f32 %v975
    %vm982 = vmor %vm980, %vm981
    %v983 = vsel %vm982, %v975, %v979
    %v984 = vand.u32 2147483647, %v964
    %vm985 = vcmp.eq.f32.partialorder %v984, 8.507059e+37
    %v986 = vand.u32 %v964, 2147483648
    %v987 = vor.u32 1.1754944e-38, %v986
    %v988 = vsel %vm985, %v987, %v983
    %v989 = vmul.f32 %v939, %v988
    %v990 = vrcp.pop %v967
    %v991 = vmul.f32 %v967, %v990
    %v992 = vsub.f32 1.0, %v991
    %v993 = vmul.f32 %v990, %v992
    %v994 = vadd.f32 %v990, %v993
    %vm995 = vweird.f32 %v967
    %vm996 = vweird.f32 %v990
    %vm997 = vmor %vm995, %vm996
    %v998 = vsel %vm997, %v990, %v994
    %v999 = vand.u32 2147483647, %v967
    %vm1000 = vcmp.eq.f32.partialorder %v999, 8.507059e+37
    %v1001 = vand.u32 %v967, 2147483648
    %v1002 = vor.u32 1.1754944e-38, %v1001
    %v1003 = vsel %vm1000, %v1002, %v998
    %v1004 = vmul.f32 %v941, %v1003
    %v1005 = vrcp.pop %v970
    %v1006 = vmul.f32 %v970, %v1005
    %v1007 = vsub.f32 1.0, %v1006
    %v1008 = vmul.f32 %v1005, %v1007
    %v1009 = vadd.f32 %v1005, %v1008
    %vm1010 = vweird.f32 %v970
    %vm1011 = vweird.f32 %v1005
    %vm1012 = vmor %vm1010, %vm1011
    %v1013 = vsel %vm1012, %v1005, %v1009
    %v1014 = vand.u32 2147483647, %v970
    %vm1015 = vcmp.eq.f32.partialorder %v1014, 8.507059e+37
    %v1016 = vand.u32 %v970, 2147483648
    %v1017 = vor.u32 1.1754944e-38, %v1016
    %v1018 = vsel %vm1015, %v1017, %v1013
    %v1019 = vmul.f32 %v943, %v1018
    %v1020 = vrcp.pop %v973
    %v1021 = vmul.f32 %v973, %v1020
    %v1022 = vsub.f32 1.0, %v1021
    %v1023 = vmul.f32 %v1020, %v1022
    %v1024 = vadd.f32 %v1020, %v1023
    %vm1025 = vweird.f32 %v973
    %vm1026 = vweird.f32 %v1020
    %vm1027 = vmor %vm1025, %vm1026
    %v1028 = vsel %vm1027, %v1020, %v1024
    %v1029 = vand.u32 2147483647, %v973
    %vm1030 = vcmp.eq.f32.partialorder %v1029, 8.507059e+37
    %v1031 = vand.u32 %v973, 2147483648
    %v1032 = vor.u32 1.1754944e-38, %v1031
    %v1033 = vsel %vm1030, %v1032, %v1028
    %v1034 = vmul.f32 %v945, %v1033
    %1051 = vrot.lane.b32.xlu0 %v789, 64
    %v1052 = vpop.permute.xlu0 %1051
    %1053 = vrot.lane.b32.xlu0 %v790, 64
    %v1054 = vpop.permute.xlu0 %1053
    %1055 = vrot.lane.b32.xlu0 %v791, 64
    %v1056 = vpop.permute.xlu0 %1055
    %1057 = vrot.lane.b32.xlu0 %v792, 64
    %v1058 = vpop.permute.xlu0 %1057
    %1059 = vrot.lane.b32.xlu0 %v793, 64
    %v1060 = vpop.permute.xlu0 %1059
    %1061 = vrot.lane.b32.xlu0 %v794, 64
    %v1062 = vpop.permute.xlu0 %1061
    %1063 = vrot.lane.b32.xlu0 %v795, 64
    %v1064 = vpop.permute.xlu0 %1063
    %1065 = vrot.lane.b32.xlu0 %v796, 64
    %v1066 = vpop.permute.xlu0 %1065
    %1067 = vrot.lane.b32.xlu0 %v797, 64
    %v1068 = vpop.permute.xlu0 %1067
    %1069 = vrot.lane.b32.xlu0 %v798, 64
    %v1070 = vpop.permute.xlu0 %1069
    %1071 = vrot.lane.b32.xlu0 %v799, 64
    %v1072 = vpop.permute.xlu0 %1071
    %1073 = vrot.lane.b32.xlu0 %v800, 64
    %v1074 = vpop.permute.xlu0 %1073
    %1075 = vrot.lane.b32.xlu0 %v801, 64
    %v1076 = vpop.permute.xlu0 %1075
    %1077 = vrot.lane.b32.xlu0 %v802, 64
    %v1078 = vpop.permute.xlu0 %1077
    %1079 = vrot.lane.b32.xlu0 %v803, 64
    %v1080 = vpop.permute.xlu0 %1079
    %1081 = vrot.lane.b32.xlu0 %v804, 64
    %v1082 = vpop.permute.xlu0 %1081
    %1099 = vmatpush.msra.mxu0 %v1082
    %1100 = vmatpush.msra.mxu0 %v1080
    %1101 = vmatpush.msra.mxu0 %v1078
    %1102 = vmatpush.msra.mxu0 %v1076
    %1103 = vmatpush.msra.mxu0 %v1074
    %1104 = vmatpush.msra.mxu0 %v1072
    %1105 = vmatpush.msra.mxu0 %v1070
    %1106 = vmatpush.msra.mxu0 %v1068
    %1107 = vmatpush.msra.mxu0 %v1066
    %1108 = vmatpush.msra.mxu0 %v1064
    %1109 = vmatpush.msra.mxu0 %v1062
    %1110 = vmatpush.msra.mxu0 %v1060
    %1111 = vmatpush.msra.mxu0 %v1058
    %1112 = vmatpush.msra.mxu0 %v1056
    %1113 = vmatpush.msra.mxu0 %v1054
    %1114 = vmatpush.msra.mxu0 %v1052
    %1115 = vmatmul.f32.gmra.mxu0 %v989
    %v1116 = vpop.f32.mrf.mxu0
    %v1117 = vadd.f32 0.0, %v1116
    %1118 = vmatmul.f32.gmra.mxu0 %v1004
    %v1119 = vpop.f32.mrf.mxu0
    %v1120 = vadd.f32 0.0, %v1119
    %1121 = vmatmul.f32.gmra.mxu0 %v1019
    %v1122 = vpop.f32.mrf.mxu0
    %v1123 = vadd.f32 0.0, %v1122
    %1124 = vmatmul.f32.gmra.mxu0 %v1034
    %v1125 = vpop.f32.mrf.mxu0
    %v1126 = vadd.f32 0.0, %v1125
    %1127 = vdwg.mxu0
    %v1128 = vld [vmem:[%s11] sm:$0xff]
    %v1129 = vld [vmem:[%s11 + $0x8] sm:$0xff]
    %v1130 = vld [vmem:[%s11 + $0x10] sm:$0xff]
    %v1131 = vld [vmem:[%s11 + $0x18] sm:$0xff]
    %v1132 = vld [vmem:[#allocation7] sm:$0x1]
    %v1134 = vperm.slane %v1132, 0
    %v1137 = vsel %vm619, %v1117, 0
    %v1140 = vsel %vm619, %v1120, 0
    %v1143 = vsel %vm619, %v1123, 0
    %v1146 = vsel %vm619, %v1126, 0
    %1148 = vmatpush.msra.mxu0 0.0
    %1149 = vmatpush.msra.mxu0 0.0
    %1150 = vmatpush.msra.mxu0 0.0
    %1151 = vmatpush.msra.mxu0 0.0
    %1152 = vmatpush.msra.mxu0 0.0
    %1153 = vmatpush.msra.mxu0 0.0
    %1154 = vmatpush.msra.mxu0 0.0
    %1155 = vmatpush.msra.mxu0 0.0
    %1156 = vmatpush.msra.mxu0 0.0
    %1157 = vmatpush.msra.mxu0 0.0
    %1158 = vmatpush.msra.mxu0 0.0
    %1159 = vmatpush.msra.mxu0 0.0
    %1160 = vmatpush.msra.mxu0 %v1131
    %1161 = vmatpush.msra.mxu0 %v1130
    %1162 = vmatpush.msra.mxu0 %v1129
    %1163 = vmatpush.msra.mxu0 %v1128
    %1164 = vmatmul.f32.gmra.mxu0 %v1137
    %v1165 = vpop.f32.mrf.mxu0
    %v1166 = vadd.f32 %v1134, %v1165
    %1167 = vmatmul.f32.gmra.mxu0 %v1140
    %v1168 = vpop.f32.mrf.mxu0
    %v1169 = vadd.f32 %v1134, %v1168
    %1170 = vmatmul.f32.gmra.mxu0 %v1143
    %v1171 = vpop.f32.mrf.mxu0
    %v1172 = vadd.f32 %v1134, %v1171
    %1173 = vmatmul.f32.gmra.mxu0 %v1146
    %v1174 = vpop.f32.mrf.mxu0
    %v1175 = vadd.f32 %v1134, %v1174
    %1176 = vdwg.mxu0
    %v1177 = vadd.f32 %v571, %v1166
    %v1178 = vadd.f32 %v572, %v1169
    %v1179 = vadd.f32 %v573, %v1172
    %v1180 = vadd.f32 %v574, %v1175
    %v1181 = vld [vmem:[#allocation12] sm:$0x1]
    %v1182 = vld [vmem:[#allocation13] sm:$0x1]
    %v1183 = vsel %vm619, %v1177, 0.0
    %1184 = vadd.xlane.f32.xlu0 %v1183
    %v1185 = vpop.xlane.xlu0 %1184
    %v1186 = vsel %vm619, %v1178, 0.0
    %1187 = vadd.xlane.f32.xlu0 %v1186
    %v1188 = vpop.xlane.xlu0 %1187
    %v1189 = vsel %vm619, %v1179, 0.0
    %1190 = vadd.xlane.f32.xlu0 %v1189
    %v1191 = vpop.xlane.xlu0 %1190
    %v1192 = vsel %vm619, %v1180, 0.0
    %1193 = vadd.xlane.f32.xlu0 %v1192
    %v1194 = vpop.xlane.xlu0 %1193
    %v1195 = vrcp.pop 32.0
    %v1196 = vmul.f32 32.0, %v1195
    %v1197 = vsub.f32 1.0, %v1196
    %v1198 = vmul.f32 %v1195, %v1197
    %v1199 = vadd.f32 %v1195, %v1198
    %vm1200 = vweird.f32 %v1195
    %v1201 = vsel %vm1200, %v1195, %v1199
    %v1202 = vmul.f32 %v1185, %v1201
    %v1203 = vmul.f32 %v1188, %v1201
    %v1204 = vmul.f32 %v1191, %v1201
    %v1205 = vmul.f32 %v1194, %v1201
    %v1206 = vmul.f32 %v1177, %v1177
    %v1207 = vmul.f32 %v1178, %v1178
    %v1208 = vmul.f32 %v1179, %v1179
    %v1209 = vmul.f32 %v1180, %v1180
    %v1210 = vsel %vm619, %v1206, 0.0
    %1211 = vadd.xlane.f32.xlu0 %v1210
    %v1212 = vpop.xlane.xlu0 %1211
    %v1213 = vsel %vm619, %v1207, 0.0
    %1214 = vadd.xlane.f32.xlu0 %v1213
    %v1215 = vpop.xlane.xlu0 %1214
    %v1216 = vsel %vm619, %v1208, 0.0
    %1217 = vadd.xlane.f32.xlu0 %v1216
    %v1218 = vpop.xlane.xlu0 %1217
    %v1219 = vsel %vm619, %v1209, 0.0
    %1220 = vadd.xlane.f32.xlu0 %v1219
    %v1221 = vpop.xlane.xlu0 %1220
    %v1222 = vmul.f32 %v1212, %v1201
    %v1223 = vmul.f32 %v1215, %v1201
    %v1224 = vmul.f32 %v1218, %v1201
    %v1225 = vmul.f32 %v1221, %v1201
    %v1226 = vmul.f32 %v1202, %v1202
    %v1227 = vmul.f32 %v1203, %v1203
    %v1228 = vmul.f32 %v1204, %v1204
    %v1229 = vmul.f32 %v1205, %v1205
    %v1230 = vsub.f32 %v1222, %v1226
    %v1231 = vsub.f32 %v1223, %v1227
    %v1232 = vsub.f32 %v1224, %v1228
    %v1233 = vsub.f32 %v1225, %v1229
    %v1234 = vadd.f32 %v1230, 1e-05
    %v1235 = vadd.f32 %v1231, 1e-05
    %v1236 = vadd.f32 %v1232, 1e-05
    %v1237 = vadd.f32 %v1233, 1e-05
    %v1238 = vrsqrt.pop %v1234
    %v1239 = vmul.f32 %v1238, %v1234
    %v1240 = vmul.f32 %v1239, %v1238
    %v1241 = vmul.f32 0.5, %v1240
    %v1242 = vsub.f32 1.5, %v1241
    %v1243 = vmul.f32 %v1238, %v1242
    %vm1244 = vweird.f32 %v1234
    %vm1245 = vweird.f32 %v1238
    %vm1246 = vmor %vm1244, %vm1245
    %v1247 = vsel %vm1246, %v1238, %v1243
    %v1248 = vrsqrt.pop %v1235
    %v1249 = vmul.f32 %v1248, %v1235
    %v1250 = vmul.f32 %v1249, %v1248
    %v1251 = vmul.f32 0.5, %v1250
    %v1252 = vsub.f32 1.5, %v1251
    %v1253 = vmul.f32 %v1248, %v1252
    %vm1254 = vweird.f32 %v1235
    %vm1255 = vweird.f32 %v1248
    %vm1256 = vmor %vm1254, %vm1255
    %v1257 = vsel %vm1256, %v1248, %v1253
    %v1258 = vrsqrt.pop %v1236
    %v1259 = vmul.f32 %v1258, %v1236
    %v1260 = vmul.f32 %v1259, %v1258
    %v1261 = vmul.f32 0.5, %v1260
    %v1262 = vsub.f32 1.5, %v1261
    %v1263 = vmul.f32 %v1258, %v1262
    %vm1264 = vweird.f32 %v1236
    %vm1265 = vweird.f32 %v1258
    %vm1266 = vmor %vm1264, %vm1265
    %v1267 = vsel %vm1266, %v1258, %v1263
    %v1268 = vrsqrt.pop %v1237
    %v1269 = vmul.f32 %v1268, %v1237
    %v1270 = vmul.f32 %v1269, %v1268
    %v1271 = vmul.f32 0.5, %v1270
    %v1272 = vsub.f32 1.5, %v1271
    %v1273 = vmul.f32 %v1268, %v1272
    %vm1274 = vweird.f32 %v1237
    %vm1275 = vweird.f32 %v1268
    %vm1276 = vmor %vm1274, %vm1275
    %v1277 = vsel %vm1276, %v1268, %v1273
    %v1278 = vsub.f32 %v1177, %v1202
    %v1279 = vsub.f32 %v1178, %v1203
    %v1280 = vsub.f32 %v1179, %v1204
    %v1281 = vsub.f32 %v1180, %v1205
    %v1283 = vperm.slane %v1181, 0
    %v1285 = vmul.f32 %v1247, %v1283
    %v1286 = vmul.f32 %v1257, %v1283
    %v1287 = vmul.f32 %v1267, %v1283
    %v1288 = vmul.f32 %v1277, %v1283
    %v1289 = vmul.f32 %v1278, %v1285
    %v1290 = vmul.f32 %v1279, %v1286
    %v1291 = vmul.f32 %v1280, %v1287
    %v1292 = vmul.f32 %v1281, %v1288
    %v1294 = vperm.slane %v1182, 0
    %v1296 = vadd.f32 %v1289, %v1294
    %v1297 = vadd.f32 %v1290, %v1294
    %v1298 = vadd.f32 %v1291, %v1294
    %v1299 = vadd.f32 %v1292, %v1294
    %v1300 = vld [vmem:[%s13] sm:$0xff]
    %v1301 = vld [vmem:[%s13 + $0x8] sm:$0xff]
    %v1302 = vld [vmem:[%s13 + $0x10] sm:$0xff]
    %v1303 = vld [vmem:[%s13 + $0x18] sm:$0xff]
    %v1304 = vld [vmem:[#allocation9] sm:$0x1]
    %v1306 = vperm.slane %v1304, 0
    %v1309 = vsel %vm619, %v1296, 0
    %v1312 = vsel %vm619, %v1297, 0
    %v1315 = vsel %vm619, %v1298, 0
    %v1318 = vsel %vm619, %v1299, 0
    %1320 = vmatpush.msra.mxu0 0.0
    %1321 = vmatpush.msra.mxu0 0.0
    %1322 = vmatpush.msra.mxu0 0.0
    %1323 = vmatpush.msra.mxu0 0.0
    %1324 = vmatpush.msra.mxu0 0.0
    %1325 = vmatpush.msra.mxu0 0.0
    %1326 = vmatpush.msra.mxu0 0.0
    %1327 = vmatpush.msra.mxu0 0.0
    %1328 = vmatpush.msra.mxu0 0.0
    %1329 = vmatpush.msra.mxu0 0.0
    %1330 = vmatpush.msra.mxu0 0.0
    %1331 = vmatpush.msra.mxu0 0.0
    %1332 = vmatpush.msra.mxu0 %v1303
    %1333 = vmatpush.msra.mxu0 %v1302
    %1334 = vmatpush.msra.mxu0 %v1301
    %1335 = vmatpush.msra.mxu0 %v1300
    %1336 = vmatmul.f32.gmra.mxu0 %v1309
    %v1337 = vpop.f32.mrf.mxu0
    %v1338 = vadd.f32 %v1306, %v1337
    %1339 = vmatmul.f32.gmra.mxu0 %v1312
    %v1340 = vpop.f32.mrf.mxu0
    %v1341 = vadd.f32 %v1306, %v1340
    %1342 = vmatmul.f32.gmra.mxu0 %v1315
    %v1343 = vpop.f32.mrf.mxu0
    %v1344 = vadd.f32 %v1306, %v1343
    %1345 = vmatmul.f32.gmra.mxu0 %v1318
    %v1346 = vpop.f32.mrf.mxu0
    %v1347 = vadd.f32 %v1306, %v1346
    %1348 = vdwg.mxu0
    %v1349 = vmul.f32 %v1338, %v1338
    %v1350 = vmul.f32 %v1341, %v1341
    %v1351 = vmul.f32 %v1344, %v1344
    %v1352 = vmul.f32 %v1347, %v1347
    %v1353 = vmul.f32 %v1338, %v1349
    %v1354 = vmul.f32 %v1341, %v1350
    %v1355 = vmul.f32 %v1344, %v1351
    %v1356 = vmul.f32 %v1347, %v1352
    %v1357 = vmul.f32 %v1353, 0.044715
    %v1358 = vmul.f32 %v1354, 0.044715
    %v1359 = vmul.f32 %v1355, 0.044715
    %v1360 = vmul.f32 %v1356, 0.044715
    %v1361 = vadd.f32 %v1338, %v1357
    %v1362 = vadd.f32 %v1341, %v1358
    %v1363 = vadd.f32 %v1344, %v1359
    %v1364 = vadd.f32 %v1347, %v1360
    %v1365 = vmul.f32 %v1361, 0.7978846
    %v1366 = vmul.f32 %v1362, 0.7978846
    %v1367 = vmul.f32 %v1363, 0.7978846
    %v1368 = vmul.f32 %v1364, 0.7978846
    %v1369 = vtanh.pop %v1365
    %v1370 = vtanh.pop %v1366
    %v1371 = vtanh.pop %v1367
    %v1372 = vtanh.pop %v1368
    %v1373 = vadd.f32 %v1369, 1.0
    %v1374 = vadd.f32 %v1370, 1.0
    %v1375 = vadd.f32 %v1371, 1.0
    %v1376 = vadd.f32 %v1372, 1.0
    %v1377 = vmul.f32 %v1373, 0.5
    %v1378 = vmul.f32 %v1374, 0.5
    %v1379 = vmul.f32 %v1375, 0.5
    %v1380 = vmul.f32 %v1376, 0.5
    %v1381 = vmul.f32 %v1338, %v1377
    %v1382 = vmul.f32 %v1341, %v1378
    %v1383 = vmul.f32 %v1344, %v1379
    %v1384 = vmul.f32 %v1347, %v1380
    %v1385 = vld [vmem:[%s15] sm:$0xff]
    %v1386 = vld [vmem:[%s15 + $0x8] sm:$0xff]
    %v1387 = vld [vmem:[%s15 + $0x10] sm:$0xff]
    %v1388 = vld [vmem:[%s15 + $0x18] sm:$0xff]
    %v1389 = vld [vmem:[%s15 + $0x20] sm:$0xff]
    %v1390 = vld [vmem:[%s15 + $0x28] sm:$0xff]
    %v1391 = vld [vmem:[%s15 + $0x30] sm:$0xff]
    %v1392 = vld [vmem:[%s15 + $0x38] sm:$0xff]
    %v1393 = vld [vmem:[#allocation10] sm:$0x1]
    %v1395 = vperm.slane %v1393, 0
    %vm1397 = vcmask 523264
    %v1399 = vsel %vm1397, %v1381, 0
    %v1402 = vsel %vm1397, %v1382, 0
    %v1405 = vsel %vm1397, %v1383, 0
    %v1408 = vsel %vm1397, %v1384, 0
    %1410 = vmatpush.msra.mxu0 0.0
    %1411 = vmatpush.msra.mxu0 0.0
    %1412 = vmatpush.msra.mxu0 0.0
    %1413 = vmatpush.msra.mxu0 0.0
    %1414 = vmatpush.msra.mxu0 0.0
    %1415 = vmatpush.msra.mxu0 0.0
    %1416 = vmatpush.msra.mxu0 0.0
    %1417 = vmatpush.msra.mxu0 0.0
    %1418 = vmatpush.msra.mxu0 %v1392
    %1419 = vmatpush.msra.mxu0 %v1391
    %1420 = vmatpush.msra.mxu0 %v1390
    %1421 = vmatpush.msra.mxu0 %v1389
    %1422 = vmatpush.msra.mxu0 %v1388
    %1423 = vmatpush.msra.mxu0 %v1387
    %1424 = vmatpush.msra.mxu0 %v1386
    %1425 = vmatpush.msra.mxu0 %v1385
    %1426 = vmatmul.f32.gmra.mxu0 %v1399
    %v1427 = vpop.f32.mrf.mxu0
    %v1428 = vadd.f32 %v1395, %v1427
    %1429 = vmatmul.f32.gmra.mxu0 %v1402
    %v1430 = vpop.f32.mrf.mxu0
    %v1431 = vadd.f32 %v1395, %v1430
    %1432 = vmatmul.f32.gmra.mxu0 %v1405
    %v1433 = vpop.f32.mrf.mxu0
    %v1434 = vadd.f32 %v1395, %v1433
    %1435 = vmatmul.f32.gmra.mxu0 %v1408
    %v1436 = vpop.f32.mrf.mxu0
    %v1437 = vadd.f32 %v1395, %v1436
    %1438 = vdwg.mxu0
    %v1439 = vadd.f32 %v1296, %v1428
    %v1440 = vadd.f32 %v1297, %v1431
    %v1441 = vadd.f32 %v1298, %v1434
    %v1442 = vadd.f32 %v1299, %v1437
    %v1443 = vld [vmem:[#allocation15] sm:$0x1]
    %v1444 = vld [vmem:[#allocation16] sm:$0x1]
    %v1445 = vsel %vm619, %v1439, 0.0
    %1446 = vadd.xlane.f32.xlu0 %v1445
    %v1447 = vpop.xlane.xlu0 %1446
    %v1448 = vsel %vm619, %v1440, 0.0
    %1449 = vadd.xlane.f32.xlu0 %v1448
    %v1450 = vpop.xlane.xlu0 %1449
    %v1451 = vsel %vm619, %v1441, 0.0
    %1452 = vadd.xlane.f32.xlu0 %v1451
    %v1453 = vpop.xlane.xlu0 %1452
    %v1454 = vsel %vm619, %v1442, 0.0
    %1455 = vadd.xlane.f32.xlu0 %v1454
    %v1456 = vpop.xlane.xlu0 %1455
    %v1457 = vmul.f32 %v1447, %v1201
    %v1458 = vmul.f32 %v1450, %v1201
    %v1459 = vmul.f32 %v1453, %v1201
    %v1460 = vmul.f32 %v1456, %v1201
    %v1461 = vmul.f32 %v1439, %v1439
    %v1462 = vmul.f32 %v1440, %v1440
    %v1463 = vmul.f32 %v1441, %v1441
    %v1464 = vmul.f32 %v1442, %v1442
    %v1465 = vsel %vm619, %v1461, 0.0
    %1466 = vadd.xlane.f32.xlu0 %v1465
    %v1467 = vpop.xlane.xlu0 %1466
    %v1468 = vsel %vm619, %v1462, 0.0
    %1469 = vadd.xlane.f32.xlu0 %v1468
    %v1470 = vpop.xlane.xlu0 %1469
    %v1471 = vsel %vm619, %v1463, 0.0
    %1472 = vadd.xlane.f32.xlu0 %v1471
    %v1473 = vpop.xlane.xlu0 %1472
    %v1474 = vsel %vm619, %v1464, 0.0
    %1475 = vadd.xlane.f32.xlu0 %v1474
    %v1476 = vpop.xlane.xlu0 %1475
    %v1477 = vmul.f32 %v1467, %v1201
    %v1478 = vmul.f32 %v1470, %v1201
    %v1479 = vmul.f32 %v1473, %v1201
    %v1480 = vmul.f32 %v1476, %v1201
    %v1481 = vmul.f32 %v1457, %v1457
    %v1482 = vmul.f32 %v1458, %v1458
    %v1483 = vmul.f32 %v1459, %v1459
    %v1484 = vmul.f32 %v1460, %v1460
    %v1485 = vsub.f32 %v1477, %v1481
    %v1486 = vsub.f32 %v1478, %v1482
    %v1487 = vsub.f32 %v1479, %v1483
    %v1488 = vsub.f32 %v1480, %v1484
    %v1489 = vadd.f32 %v1485, 1e-05
    %v1490 = vadd.f32 %v1486, 1e-05
    %v1491 = vadd.f32 %v1487, 1e-05
    %v1492 = vadd.f32 %v1488, 1e-05
    %v1493 = vrsqrt.pop %v1489
    %v1494 = vmul.f32 %v1493, %v1489
    %v1495 = vmul.f32 %v1494, %v1493
    %v1496 = vmul.f32 0.5, %v1495
    %v1497 = vsub.f32 1.5, %v1496
    %v1498 = vmul.f32 %v1493, %v1497
    %vm1499 = vweird.f32 %v1489
    %vm1500 = vweird.f32 %v1493
    %vm1501 = vmor %vm1499, %vm1500
    %v1502 = vsel %vm1501, %v1493, %v1498
    %v1503 = vrsqrt.pop %v1490
    %v1504 = vmul.f32 %v1503, %v1490
    %v1505 = vmul.f32 %v1504, %v1503
    %v1506 = vmul.f32 0.5, %v1505
    %v1507 = vsub.f32 1.5, %v1506
    %v1508 = vmul.f32 %v1503, %v1507
    %vm1509 = vweird.f32 %v1490
    %vm1510 = vweird.f32 %v1503
    %vm1511 = vmor %vm1509, %vm1510
    %v1512 = vsel %vm1511, %v1503, %v1508
    %v1513 = vrsqrt.pop %v1491
    %v1514 = vmul.f32 %v1513, %v1491
    %v1515 = vmul.f32 %v1514, %v1513
    %v1516 = vmul.f32 0.5, %v1515
    %v1517 = vsub.f32 1.5, %v1516
    %v1518 = vmul.f32 %v1513, %v1517
    %vm1519 = vweird.f32 %v1491
    %vm1520 = vweird.f32 %v1513
    %vm1521 = vmor %vm1519, %vm1520
    %v1522 = vsel %vm1521, %v1513, %v1518
    %v1523 = vrsqrt.pop %v1492
    %v1524 = vmul.f32 %v1523, %v1492
    %v1525 = vmul.f32 %v1524, %v1523
    %v1526 = vmul.f32 0.5, %v1525
    %v1527 = vsub.f32 1.5, %v1526
    %v1528 = vmul.f32 %v1523, %v1527
    %vm1529 = vweird.f32 %v1492
    %vm1530 = vweird.f32 %v1523
    %vm1531 = vmor %vm1529, %vm1530
    %v1532 = vsel %vm1531, %v1523, %v1528
    %v1533 = vsub.f32 %v1439, %v1457
    %v1534 = vsub.f32 %v1440, %v1458
    %v1535 = vsub.f32 %v1441, %v1459
    %v1536 = vsub.f32 %v1442, %v1460
    %v1538 = vperm.slane %v1443, 0
    %v1540 = vmul.f32 %v1502, %v1538
    %v1541 = vmul.f32 %v1512, %v1538
    %v1542 = vmul.f32 %v1522, %v1538
    %v1543 = vmul.f32 %v1532, %v1538
    %v1544 = vmul.f32 %v1533, %v1540
    %v1545 = vmul.f32 %v1534, %v1541
    %v1546 = vmul.f32 %v1535, %v1542
    %v1547 = vmul.f32 %v1536, %v1543
    %v1549 = vperm.slane %v1444, 0
    %v1551 = vadd.f32 %v1544, %v1549
    %v1552 = vadd.f32 %v1545, %v1549
    %v1553 = vadd.f32 %v1546, %v1549
    %v1554 = vadd.f32 %v1547, %v1549
    %s1555 = scalar_lea.vmem %s9, 32
    %v1556 = vld [vmem:[%s1555] sm:$0xff]
    %v1557 = vld [vmem:[%s1555 + $0x8] sm:$0xff]
    %v1558 = vld [vmem:[%s1555 + $0x10] sm:$0xff]
    %v1559 = vld [vmem:[%s1555 + $0x18] sm:$0xff]
    %s1560 = scalar_lea.vmem [#allocation6], 1
    %v1561 = vld [vmem:[%s1560] sm:$0x1]
    %v1563 = vperm.slane %v1561, 0
    %v1566 = vsel %vm619, %v1551, 0
    %v1569 = vsel %vm619, %v1552, 0
    %v1572 = vsel %vm619, %v1553, 0
    %v1575 = vsel %vm619, %v1554, 0
    %1577 = vmatpush.msra.mxu0 0.0
    %1578 = vmatpush.msra.mxu0 0.0
    %1579 = vmatpush.msra.mxu0 0.0
    %1580 = vmatpush.msra.mxu0 0.0
    %1581 = vmatpush.msra.mxu0 0.0
    %1582 = vmatpush.msra.mxu0 0.0
    %1583 = vmatpush.msra.mxu0 0.0
    %1584 = vmatpush.msra.mxu0 0.0
    %1585 = vmatpush.msra.mxu0 0.0
    %1586 = vmatpush.msra.mxu0 0.0
    %1587 = vmatpush.msra.mxu0 0.0
    %1588 = vmatpush.msra.mxu0 0.0
    %1589 = vmatpush.msra.mxu0 %v1559
    %1590 = vmatpush.msra.mxu0 %v1558
    %1591 = vmatpush.msra.mxu0 %v1557
    %1592 = vmatpush.msra.mxu0 %v1556
    %1593 = vmatmul.f32.gmra.mxu0 %v1566
    %v1594 = vpop.f32.mrf.mxu0
    %v1595 = vadd.f32 %v1563, %v1594
    %1596 = vmatmul.f32.gmra.mxu0 %v1569
    %v1597 = vpop.f32.mrf.mxu0
    %v1598 = vadd.f32 %v1563, %v1597
    %1599 = vmatmul.f32.gmra.mxu0 %v1572
    %v1600 = vpop.f32.mrf.mxu0
    %v1601 = vadd.f32 %v1563, %v1600
    %1602 = vmatmul.f32.gmra.mxu0 %v1575
    %v1603 = vpop.f32.mrf.mxu0
    %v1604 = vadd.f32 %v1563, %v1603
    %1605 = vdwg.mxu0
    %v1606 = vmul.f32 %v1595, %v678
    %v1607 = vmul.f32 %v1598, %v680
    %v1608 = vmul.f32 %v1601, %v682
    %v1609 = vmul.f32 %v1604, %v684
    %v1610 = vmul.f32 %v1595, %v686
    %v1611 = vmul.f32 %v1598, %v688
    %v1612 = vmul.f32 %v1601, %v690
    %v1613 = vmul.f32 %v1604, %v692
    %v1614 = vmul.f32 %v1595, %v694
    %v1615 = vmul.f32 %v1598, %v696
    %v1616 = vmul.f32 %v1601, %v698
    %v1617 = vmul.f32 %v1604, %v700
    %v1618 = vmul.f32 %v1595, %v702
    %v1619 = vmul.f32 %v1598, %v704
    %v1620 = vmul.f32 %v1601, %v706
    %v1621 = vmul.f32 %v1604, %v708
    %v1622 = vmul.f32 %v1595, %v742
    %v1623 = vmul.f32 %v1598, %v744
    %v1624 = vmul.f32 %v1601, %v746
    %v1625 = vmul.f32 %v1604, %v748
    %v1626 = vmul.f32 %v1595, %v750
    %v1627 = vmul.f32 %v1598, %v752
    %v1628 = vmul.f32 %v1601, %v754
    %v1629 = vmul.f32 %v1604, %v756
    %v1630 = vmul.f32 %v1595, %v758
    %v1631 = vmul.f32 %v1598, %v760
    %v1632 = vmul.f32 %v1601, %v762
    %v1633 = vmul.f32 %v1604, %v764
    %v1634 = vmul.f32 %v1595, %v766
    %v1635 = vmul.f32 %v1598, %v768
    %v1636 = vmul.f32 %v1601, %v770
    %v1637 = vmul.f32 %v1604, %v772
    %1654 = vrot.lane.b32.xlu0 %v1606, 96
    %v1655 = vpop.permute.xlu0 %1654
    %1656 = vrot.lane.b32.xlu0 %v1607, 96
    %v1657 = vpop.permute.xlu0 %1656
    %1658 = vrot.lane.b32.xlu0 %v1608, 96
    %v1659 = vpop.permute.xlu0 %1658
    %1660 = vrot.lane.b32.xlu0 %v1609, 96
    %v1661 = vpop.permute.xlu0 %1660
    %1662 = vrot.lane.b32.xlu0 %v1610, 96
    %v1663 = vpop.permute.xlu0 %1662
    %1664 = vrot.lane.b32.xlu0 %v1611, 96
    %v1665 = vpop.permute.xlu0 %1664
    %1666 = vrot.lane.b32.xlu0 %v1612, 96
    %v1667 = vpop.permute.xlu0 %1666
    %1668 = vrot.lane.b32.xlu0 %v1613, 96
    %v1669 = vpop.permute.xlu0 %1668
    %1670 = vrot.lane.b32.xlu0 %v1614, 96
    %v1671 = vpop.permute.xlu0 %1670
    %1672 = vrot.lane.b32.xlu0 %v1615, 96
    %v1673 = vpop.permute.xlu0 %1672
    %1674 = vrot.lane.b32.xlu0 %v1616, 96
    %v1675 = vpop.permute.xlu0 %1674
    %1676 = vrot.lane.b32.xlu0 %v1617, 96
    %v1677 = vpop.permute.xlu0 %1676
    %1678 = vrot.lane.b32.xlu0 %v1618, 96
    %v1679 = vpop.permute.xlu0 %1678
    %1680 = vrot.lane.b32.xlu0 %v1619, 96
    %v1681 = vpop.permute.xlu0 %1680
    %1682 = vrot.lane.b32.xlu0 %v1620, 96
    %v1683 = vpop.permute.xlu0 %1682
    %1684 = vrot.lane.b32.xlu0 %v1621, 96
    %v1685 = vpop.permute.xlu0 %1684
    %v1687 = vsel %vm619, %v1595, 0
    %v1690 = vsel %vm619, %v1598, 0
    %v1693 = vsel %vm619, %v1601, 0
    %v1696 = vsel %vm619, %v1604, 0
    %v1698 = vsel %vm619, %v1655, 0
    %v1700 = vsel %vm619, %v1657, 0
    %v1702 = vsel %vm619, %v1659, 0
    %v1704 = vsel %vm619, %v1661, 0
    %v1706 = vsel %vm619, %v1663, 0
    %v1708 = vsel %vm619, %v1665, 0
    %v1710 = vsel %vm619, %v1667, 0
    %v1712 = vsel %vm619, %v1669, 0
    %v1714 = vsel %vm619, %v1671, 0
    %v1716 = vsel %vm619, %v1673, 0
    %v1718 = vsel %vm619, %v1675, 0
    %v1720 = vsel %vm619, %v1677, 0
    %v1722 = vsel %vm619, %v1679, 0
    %v1724 = vsel %vm619, %v1681, 0
    %v1726 = vsel %vm619, %v1683, 0
    %v1728 = vsel %vm619, %v1685, 0
    %1730 = vmatpush.xpose.msra.mxu0 %v1728
    %1731 = vmatpush.xpose.msra.mxu0 %v1726
    %1732 = vmatpush.xpose.msra.mxu0 %v1724
    %1733 = vmatpush.xpose.msra.mxu0 %v1722
    %1734 = vmatpush.xpose.msra.mxu0 %v1720
    %1735 = vmatpush.xpose.msra.mxu0 %v1718
    %1736 = vmatpush.xpose.msra.mxu0 %v1716
    %1737 = vmatpush.xpose.msra.mxu0 %v1714
    %1738 = vmatpush.xpose.msra.mxu0 %v1712
    %1739 = vmatpush.xpose.msra.mxu0 %v1710
    %1740 = vmatpush.xpose.msra.mxu0 %v1708
    %1741 = vmatpush.xpose.msra.mxu0 %v1706
    %1742 = vmatpush.xpose.msra.mxu0 %v1704
    %1743 = vmatpush.xpose.msra.mxu0 %v1702
    %1744 = vmatpush.xpose.msra.mxu0 %v1700
    %1745 = vmatpush.xpose.msra.mxu0 %v1698
    %1746 = vmatmul.f32.gmra.mxu0 %v1687
    %v1747 = vpop.f32.mrf.mxu0
    %v1748 = vadd.f32 %v591, %v1747
    %1749 = vmatmul.f32.gmra.mxu0 %v1690
    %v1750 = vpop.f32.mrf.mxu0
    %v1751 = vadd.f32 %v592, %v1750
    %1752 = vmatmul.f32.gmra.mxu0 %v1693
    %v1753 = vpop.f32.mrf.mxu0
    %v1754 = vadd.f32 %v593, %v1753
    %1755 = vmatmul.f32.gmra.mxu0 %v1696
    %v1756 = vpop.f32.mrf.mxu0
    %v1757 = vadd.f32 %v594, %v1756
    %1758 = vdwg.mxu0
    %1759 = vmax.xlane.f32.xlu0 %v1748
    %v1760 = vpop.xlane.xlu0 %1759
    %1761 = vmax.xlane.f32.xlu0 %v1751
    %v1762 = vpop.xlane.xlu0 %1761
    %1763 = vmax.xlane.f32.xlu0 %v1754
    %v1764 = vpop.xlane.xlu0 %1763
    %1765 = vmax.xlane.f32.xlu0 %v1757
    %v1766 = vpop.xlane.xlu0 %1765
    %v1767 = vsub.f32 %v1748, %v1760
    %v1768 = vsub.f32 %v1751, %v1762
    %v1769 = vsub.f32 %v1754, %v1764
    %v1770 = vsub.f32 %v1757, %v1766
    %v1771 = vmul.f32 %v1767, 1.442695
    %v1772 = vpow.pop %v1771
    %v1773 = vmul.f32 %v1768, 1.442695
    %v1774 = vpow.pop %v1773
    %v1775 = vmul.f32 %v1769, 1.442695
    %v1776 = vpow.pop %v1775
    %v1777 = vmul.f32 %v1770, 1.442695
    %v1778 = vpow.pop %v1777
    %1779 = vmatpush.msra.mxu0 %v610
    %1780 = vmatpush.msra.mxu0 %v609
    %1781 = vmatpush.msra.mxu0 %v608
    %1782 = vmatpush.msra.mxu0 %v607
    %1783 = vmatpush.msra.mxu0 %v606
    %1784 = vmatpush.msra.mxu0 %v605
    %1785 = vmatpush.msra.mxu0 %v604
    %1786 = vmatpush.msra.mxu0 %v603
    %1787 = vmatpush.msra.mxu0 %v602
    %1788 = vmatpush.msra.mxu0 %v601
    %1789 = vmatpush.msra.mxu0 %v600
    %1790 = vmatpush.msra.mxu0 %v599
    %1791 = vmatpush.msra.mxu0 %v598
    %1792 = vmatpush.msra.mxu0 %v597
    %1793 = vmatpush.msra.mxu0 %v596
    %1794 = vmatpush.msra.mxu0 %v595
    %1795 = vmatmul.f32.gmra.mxu0 %v1772
    %v1796 = vpop.f32.mrf.mxu0
    %v1797 = vadd.f32 0.0, %v1796
    %1798 = vmatmul.f32.gmra.mxu0 %v1774
    %v1799 = vpop.f32.mrf.mxu0
    %v1800 = vadd.f32 0.0, %v1799
    %1801 = vmatmul.f32.gmra.mxu0 %v1776
    %v1802 = vpop.f32.mrf.mxu0
    %v1803 = vadd.f32 0.0, %v1802
    %1804 = vmatmul.f32.gmra.mxu0 %v1778
    %v1805 = vpop.f32.mrf.mxu0
    %v1806 = vadd.f32 0.0, %v1805
    %1807 = vdwg.mxu0
    %v1808 = vrcp.pop %v1797
    %v1809 = vmul.f32 %v1797, %v1808
    %v1810 = vsub.f32 1.0, %v1809
    %v1811 = vmul.f32 %v1808, %v1810
    %v1812 = vadd.f32 %v1808, %v1811
    %vm1813 = vweird.f32 %v1797
    %vm1814 = vweird.f32 %v1808
    %vm1815 = vmor %vm1813, %vm1814
    %v1816 = vsel %vm1815, %v1808, %v1812
    %v1817 = vand.u32 2147483647, %v1797
    %vm1818 = vcmp.eq.f32.partialorder %v1817, 8.507059e+37
    %v1819 = vand.u32 %v1797, 2147483648
    %v1820 = vor.u32 1.1754944e-38, %v1819
    %v1821 = vsel %vm1818, %v1820, %v1816
    %v1822 = vmul.f32 %v1772, %v1821
    %v1823 = vrcp.pop %v1800
    %v1824 = vmul.f32 %v1800, %v1823
    %v1825 = vsub.f32 1.0, %v1824
    %v1826 = vmul.f32 %v1823, %v1825
    %v1827 = vadd.f32 %v1823, %v1826
    %vm1828 = vweird.f32 %v1800
    %vm1829 = vweird.f32 %v1823
    %vm1830 = vmor %vm1828, %vm1829
    %v1831 = vsel %vm1830, %v1823, %v1827
    %v1832 = vand.u32 2147483647, %v1800
    %vm1833 = vcmp.eq.f32.partialorder %v1832, 8.507059e+37
    %v1834 = vand.u32 %v1800, 2147483648
    %v1835 = vor.u32 1.1754944e-38, %v1834
    %v1836 = vsel %vm1833, %v1835, %v1831
    %v1837 = vmul.f32 %v1774, %v1836
    %v1838 = vrcp.pop %v1803
    %v1839 = vmul.f32 %v1803, %v1838
    %v1840 = vsub.f32 1.0, %v1839
    %v1841 = vmul.f32 %v1838, %v1840
    %v1842 = vadd.f32 %v1838, %v1841
    %vm1843 = vweird.f32 %v1803
    %vm1844 = vweird.f32 %v1838
    %vm1845 = vmor %vm1843, %vm1844
    %v1846 = vsel %vm1845, %v1838, %v1842
    %v1847 = vand.u32 2147483647, %v1803
    %vm1848 = vcmp.eq.f32.partialorder %v1847, 8.507059e+37
    %v1849 = vand.u32 %v1803, 2147483648
    %v1850 = vor.u32 1.1754944e-38, %v1849
    %v1851 = vsel %vm1848, %v1850, %v1846
    %v1852 = vmul.f32 %v1776, %v1851
    %v1853 = vrcp.pop %v1806
    %v1854 = vmul.f32 %v1806, %v1853
    %v1855 = vsub.f32 1.0, %v1854
    %v1856 = vmul.f32 %v1853, %v1855
    %v1857 = vadd.f32 %v1853, %v1856
    %vm1858 = vweird.f32 %v1806
    %vm1859 = vweird.f32 %v1853
    %vm1860 = vmor %vm1858, %vm1859
    %v1861 = vsel %vm1860, %v1853, %v1857
    %v1862 = vand.u32 2147483647, %v1806
    %vm1863 = vcmp.eq.f32.partialorder %v1862, 8.507059e+37
    %v1864 = vand.u32 %v1806, 2147483648
    %v1865 = vor.u32 1.1754944e-38, %v1864
    %v1866 = vsel %vm1863, %v1865, %v1861
    %v1867 = vmul.f32 %v1778, %v1866
    %1884 = vrot.lane.b32.xlu0 %v1622, 64
    %v1885 = vpop.permute.xlu0 %1884
    %1886 = vrot.lane.b32.xlu0 %v1623, 64
    %v1887 = vpop.permute.xlu0 %1886
    %1888 = vrot.lane.b32.xlu0 %v1624, 64
    %v1889 = vpop.permute.xlu0 %1888
    %1890 = vrot.lane.b32.xlu0 %v1625, 64
    %v1891 = vpop.permute.xlu0 %1890
    %1892 = vrot.lane.b32.xlu0 %v1626, 64
    %v1893 = vpop.permute.xlu0 %1892
    %1894 = vrot.lane.b32.xlu0 %v1627, 64
    %v1895 = vpop.permute.xlu0 %1894
    %1896 = vrot.lane.b32.xlu0 %v1628, 64
    %v1897 = vpop.permute.xlu0 %1896
    %1898 = vrot.lane.b32.xlu0 %v1629, 64
    %v1899 = vpop.permute.xlu0 %1898
    %1900 = vrot.lane.b32.xlu0 %v1630, 64
    %v1901 = vpop.permute.xlu0 %1900
    %1902 = vrot.lane.b32.xlu0 %v1631, 64
    %v1903 = vpop.permute.xlu0 %1902
    %1904 = vrot.lane.b32.xlu0 %v1632, 64
    %v1905 = vpop.permute.xlu0 %1904
    %1906 = vrot.lane.b32.xlu0 %v1633, 64
    %v1907 = vpop.permute.xlu0 %1906
    %1908 = vrot.lane.b32.xlu0 %v1634, 64
    %v1909 = vpop.permute.xlu0 %1908
    %1910 = vrot.lane.b32.xlu0 %v1635, 64
    %v1911 = vpop.permute.xlu0 %1910
    %1912 = vrot.lane.b32.xlu0 %v1636, 64
    %v1913 = vpop.permute.xlu0 %1912
    %1914 = vrot.lane.b32.xlu0 %v1637, 64
    %v1915 = vpop.permute.xlu0 %1914
    %1932 = vmatpush.msra.mxu0 %v1915
    %1933 = vmatpush.msra.mxu0 %v1913
    %1934 = vmatpush.msra.mxu0 %v1911
    %1935 = vmatpush.msra.mxu0 %v1909
    %1936 = vmatpush.msra.mxu0 %v1907
    %1937 = vmatpush.msra.mxu0 %v1905
    %1938 = vmatpush.msra.mxu0 %v1903
    %1939 = vmatpush.msra.mxu0 %v1901
    %1940 = vmatpush.msra.mxu0 %v1899
    %1941 = vmatpush.msra.mxu0 %v1897
    %1942 = vmatpush.msra.mxu0 %v1895
    %1943 = vmatpush.msra.mxu0 %v1893
    %1944 = vmatpush.msra.mxu0 %v1891
    %1945 = vmatpush.msra.mxu0 %v1889
    %1946 = vmatpush.msra.mxu0 %v1887
    %1947 = vmatpush.msra.mxu0 %v1885
    %1948 = vmatmul.f32.gmra.mxu0 %v1822
    %v1949 = vpop.f32.mrf.mxu0
    %v1950 = vadd.f32 0.0, %v1949
    %1951 = vmatmul.f32.gmra.mxu0 %v1837
    %v1952 = vpop.f32.mrf.mxu0
    %v1953 = vadd.f32 0.0, %v1952
    %1954 = vmatmul.f32.gmra.mxu0 %v1852
    %v1955 = vpop.f32.mrf.mxu0
    %v1956 = vadd.f32 0.0, %v1955
    %1957 = vmatmul.f32.gmra.mxu0 %v1867
    %v1958 = vpop.f32.mrf.mxu0
    %v1959 = vadd.f32 0.0, %v1958
    %1960 = vdwg.mxu0
    %s1961 = scalar_lea.vmem %s11, 32
    %v1962 = vld [vmem:[%s1961] sm:$0xff]
    %v1963 = vld [vmem:[%s1961 + $0x8] sm:$0xff]
    %v1964 = vld [vmem:[%s1961 + $0x10] sm:$0xff]
    %v1965 = vld [vmem:[%s1961 + $0x18] sm:$0xff]
    %s1966 = scalar_lea.vmem [#allocation7], 1
    %v1967 = vld [vmem:[%s1966] sm:$0x1]
    %v1969 = vperm.slane %v1967, 0
    %v1972 = vsel %vm619, %v1950, 0
    %v1975 = vsel %vm619, %v1953, 0
    %v1978 = vsel %vm619, %v1956, 0
    %v1981 = vsel %vm619, %v1959, 0
    %1983 = vmatpush.msra.mxu0 0.0
    %1984 = vmatpush.msra.mxu0 0.0
    %1985 = vmatpush.msra.mxu0 0.0
    %1986 = vmatpush.msra.mxu0 0.0
    %1987 = vmatpush.msra.mxu0 0.0
    %1988 = vmatpush.msra.mxu0 0.0
    %1989 = vmatpush.msra.mxu0 0.0
    %1990 = vmatpush.msra.mxu0 0.0
    %1991 = vmatpush.msra.mxu0 0.0
    %1992 = vmatpush.msra.mxu0 0.0
    %1993 = vmatpush.msra.mxu0 0.0
    %1994 = vmatpush.msra.mxu0 0.0
    %1995 = vmatpush.msra.mxu0 %v1965
    %1996 = vmatpush.msra.mxu0 %v1964
    %1997 = vmatpush.msra.mxu0 %v1963
    %1998 = vmatpush.msra.mxu0 %v1962
    %1999 = vmatmul.f32.gmra.mxu0 %v1972
    %v2000 = vpop.f32.mrf.mxu0
    %v2001 = vadd.f32 %v1969, %v2000
    %2002 = vmatmul.f32.gmra.mxu0 %v1975
    %v2003 = vpop.f32.mrf.mxu0
    %v2004 = vadd.f32 %v1969, %v2003
    %2005 = vmatmul.f32.gmra.mxu0 %v1978
    %v2006 = vpop.f32.mrf.mxu0
    %v2007 = vadd.f32 %v1969, %v2006
    %2008 = vmatmul.f32.gmra.mxu0 %v1981
    %v2009 = vpop.f32.mrf.mxu0
    %v2010 = vadd.f32 %v1969, %v2009
    %2011 = vdwg.mxu0
    %v2012 = vadd.f32 %v1551, %v2001
    %v2013 = vadd.f32 %v1552, %v2004
    %v2014 = vadd.f32 %v1553, %v2007
    %v2015 = vadd.f32 %v1554, %v2010
    %s2016 = scalar_lea.vmem [#allocation12], 1
    %v2017 = vld [vmem:[%s2016] sm:$0x1]
    %s2018 = scalar_lea.vmem [#allocation13], 1
    %v2019 = vld [vmem:[%s2018] sm:$0x1]
    %v2020 = vsel %vm619, %v2012, 0.0
    %2021 = vadd.xlane.f32.xlu0 %v2020
    %v2022 = vpop.xlane.xlu0 %2021
    %v2023 = vsel %vm619, %v2013, 0.0
    %2024 = vadd.xlane.f32.xlu0 %v2023
    %v2025 = vpop.xlane.xlu0 %2024
    %v2026 = vsel %vm619, %v2014, 0.0
    %2027 = vadd.xlane.f32.xlu0 %v2026
    %v2028 = vpop.xlane.xlu0 %2027
    %v2029 = vsel %vm619, %v2015, 0.0
    %2030 = vadd.xlane.f32.xlu0 %v2029
    %v2031 = vpop.xlane.xlu0 %2030
    %v2032 = vmul.f32 %v2022, %v1201
    %v2033 = vmul.f32 %v2025, %v1201
    %v2034 = vmul.f32 %v2028, %v1201
    %v2035 = vmul.f32 %v2031, %v1201
    %v2036 = vmul.f32 %v2012, %v2012
    %v2037 = vmul.f32 %v2013, %v2013
    %v2038 = vmul.f32 %v2014, %v2014
    %v2039 = vmul.f32 %v2015, %v2015
    %v2040 = vsel %vm619, %v2036, 0.0
    %2041 = vadd.xlane.f32.xlu0 %v2040
    %v2042 = vpop.xlane.xlu0 %2041
    %v2043 = vsel %vm619, %v2037, 0.0
    %2044 = vadd.xlane.f32.xlu0 %v2043
    %v2045 = vpop.xlane.xlu0 %2044
    %v2046 = vsel %vm619, %v2038, 0.0
    %2047 = vadd.xlane.f32.xlu0 %v2046
    %v2048 = vpop.xlane.xlu0 %2047
    %v2049 = vsel %vm619, %v2039, 0.0
    %2050 = vadd.xlane.f32.xlu0 %v2049
    %v2051 = vpop.xlane.xlu0 %2050
    %v2052 = vmul.f32 %v2042, %v1201
    %v2053 = vmul.f32 %v2045, %v1201
    %v2054 = vmul.f32 %v2048, %v1201
    %v2055 = vmul.f32 %v2051, %v1201
    %v2056 = vmul.f32 %v2032, %v2032
    %v2057 = vmul.f32 %v2033, %v2033
    %v2058 = vmul.f32 %v2034, %v2034
    %v2059 = vmul.f32 %v2035, %v2035
    %v2060 = vsub.f32 %v2052, %v2056
    %v2061 = vsub.f32 %v2053, %v2057
    %v2062 = vsub.f32 %v2054, %v2058
    %v2063 = vsub.f32 %v2055, %v2059
    %v2064 = vadd.f32 %v2060, 1e-05
    %v2065 = vadd.f32 %v2061, 1e-05
    %v2066 = vadd.f32 %v2062, 1e-05
    %v2067 = vadd.f32 %v2063, 1e-05
    %v2068 = vrsqrt.pop %v2064
    %v2069 = vmul.f32 %v2068, %v2064
    %v2070 = vmul.f32 %v2069, %v2068
    %v2071 = vmul.f32 0.5, %v2070
    %v2072 = vsub.f32 1.5, %v2071
    %v2073 = vmul.f32 %v2068, %v2072
    %vm2074 = vweird.f32 %v2064
    %vm2075 = vweird.f32 %v2068
    %vm2076 = vmor %vm2074, %vm2075
    %v2077 = vsel %vm2076, %v2068, %v2073
    %v2078 = vrsqrt.pop %v2065
    %v2079 = vmul.f32 %v2078, %v2065
    %v2080 = vmul.f32 %v2079, %v2078
    %v2081 = vmul.f32 0.5, %v2080
    %v2082 = vsub.f32 1.5, %v2081
    %v2083 = vmul.f32 %v2078, %v2082
    %vm2084 = vweird.f32 %v2065
    %vm2085 = vweird.f32 %v2078
    %vm2086 = vmor %vm2084, %vm2085
    %v2087 = vsel %vm2086, %v2078, %v2083
    %v2088 = vrsqrt.pop %v2066
    %v2089 = vmul.f32 %v2088, %v2066
    %v2090 = vmul.f32 %v2089, %v2088
    %v2091 = vmul.f32 0.5, %v2090
    %v2092 = vsub.f32 1.5, %v2091
    %v2093 = vmul.f32 %v2088, %v2092
    %vm2094 = vweird.f32 %v2066
    %vm2095 = vweird.f32 %v2088
    %vm2096 = vmor %vm2094, %vm2095
    %v2097 = vsel %vm2096, %v2088, %v2093
    %v2098 = vrsqrt.pop %v2067
    %v2099 = vmul.f32 %v2098, %v2067
    %v2100 = vmul.f32 %v2099, %v2098
    %v2101 = vmul.f32 0.5, %v2100
    %v2102 = vsub.f32 1.5, %v2101
    %v2103 = vmul.f32 %v2098, %v2102
    %vm2104 = vweird.f32 %v2067
    %vm2105 = vweird.f32 %v2098
    %vm2106 = vmor %vm2104, %vm2105
    %v2107 = vsel %vm2106, %v2098, %v2103
    %v2108 = vsub.f32 %v2012, %v2032
    %v2109 = vsub.f32 %v2013, %v2033
    %v2110 = vsub.f32 %v2014, %v2034
    %v2111 = vsub.f32 %v2015, %v2035
    %v2113 = vperm.slane %v2017, 0
    %v2115 = vmul.f32 %v2077, %v2113
    %v2116 = vmul.f32 %v2087, %v2113
    %v2117 = vmul.f32 %v2097, %v2113
    %v2118 = vmul.f32 %v2107, %v2113
    %v2119 = vmul.f32 %v2108, %v2115
    %v2120 = vmul.f32 %v2109, %v2116
    %v2121 = vmul.f32 %v2110, %v2117
    %v2122 = vmul.f32 %v2111, %v2118
    %v2124 = vperm.slane %v2019, 0
    %v2126 = vadd.f32 %v2119, %v2124
    %v2127 = vadd.f32 %v2120, %v2124
    %v2128 = vadd.f32 %v2121, %v2124
    %v2129 = vadd.f32 %v2122, %v2124
    %s2130 = scalar_lea.vmem %s13, 32
    %v2131 = vld [vmem:[%s2130] sm:$0xff]
    %v2132 = vld [vmem:[%s2130 + $0x8] sm:$0xff]
    %v2133 = vld [vmem:[%s2130 + $0x10] sm:$0xff]
    %v2134 = vld [vmem:[%s2130 + $0x18] sm:$0xff]
    %s2135 = scalar_lea.vmem [#allocation9], 1
    %v2136 = vld [vmem:[%s2135] sm:$0x1]
    %v2138 = vperm.slane %v2136, 0
    %v2141 = vsel %vm619, %v2126, 0
    %v2144 = vsel %vm619, %v2127, 0
    %v2147 = vsel %vm619, %v2128, 0
    %v2150 = vsel %vm619, %v2129, 0
    %2152 = vmatpush.msra.mxu0 0.0
    %2153 = vmatpush.msra.mxu0 0.0
    %2154 = vmatpush.msra.mxu0 0.0
    %2155 = vmatpush.msra.mxu0 0.0
    %2156 = vmatpush.msra.mxu0 0.0
    %2157 = vmatpush.msra.mxu0 0.0
    %2158 = vmatpush.msra.mxu0 0.0
    %2159 = vmatpush.msra.mxu0 0.0
    %2160 = vmatpush.msra.mxu0 0.0
    %2161 = vmatpush.msra.mxu0 0.0
    %2162 = vmatpush.msra.mxu0 0.0
    %2163 = vmatpush.msra.mxu0 0.0
    %2164 = vmatpush.msra.mxu0 %v2134
    %2165 = vmatpush.msra.mxu0 %v2133
    %2166 = vmatpush.msra.mxu0 %v2132
    %2167 = vmatpush.msra.mxu0 %v2131
    %2168 = vmatmul.f32.gmra.mxu0 %v2141
    %v2169 = vpop.f32.mrf.mxu0
    %v2170 = vadd.f32 %v2138, %v2169
    %2171 = vmatmul.f32.gmra.mxu0 %v2144
    %v2172 = vpop.f32.mrf.mxu0
    %v2173 = vadd.f32 %v2138, %v2172
    %2174 = vmatmul.f32.gmra.mxu0 %v2147
    %v2175 = vpop.f32.mrf.mxu0
    %v2176 = vadd.f32 %v2138, %v2175
    %2177 = vmatmul.f32.gmra.mxu0 %v2150
    %v2178 = vpop.f32.mrf.mxu0
    %v2179 = vadd.f32 %v2138, %v2178
    %2180 = vdwg.mxu0
    %v2181 = vmul.f32 %v2170, %v2170
    %v2182 = vmul.f32 %v2173, %v2173
    %v2183 = vmul.f32 %v2176, %v2176
    %v2184 = vmul.f32 %v2179, %v2179
    %v2185 = vmul.f32 %v2170, %v2181
    %v2186 = vmul.f32 %v2173, %v2182
    %v2187 = vmul.f32 %v2176, %v2183
    %v2188 = vmul.f32 %v2179, %v2184
    %v2189 = vmul.f32 %v2185, 0.044715
    %v2190 = vmul.f32 %v2186, 0.044715
    %v2191 = vmul.f32 %v2187, 0.044715
    %v2192 = vmul.f32 %v2188, 0.044715
    %v2193 = vadd.f32 %v2170, %v2189
    %v2194 = vadd.f32 %v2173, %v2190
    %v2195 = vadd.f32 %v2176, %v2191
    %v2196 = vadd.f32 %v2179, %v2192
    %v2197 = vmul.f32 %v2193, 0.7978846
    %v2198 = vmul.f32 %v2194, 0.7978846
    %v2199 = vmul.f32 %v2195, 0.7978846
    %v2200 = vmul.f32 %v2196, 0.7978846
    %v2201 = vtanh.pop %v2197
    %v2202 = vtanh.pop %v2198
    %v2203 = vtanh.pop %v2199
    %v2204 = vtanh.pop %v2200
    %v2205 = vadd.f32 %v2201, 1.0
    %v2206 = vadd.f32 %v2202, 1.0
    %v2207 = vadd.f32 %v2203, 1.0
    %v2208 = vadd.f32 %v2204, 1.0
    %v2209 = vmul.f32 %v2205, 0.5
    %v2210 = vmul.f32 %v2206, 0.5
    %v2211 = vmul.f32 %v2207, 0.5
    %v2212 = vmul.f32 %v2208, 0.5
    %v2213 = vmul.f32 %v2170, %v2209
    %v2214 = vmul.f32 %v2173, %v2210
    %v2215 = vmul.f32 %v2176, %v2211
    %v2216 = vmul.f32 %v2179, %v2212
    %s2217 = scalar_lea.vmem %s15, 64
    %v2218 = vld [vmem:[%s2217] sm:$0xff]
    %v2219 = vld [vmem:[%s2217 + $0x8] sm:$0xff]
    %v2220 = vld [vmem:[%s2217 + $0x10] sm:$0xff]
    %v2221 = vld [vmem:[%s2217 + $0x18] sm:$0xff]
    %v2222 = vld [vmem:[%s2217 + $0x20] sm:$0xff]
    %v2223 = vld [vmem:[%s2217 + $0x28] sm:$0xff]
    %v2224 = vld [vmem:[%s2217 + $0x30] sm:$0xff]
    %v2225 = vld [vmem:[%s2217 + $0x38] sm:$0xff]
    %s2226 = scalar_lea.vmem [#allocation10], 1
    %v2227 = vld [vmem:[%s2226] sm:$0x1]
    %v2229 = vperm.slane %v2227, 0
    %v2232 = vsel %vm1397, %v2213, 0
    %v2235 = vsel %vm1397, %v2214, 0
    %v2238 = vsel %vm1397, %v2215, 0
    %v2241 = vsel %vm1397, %v2216, 0
    %2243 = vmatpush.msra.mxu0 0.0
    %2244 = vmatpush.msra.mxu0 0.0
    %2245 = vmatpush.msra.mxu0 0.0
    %2246 = vmatpush.msra.mxu0 0.0
    %2247 = vmatpush.msra.mxu0 0.0
    %2248 = vmatpush.msra.mxu0 0.0
    %2249 = vmatpush.msra.mxu0 0.0
    %2250 = vmatpush.msra.mxu0 0.0
    %2251 = vmatpush.msra.mxu0 %v2225
    %2252 = vmatpush.msra.mxu0 %v2224
    %2253 = vmatpush.msra.mxu0 %v2223
    %2254 = vmatpush.msra.mxu0 %v2222
    %2255 = vmatpush.msra.mxu0 %v2221
    %2256 = vmatpush.msra.mxu0 %v2220
    %2257 = vmatpush.msra.mxu0 %v2219
    %2258 = vmatpush.msra.mxu0 %v2218
    %2259 = vmatmul.f32.gmra.mxu0 %v2232
    %v2260 = vpop.f32.mrf.mxu0
    %v2261 = vadd.f32 %v2229, %v2260
    %2262 = vmatmul.f32.gmra.mxu0 %v2235
    %v2263 = vpop.f32.mrf.mxu0
    %v2264 = vadd.f32 %v2229, %v2263
    %2265 = vmatmul.f32.gmra.mxu0 %v2238
    %v2266 = vpop.f32.mrf.mxu0
    %v2267 = vadd.f32 %v2229, %v2266
    %2268 = vmatmul.f32.gmra.mxu0 %v2241
    %v2269 = vpop.f32.mrf.mxu0
    %v2270 = vadd.f32 %v2229, %v2269
    %2271 = vdwg.mxu0
    %v2272 = vadd.f32 %v2126, %v2261
    %v2273 = vadd.f32 %v2127, %v2264
    %v2274 = vadd.f32 %v2128, %v2267
    %v2275 = vadd.f32 %v2129, %v2270
    %s2276 = scalar_lea.vmem [#allocation15], 1
    %v2277 = vld [vmem:[%s2276] sm:$0x1]
    %s2278 = scalar_lea.vmem [#allocation16], 1
    %v2279 = vld [vmem:[%s2278] sm:$0x1]
    %v2280 = vsel %vm619, %v2272, 0.0
    %2281 = vadd.xlane.f32.xlu0 %v2280
    %v2282 = vpop.xlane.xlu0 %2281
    %v2283 = vsel %vm619, %v2273, 0.0
    %2284 = vadd.xlane.f32.xlu0 %v2283
    %v2285 = vpop.xlane.xlu0 %2284
    %v2286 = vsel %vm619, %v2274, 0.0
    %2287 = vadd.xlane.f32.xlu0 %v2286
    %v2288 = vpop.xlane.xlu0 %2287
    %v2289 = vsel %vm619, %v2275, 0.0
    %2290 = vadd.xlane.f32.xlu0 %v2289
    %v2291 = vpop.xlane.xlu0 %2290
    %v2292 = vmul.f32 %v2282, %v1201
    %v2293 = vmul.f32 %v2285, %v1201
    %v2294 = vmul.f32 %v2288, %v1201
    %v2295 = vmul.f32 %v2291, %v1201
    %v2296 = vmul.f32 %v2272, %v2272
    %v2297 = vmul.f32 %v2273, %v2273
    %v2298 = vmul.f32 %v2274, %v2274
    %v2299 = vmul.f32 %v2275, %v2275
    %v2300 = vsel %vm619, %v2296, 0.0
    %2301 = vadd.xlane.f32.xlu0 %v2300
    %v2302 = vpop.xlane.xlu0 %2301
    %v2303 = vsel %vm619, %v2297, 0.0
    %2304 = vadd.xlane.f32.xlu0 %v2303
    %v2305 = vpop.xlane.xlu0 %2304
    %v2306 = vsel %vm619, %v2298, 0.0
    %2307 = vadd.xlane.f32.xlu0 %v2306
    %v2308 = vpop.xlane.xlu0 %2307
    %v2309 = vsel %vm619, %v2299, 0.0
    %2310 = vadd.xlane.f32.xlu0 %v2309
    %v2311 = vpop.xlane.xlu0 %2310
    %v2312 = vmul.f32 %v2302, %v1201
    %v2313 = vmul.f32 %v2305, %v1201
    %v2314 = vmul.f32 %v2308, %v1201
    %v2315 = vmul.f32 %v2311, %v1201
    %v2316 = vmul.f32 %v2292, %v2292
    %v2317 = vmul.f32 %v2293, %v2293
    %v2318 = vmul.f32 %v2294, %v2294
    %v2319 = vmul.f32 %v2295, %v2295
    %v2320 = vsub.f32 %v2312, %v2316
    %v2321 = vsub.f32 %v2313, %v2317
    %v2322 = vsub.f32 %v2314, %v2318
    %v2323 = vsub.f32 %v2315, %v2319
    %v2324 = vadd.f32 %v2320, 1e-05
    %v2325 = vadd.f32 %v2321, 1e-05
    %v2326 = vadd.f32 %v2322, 1e-05
    %v2327 = vadd.f32 %v2323, 1e-05
    %v2328 = vrsqrt.pop %v2324
    %v2329 = vmul.f32 %v2328, %v2324
    %v2330 = vmul.f32 %v2329, %v2328
    %v2331 = vmul.f32 0.5, %v2330
    %v2332 = vsub.f32 1.5, %v2331
    %v2333 = vmul.f32 %v2328, %v2332
    %vm2334 = vweird.f32 %v2324
    %vm2335 = vweird.f32 %v2328
    %vm2336 = vmor %vm2334, %vm2335
    %v2337 = vsel %vm2336, %v2328, %v2333
    %v2338 = vrsqrt.pop %v2325
    %v2339 = vmul.f32 %v2338, %v2325
    %v2340 = vmul.f32 %v2339, %v2338
    %v2341 = vmul.f32 0.5, %v2340
    %v2342 = vsub.f32 1.5, %v2341
    %v2343 = vmul.f32 %v2338, %v2342
    %vm2344 = vweird.f32 %v2325
    %vm2345 = vweird.f32 %v2338
    %vm2346 = vmor %vm2344, %vm2345
    %v2347 = vsel %vm2346, %v2338, %v2343
    %v2348 = vrsqrt.pop %v2326
    %v2349 = vmul.f32 %v2348, %v2326
    %v2350 = vmul.f32 %v2349, %v2348
    %v2351 = vmul.f32 0.5, %v2350
    %v2352 = vsub.f32 1.5, %v2351
    %v2353 = vmul.f32 %v2348, %v2352
    %vm2354 = vweird.f32 %v2326
    %vm2355 = vweird.f32 %v2348
    %vm2356 = vmor %vm2354, %vm2355
    %v2357 = vsel %vm2356, %v2348, %v2353
    %v2358 = vrsqrt.pop %v2327
    %v2359 = vmul.f32 %v2358, %v2327
    %v2360 = vmul.f32 %v2359, %v2358
    %v2361 = vmul.f32 0.5, %v2360
    %v2362 = vsub.f32 1.5, %v2361
    %v2363 = vmul.f32 %v2358, %v2362
    %vm2364 = vweird.f32 %v2327
    %vm2365 = vweird.f32 %v2358
    %vm2366 = vmor %vm2364, %vm2365
    %v2367 = vsel %vm2366, %v2358, %v2363
    %v2368 = vsub.f32 %v2272, %v2292
    %v2369 = vsub.f32 %v2273, %v2293
    %v2370 = vsub.f32 %v2274, %v2294
    %v2371 = vsub.f32 %v2275, %v2295
    %v2373 = vperm.slane %v2277, 0
    %v2375 = vmul.f32 %v2337, %v2373
    %v2376 = vmul.f32 %v2347, %v2373
    %v2377 = vmul.f32 %v2357, %v2373
    %v2378 = vmul.f32 %v2367, %v2373
    %v2379 = vmul.f32 %v2368, %v2375
    %v2380 = vmul.f32 %v2369, %v2376
    %v2381 = vmul.f32 %v2370, %v2377
    %v2382 = vmul.f32 %v2371, %v2378
    %v2384 = vperm.slane %v2279, 0
    %v2386 = vadd.f32 %v2379, %v2384
    %v2387 = vadd.f32 %v2380, %v2384
    %v2388 = vadd.f32 %v2381, %v2384
    %v2389 = vadd.f32 %v2382, %v2384
    %s2390 = scalar_lea.vmem %s9, 64
    %v2391 = vld [vmem:[%s2390] sm:$0xff]
    %v2392 = vld [vmem:[%s2390 + $0x8] sm:$0xff]
    %v2393 = vld [vmem:[%s2390 + $0x10] sm:$0xff]
    %v2394 = vld [vmem:[%s2390 + $0x18] sm:$0xff]
    %s2395 = scalar_lea.vmem [#allocation6], 2
    %v2396 = vld [vmem:[%s2395] sm:$0x1]
    %v2398 = vperm.slane %v2396, 0
    %v2401 = vsel %vm619, %v2386, 0
    %v2404 = vsel %vm619, %v2387, 0
    %v2407 = vsel %vm619, %v2388, 0
    %v2410 = vsel %vm619, %v2389, 0
    %2412 = vmatpush.msra.mxu0 0.0
    %2413 = vmatpush.msra.mxu0 0.0
    %2414 = vmatpush.msra.mxu0 0.0
    %2415 = vmatpush.msra.mxu0 0.0
    %2416 = vmatpush.msra.mxu0 0.0
    %2417 = vmatpush.msra.mxu0 0.0
    %2418 = vmatpush.msra.mxu0 0.0
    %2419 = vmatpush.msra.mxu0 0.0
    %2420 = vmatpush.msra.mxu0 0.0
    %2421 = vmatpush.msra.mxu0 0.0
    %2422 = vmatpush.msra.mxu0 0.0
    %2423 = vmatpush.msra.mxu0 0.0
    %2424 = vmatpush.msra.mxu0 %v2394
    %2425 = vmatpush.msra.mxu0 %v2393
    %2426 = vmatpush.msra.mxu0 %v2392
    %2427 = vmatpush.msra.mxu0 %v2391
    %2428 = vmatmul.f32.gmra.mxu0 %v2401
    %v2429 = vpop.f32.mrf.mxu0
    %v2430 = vadd.f32 %v2398, %v2429
    %2431 = vmatmul.f32.gmra.mxu0 %v2404
    %v2432 = vpop.f32.mrf.mxu0
    %v2433 = vadd.f32 %v2398, %v2432
    %2434 = vmatmul.f32.gmra.mxu0 %v2407
    %v2435 = vpop.f32.mrf.mxu0
    %v2436 = vadd.f32 %v2398, %v2435
    %2437 = vmatmul.f32.gmra.mxu0 %v2410
    %v2438 = vpop.f32.mrf.mxu0
    %v2439 = vadd.f32 %v2398, %v2438
    %2440 = vdwg.mxu0
    %v2441 = vmul.f32 %v2430, %v678
    %v2442 = vmul.f32 %v2433, %v680
    %v2443 = vmul.f32 %v2436, %v682
    %v2444 = vmul.f32 %v2439, %v684
    %v2445 = vmul.f32 %v2430, %v686
    %v2446 = vmul.f32 %v2433, %v688
    %v2447 = vmul.f32 %v2436, %v690
    %v2448 = vmul.f32 %v2439, %v692
    %v2449 = vmul.f32 %v2430, %v694
    %v2450 = vmul.f32 %v2433, %v696
    %v2451 = vmul.f32 %v2436, %v698
    %v2452 = vmul.f32 %v2439, %v700
    %v2453 = vmul.f32 %v2430, %v702
    %v2454 = vmul.f32 %v2433, %v704
    %v2455 = vmul.f32 %v2436, %v706
    %v2456 = vmul.f32 %v2439, %v708
    %v2457 = vmul.f32 %v2430, %v742
    %v2458 = vmul.f32 %v2433, %v744
    %v2459 = vmul.f32 %v2436, %v746
    %v2460 = vmul.f32 %v2439, %v748
    %v2461 = vmul.f32 %v2430, %v750
    %v2462 = vmul.f32 %v2433, %v752
    %v2463 = vmul.f32 %v2436, %v754
    %v2464 = vmul.f32 %v2439, %v756
    %v2465 = vmul.f32 %v2430, %v758
    %v2466 = vmul.f32 %v2433, %v760
    %v2467 = vmul.f32 %v2436, %v762
    %v2468 = vmul.f32 %v2439, %v764
    %v2469 = vmul.f32 %v2430, %v766
    %v2470 = vmul.f32 %v2433, %v768
    %v2471 = vmul.f32 %v2436, %v770
    %v2472 = vmul.f32 %v2439, %v772
    %2489 = vrot.lane.b32.xlu0 %v2441, 96
    %v2490 = vpop.permute.xlu0 %2489
    %2491 = vrot.lane.b32.xlu0 %v2442, 96
    %v2492 = vpop.permute.xlu0 %2491
    %2493 = vrot.lane.b32.xlu0 %v2443, 96
    %v2494 = vpop.permute.xlu0 %2493
    %2495 = vrot.lane.b32.xlu0 %v2444, 96
    %v2496 = vpop.permute.xlu0 %2495
    %2497 = vrot.lane.b32.xlu0 %v2445, 96
    %v2498 = vpop.permute.xlu0 %2497
    %2499 = vrot.lane.b32.xlu0 %v2446, 96
    %v2500 = vpop.permute.xlu0 %2499
    %2501 = vrot.lane.b32.xlu0 %v2447, 96
    %v2502 = vpop.permute.xlu0 %2501
    %2503 = vrot.lane.b32.xlu0 %v2448, 96
    %v2504 = vpop.permute.xlu0 %2503
    %2505 = vrot.lane.b32.xlu0 %v2449, 96
    %v2506 = vpop.permute.xlu0 %2505
    %2507 = vrot.lane.b32.xlu0 %v2450, 96
    %v2508 = vpop.permute.xlu0 %2507
    %2509 = vrot.lane.b32.xlu0 %v2451, 96
    %v2510 = vpop.permute.xlu0 %2509
    %2511 = vrot.lane.b32.xlu0 %v2452, 96
    %v2512 = vpop.permute.xlu0 %2511
    %2513 = vrot.lane.b32.xlu0 %v2453, 96
    %v2514 = vpop.permute.xlu0 %2513
    %2515 = vrot.lane.b32.xlu0 %v2454, 96
    %v2516 = vpop.permute.xlu0 %2515
    %2517 = vrot.lane.b32.xlu0 %v2455, 96
    %v2518 = vpop.permute.xlu0 %2517
    %2519 = vrot.lane.b32.xlu0 %v2456, 96
    %v2520 = vpop.permute.xlu0 %2519
    %v2522 = vsel %vm619, %v2430, 0
    %v2525 = vsel %vm619, %v2433, 0
    %v2528 = vsel %vm619, %v2436, 0
    %v2531 = vsel %vm619, %v2439, 0
    %v2533 = vsel %vm619, %v2490, 0
    %v2535 = vsel %vm619, %v2492, 0
    %v2537 = vsel %vm619, %v2494, 0
    %v2539 = vsel %vm619, %v2496, 0
    %v2541 = vsel %vm619, %v2498, 0
    %v2543 = vsel %vm619, %v2500, 0
    %v2545 = vsel %vm619, %v2502, 0
    %v2547 = vsel %vm619, %v2504, 0
    %v2549 = vsel %vm619, %v2506, 0
    %v2551 = vsel %vm619, %v2508, 0
    %v2553 = vsel %vm619, %v2510, 0
    %v2555 = vsel %vm619, %v2512, 0
    %v2557 = vsel %vm619, %v2514, 0
    %v2559 = vsel %vm619, %v2516, 0
    %v2561 = vsel %vm619, %v2518, 0
    %v2563 = vsel %vm619, %v2520, 0
    %2565 = vmatpush.xpose.msra.mxu0 %v2563
    %2566 = vmatpush.xpose.msra.mxu0 %v2561
    %2567 = vmatpush.xpose.msra.mxu0 %v2559
    %2568 = vmatpush.xpose.msra.mxu0 %v2557
    %2569 = vmatpush.xpose.msra.mxu0 %v2555
    %2570 = vmatpush.xpose.msra.mxu0 %v2553
    %2571 = vmatpush.xpose.msra.mxu0 %v2551
    %2572 = vmatpush.xpose.msra.mxu0 %v2549
    %2573 = vmatpush.xpose.msra.mxu0 %v2547
    %2574 = vmatpush.xpose.msra.mxu0 %v2545
    %2575 = vmatpush.xpose.msra.mxu0 %v2543
    %2576 = vmatpush.xpose.msra.mxu0 %v2541
    %2577 = vmatpush.xpose.msra.mxu0 %v2539
    %2578 = vmatpush.xpose.msra.mxu0 %v2537
    %2579 = vmatpush.xpose.msra.mxu0 %v2535
    %2580 = vmatpush.xpose.msra.mxu0 %v2533
    %2581 = vmatmul.f32.gmra.mxu0 %v2522
    %v2582 = vpop.f32.mrf.mxu0
    %v2583 = vadd.f32 %v591, %v2582
    %2584 = vmatmul.f32.gmra.mxu0 %v2525
    %v2585 = vpop.f32.mrf.mxu0
    %v2586 = vadd.f32 %v592, %v2585
    %2587 = vmatmul.f32.gmra.mxu0 %v2528
    %v2588 = vpop.f32.mrf.mxu0
    %v2589 = vadd.f32 %v593, %v2588
    %2590 = vmatmul.f32.gmra.mxu0 %v2531
    %v2591 = vpop.f32.mrf.mxu0
    %v2592 = vadd.f32 %v594, %v2591
    %2593 = vdwg.mxu0
    %2594 = vmax.xlane.f32.xlu0 %v2583
    %v2595 = vpop.xlane.xlu0 %2594
    %2596 = vmax.xlane.f32.xlu0 %v2586
    %v2597 = vpop.xlane.xlu0 %2596
    %2598 = vmax.xlane.f32.xlu0 %v2589
    %v2599 = vpop.xlane.xlu0 %2598
    %2600 = vmax.xlane.f32.xlu0 %v2592
    %v2601 = vpop.xlane.xlu0 %2600
    %v2602 = vsub.f32 %v2583, %v2595
    %v2603 = vsub.f32 %v2586, %v2597
    %v2604 = vsub.f32 %v2589, %v2599
    %v2605 = vsub.f32 %v2592, %v2601
    %v2606 = vmul.f32 %v2602, 1.442695
    %v2607 = vpow.pop %v2606
    %v2608 = vmul.f32 %v2603, 1.442695
    %v2609 = vpow.pop %v2608
    %v2610 = vmul.f32 %v2604, 1.442695
    %v2611 = vpow.pop %v2610
    %v2612 = vmul.f32 %v2605, 1.442695
    %v2613 = vpow.pop %v2612
    %2614 = vmatpush.msra.mxu0 %v610
    %2615 = vmatpush.msra.mxu0 %v609
    %2616 = vmatpush.msra.mxu0 %v608
    %2617 = vmatpush.msra.mxu0 %v607
    %2618 = vmatpush.msra.mxu0 %v606
    %2619 = vmatpush.msra.mxu0 %v605
    %2620 = vmatpush.msra.mxu0 %v604
    %2621 = vmatpush.msra.mxu0 %v603
    %2622 = vmatpush.msra.mxu0 %v602
    %2623 = vmatpush.msra.mxu0 %v601
    %2624 = vmatpush.msra.mxu0 %v600
    %2625 = vmatpush.msra.mxu0 %v599
    %2626 = vmatpush.msra.mxu0 %v598
    %2627 = vmatpush.msra.mxu0 %v597
    %2628 = vmatpush.msra.mxu0 %v596
    %2629 = vmatpush.msra.mxu0 %v595
    %2630 = vmatmul.f32.gmra.mxu0 %v2607
    %v2631 = vpop.f32.mrf.mxu0
    %v2632 = vadd.f32 0.0, %v2631
    %2633 = vmatmul.f32.gmra.mxu0 %v2609
    %v2634 = vpop.f32.mrf.mxu0
    %v2635 = vadd.f32 0.0, %v2634
    %2636 = vmatmul.f32.gmra.mxu0 %v2611
    %v2637 = vpop.f32.mrf.mxu0
    %v2638 = vadd.f32 0.0, %v2637
    %2639 = vmatmul.f32.gmra.mxu0 %v2613
    %v2640 = vpop.f32.mrf.mxu0
    %v2641 = vadd.f32 0.0, %v2640
    %2642 = vdwg.mxu0
    %v2643 = vrcp.pop %v2632
    %v2644 = vmul.f32 %v2632, %v2643
    %v2645 = vsub.f32 1.0, %v2644
    %v2646 = vmul.f32 %v2643, %v2645
    %v2647 = vadd.f32 %v2643, %v2646
    %vm2648 = vweird.f32 %v2632
    %vm2649 = vweird.f32 %v2643
    %vm2650 = vmor %vm2648, %vm2649
    %v2651 = vsel %vm2650, %v2643, %v2647
    %v2652 = vand.u32 2147483647, %v2632
    %vm2653 = vcmp.eq.f32.partialorder %v2652, 8.507059e+37
    %v2654 = vand.u32 %v2632, 2147483648
    %v2655 = vor.u32 1.1754944e-38, %v2654
    %v2656 = vsel %vm2653, %v2655, %v2651
    %v2657 = vmul.f32 %v2607, %v2656
    %v2658 = vrcp.pop %v2635
    %v2659 = vmul.f32 %v2635, %v2658
    %v2660 = vsub.f32 1.0, %v2659
    %v2661 = vmul.f32 %v2658, %v2660
    %v2662 = vadd.f32 %v2658, %v2661
    %vm2663 = vweird.f32 %v2635
    %vm2664 = vweird.f32 %v2658
    %vm2665 = vmor %vm2663, %vm2664
    %v2666 = vsel %vm2665, %v2658, %v2662
    %v2667 = vand.u32 2147483647, %v2635
    %vm2668 = vcmp.eq.f32.partialorder %v2667, 8.507059e+37
    %v2669 = vand.u32 %v2635, 2147483648
    %v2670 = vor.u32 1.1754944e-38, %v2669
    %v2671 = vsel %vm2668, %v2670, %v2666
    %v2672 = vmul.f32 %v2609, %v2671
    %v2673 = vrcp.pop %v2638
    %v2674 = vmul.f32 %v2638, %v2673
    %v2675 = vsub.f32 1.0, %v2674
    %v2676 = vmul.f32 %v2673, %v2675
    %v2677 = vadd.f32 %v2673, %v2676
    %vm2678 = vweird.f32 %v2638
    %vm2679 = vweird.f32 %v2673
    %vm2680 = vmor %vm2678, %vm2679
    %v2681 = vsel %vm2680, %v2673, %v2677
    %v2682 = vand.u32 2147483647, %v2638
    %vm2683 = vcmp.eq.f32.partialorder %v2682, 8.507059e+37
    %v2684 = vand.u32 %v2638, 2147483648
    %v2685 = vor.u32 1.1754944e-38, %v2684
    %v2686 = vsel %vm2683, %v2685, %v2681
    %v2687 = vmul.f32 %v2611, %v2686
    %v2688 = vrcp.pop %v2641
    %v2689 = vmul.f32 %v2641, %v2688
    %v2690 = vsub.f32 1.0, %v2689
    %v2691 = vmul.f32 %v2688, %v2690
    %v2692 = vadd.f32 %v2688, %v2691
    %vm2693 = vweird.f32 %v2641
    %vm2694 = vweird.f32 %v2688
    %vm2695 = vmor %vm2693, %vm2694
    %v2696 = vsel %vm2695, %v2688, %v2692
    %v2697 = vand.u32 2147483647, %v2641
    %vm2698 = vcmp.eq.f32.partialorder %v2697, 8.507059e+37
    %v2699 = vand.u32 %v2641, 2147483648
    %v2700 = vor.u32 1.1754944e-38, %v2699
    %v2701 = vsel %vm2698, %v2700, %v2696
    %v2702 = vmul.f32 %v2613, %v2701
    %2719 = vrot.lane.b32.xlu0 %v2457, 64
    %v2720 = vpop.permute.xlu0 %2719
    %2721 = vrot.lane.b32.xlu0 %v2458, 64
    %v2722 = vpop.permute.xlu0 %2721
    %2723 = vrot.lane.b32.xlu0 %v2459, 64
    %v2724 = vpop.permute.xlu0 %2723
    %2725 = vrot.lane.b32.xlu0 %v2460, 64
    %v2726 = vpop.permute.xlu0 %2725
    %2727 = vrot.lane.b32.xlu0 %v2461, 64
    %v2728 = vpop.permute.xlu0 %2727
    %2729 = vrot.lane.b32.xlu0 %v2462, 64
    %v2730 = vpop.permute.xlu0 %2729
    %2731 = vrot.lane.b32.xlu0 %v2463, 64
    %v2732 = vpop.permute.xlu0 %2731
    %2733 = vrot.lane.b32.xlu0 %v2464, 64
    %v2734 = vpop.permute.xlu0 %2733
    %2735 = vrot.lane.b32.xlu0 %v2465, 64
    %v2736 = vpop.permute.xlu0 %2735
    %2737 = vrot.lane.b32.xlu0 %v2466, 64
    %v2738 = vpop.permute.xlu0 %2737
    %2739 = vrot.lane.b32.xlu0 %v2467, 64
    %v2740 = vpop.permute.xlu0 %2739
    %2741 = vrot.lane.b32.xlu0 %v2468, 64
    %v2742 = vpop.permute.xlu0 %2741
    %2743 = vrot.lane.b32.xlu0 %v2469, 64
    %v2744 = vpop.permute.xlu0 %2743
    %2745 = vrot.lane.b32.xlu0 %v2470, 64
    %v2746 = vpop.permute.xlu0 %2745
    %2747 = vrot.lane.b32.xlu0 %v2471, 64
    %v2748 = vpop.permute.xlu0 %2747
    %2749 = vrot.lane.b32.xlu0 %v2472, 64
    %v2750 = vpop.permute.xlu0 %2749
    %2767 = vmatpush.msra.mxu0 %v2750
    %2768 = vmatpush.msra.mxu0 %v2748
    %2769 = vmatpush.msra.mxu0 %v2746
    %2770 = vmatpush.msra.mxu0 %v2744
    %2771 = vmatpush.msra.mxu0 %v2742
    %2772 = vmatpush.msra.mxu0 %v2740
    %2773 = vmatpush.msra.mxu0 %v2738
    %2774 = vmatpush.msra.mxu0 %v2736
    %2775 = vmatpush.msra.mxu0 %v2734
    %2776 = vmatpush.msra.mxu0 %v2732
    %2777 = vmatpush.msra.mxu0 %v2730
    %2778 = vmatpush.msra.mxu0 %v2728
    %2779 = vmatpush.msra.mxu0 %v2726
    %2780 = vmatpush.msra.mxu0 %v2724
    %2781 = vmatpush.msra.mxu0 %v2722
    %2782 = vmatpush.msra.mxu0 %v2720
    %2783 = vmatmul.f32.gmra.mxu0 %v2657
    %v2784 = vpop.f32.mrf.mxu0
    %v2785 = vadd.f32 0.0, %v2784
    %2786 = vmatmul.f32.gmra.mxu0 %v2672
    %v2787 = vpop.f32.mrf.mxu0
    %v2788 = vadd.f32 0.0, %v2787
    %2789 = vmatmul.f32.gmra.mxu0 %v2687
    %v2790 = vpop.f32.mrf.mxu0
    %v2791 = vadd.f32 0.0, %v2790
    %2792 = vmatmul.f32.gmra.mxu0 %v2702
    %v2793 = vpop.f32.mrf.mxu0
    %v2794 = vadd.f32 0.0, %v2793
    %2795 = vdwg.mxu0
    %s2796 = scalar_lea.vmem %s11, 64
    %v2797 = vld [vmem:[%s2796] sm:$0xff]
    %v2798 = vld [vmem:[%s2796 + $0x8] sm:$0xff]
    %v2799 = vld [vmem:[%s2796 + $0x10] sm:$0xff]
    %v2800 = vld [vmem:[%s2796 + $0x18] sm:$0xff]
    %s2801 = scalar_lea.vmem [#allocation7], 2
    %v2802 = vld [vmem:[%s2801] sm:$0x1]
    %v2804 = vperm.slane %v2802, 0
    %v2807 = vsel %vm619, %v2785, 0
    %v2810 = vsel %vm619, %v2788, 0
    %v2813 = vsel %vm619, %v2791, 0
    %v2816 = vsel %vm619, %v2794, 0
    %2818 = vmatpush.msra.mxu0 0.0
    %2819 = vmatpush.msra.mxu0 0.0
    %2820 = vmatpush.msra.mxu0 0.0
    %2821 = vmatpush.msra.mxu0 0.0
    %2822 = vmatpush.msra.mxu0 0.0
    %2823 = vmatpush.msra.mxu0 0.0
    %2824 = vmatpush.msra.mxu0 0.0
    %2825 = vmatpush.msra.mxu0 0.0
    %2826 = vmatpush.msra.mxu0 0.0
    %2827 = vmatpush.msra.mxu0 0.0
    %2828 = vmatpush.msra.mxu0 0.0
    %2829 = vmatpush.msra.mxu0 0.0
    %2830 = vmatpush.msra.mxu0 %v2800
    %2831 = vmatpush.msra.mxu0 %v2799
    %2832 = vmatpush.msra.mxu0 %v2798
    %2833 = vmatpush.msra.mxu0 %v2797
    %2834 = vmatmul.f32.gmra.mxu0 %v2807
    %v2835 = vpop.f32.mrf.mxu0
    %v2836 = vadd.f32 %v2804, %v2835
    %2837 = vmatmul.f32.gmra.mxu0 %v2810
    %v2838 = vpop.f32.mrf.mxu0
    %v2839 = vadd.f32 %v2804, %v2838
    %2840 = vmatmul.f32.gmra.mxu0 %v2813
    %v2841 = vpop.f32.mrf.mxu0
    %v2842 = vadd.f32 %v2804, %v2841
    %2843 = vmatmul.f32.gmra.mxu0 %v2816
    %v2844 = vpop.f32.mrf.mxu0
    %v2845 = vadd.f32 %v2804, %v2844
    %2846 = vdwg.mxu0
    %v2847 = vadd.f32 %v2386, %v2836
    %v2848 = vadd.f32 %v2387, %v2839
    %v2849 = vadd.f32 %v2388, %v2842
    %v2850 = vadd.f32 %v2389, %v2845
    %s2851 = scalar_lea.vmem [#allocation12], 2
    %v2852 = vld [vmem:[%s2851] sm:$0x1]
    %s2853 = scalar_lea.vmem [#allocation13], 2
    %v2854 = vld [vmem:[%s2853] sm:$0x1]
    %v2855 = vsel %vm619, %v2847, 0.0
    %2856 = vadd.xlane.f32.xlu0 %v2855
    %v2857 = vpop.xlane.xlu0 %2856
    %v2858 = vsel %vm619, %v2848, 0.0
    %2859 = vadd.xlane.f32.xlu0 %v2858
    %v2860 = vpop.xlane.xlu0 %2859
    %v2861 = vsel %vm619, %v2849, 0.0
    %2862 = vadd.xlane.f32.xlu0 %v2861
    %v2863 = vpop.xlane.xlu0 %2862
    %v2864 = vsel %vm619, %v2850, 0.0
    %2865 = vadd.xlane.f32.xlu0 %v2864
    %v2866 = vpop.xlane.xlu0 %2865
    %v2867 = vmul.f32 %v2857, %v1201
    %v2868 = vmul.f32 %v2860, %v1201
    %v2869 = vmul.f32 %v2863, %v1201
    %v2870 = vmul.f32 %v2866, %v1201
    %v2871 = vmul.f32 %v2847, %v2847
    %v2872 = vmul.f32 %v2848, %v2848
    %v2873 = vmul.f32 %v2849, %v2849
    %v2874 = vmul.f32 %v2850, %v2850
    %v2875 = vsel %vm619, %v2871, 0.0
    %2876 = vadd.xlane.f32.xlu0 %v2875
    %v2877 = vpop.xlane.xlu0 %2876
    %v2878 = vsel %vm619, %v2872, 0.0
    %2879 = vadd.xlane.f32.xlu0 %v2878
    %v2880 = vpop.xlane.xlu0 %2879
    %v2881 = vsel %vm619, %v2873, 0.0
    %2882 = vadd.xlane.f32.xlu0 %v2881
    %v2883 = vpop.xlane.xlu0 %2882
    %v2884 = vsel %vm619, %v2874, 0.0
    %2885 = vadd.xlane.f32.xlu0 %v2884
    %v2886 = vpop.xlane.xlu0 %2885
    %v2887 = vmul.f32 %v2877, %v1201
    %v2888 = vmul.f32 %v2880, %v1201
    %v2889 = vmul.f32 %v2883, %v1201
    %v2890 = vmul.f32 %v2886, %v1201
    %v2891 = vmul.f32 %v2867, %v2867
    %v2892 = vmul.f32 %v2868, %v2868
    %v2893 = vmul.f32 %v2869, %v2869
    %v2894 = vmul.f32 %v2870, %v2870
    %v2895 = vsub.f32 %v2887, %v2891
    %v2896 = vsub.f32 %v2888, %v2892
    %v2897 = vsub.f32 %v2889, %v2893
    %v2898 = vsub.f32 %v2890, %v2894
    %v2899 = vadd.f32 %v2895, 1e-05
    %v2900 = vadd.f32 %v2896, 1e-05
    %v2901 = vadd.f32 %v2897, 1e-05
    %v2902 = vadd.f32 %v2898, 1e-05
    %v2903 = vrsqrt.pop %v2899
    %v2904 = vmul.f32 %v2903, %v2899
    %v2905 = vmul.f32 %v2904, %v2903
    %v2906 = vmul.f32 0.5, %v2905
    %v2907 = vsub.f32 1.5, %v2906
    %v2908 = vmul.f32 %v2903, %v2907
    %vm2909 = vweird.f32 %v2899
    %vm2910 = vweird.f32 %v2903
    %vm2911 = vmor %vm2909, %vm2910
    %v2912 = vsel %vm2911, %v2903, %v2908
    %v2913 = vrsqrt.pop %v2900
    %v2914 = vmul.f32 %v2913, %v2900
    %v2915 = vmul.f32 %v2914, %v2913
    %v2916 = vmul.f32 0.5, %v2915
    %v2917 = vsub.f32 1.5, %v2916
    %v2918 = vmul.f32 %v2913, %v2917
    %vm2919 = vweird.f32 %v2900
    %vm2920 = vweird.f32 %v2913
    %vm2921 = vmor %vm2919, %vm2920
    %v2922 = vsel %vm2921, %v2913, %v2918
    %v2923 = vrsqrt.pop %v2901
    %v2924 = vmul.f32 %v2923, %v2901
    %v2925 = vmul.f32 %v2924, %v2923
    %v2926 = vmul.f32 0.5, %v2925
    %v2927 = vsub.f32 1.5, %v2926
    %v2928 = vmul.f32 %v2923, %v2927
    %vm2929 = vweird.f32 %v2901
    %vm2930 = vweird.f32 %v2923
    %vm2931 = vmor %vm2929, %vm2930
    %v2932 = vsel %vm2931, %v2923, %v2928
    %v2933 = vrsqrt.pop %v2902
    %v2934 = vmul.f32 %v2933, %v2902
    %v2935 = vmul.f32 %v2934, %v2933
    %v2936 = vmul.f32 0.5, %v2935
    %v2937 = vsub.f32 1.5, %v2936
    %v2938 = vmul.f32 %v2933, %v2937
    %vm2939 = vweird.f32 %v2902
    %vm2940 = vweird.f32 %v2933
    %vm2941 = vmor %vm2939, %vm2940
    %v2942 = vsel %vm2941, %v2933, %v2938
    %v2943 = vsub.f32 %v2847, %v2867
    %v2944 = vsub.f32 %v2848, %v2868
    %v2945 = vsub.f32 %v2849, %v2869
    %v2946 = vsub.f32 %v2850, %v2870
    %v2948 = vperm.slane %v2852, 0
    %v2950 = vmul.f32 %v2912, %v2948
    %v2951 = vmul.f32 %v2922, %v2948
    %v2952 = vmul.f32 %v2932, %v2948
    %v2953 = vmul.f32 %v2942, %v2948
    %v2954 = vmul.f32 %v2943, %v2950
    %v2955 = vmul.f32 %v2944, %v2951
    %v2956 = vmul.f32 %v2945, %v2952
    %v2957 = vmul.f32 %v2946, %v2953
    %v2959 = vperm.slane %v2854, 0
    %v2961 = vadd.f32 %v2954, %v2959
    %v2962 = vadd.f32 %v2955, %v2959
    %v2963 = vadd.f32 %v2956, %v2959
    %v2964 = vadd.f32 %v2957, %v2959
    %s2965 = scalar_lea.vmem %s13, 64
    %v2966 = vld [vmem:[%s2965] sm:$0xff]
    %v2967 = vld [vmem:[%s2965 + $0x8] sm:$0xff]
    %v2968 = vld [vmem:[%s2965 + $0x10] sm:$0xff]
    %v2969 = vld [vmem:[%s2965 + $0x18] sm:$0xff]
    %s2970 = scalar_lea.vmem [#allocation9], 2
    %v2971 = vld [vmem:[%s2970] sm:$0x1]
    %v2973 = vperm.slane %v2971, 0
    %v2976 = vsel %vm619, %v2961, 0
    %v2979 = vsel %vm619, %v2962, 0
    %v2982 = vsel %vm619, %v2963, 0
    %v2985 = vsel %vm619, %v2964, 0
    %2987 = vmatpush.msra.mxu0 0.0
    %2988 = vmatpush.msra.mxu0 0.0
    %2989 = vmatpush.msra.mxu0 0.0
    %2990 = vmatpush.msra.mxu0 0.0
    %2991 = vmatpush.msra.mxu0 0.0
    %2992 = vmatpush.msra.mxu0 0.0
    %2993 = vmatpush.msra.mxu0 0.0
    %2994 = vmatpush.msra.mxu0 0.0
    %2995 = vmatpush.msra.mxu0 0.0
    %2996 = vmatpush.msra.mxu0 0.0
    %2997 = vmatpush.msra.mxu0 0.0
    %2998 = vmatpush.msra.mxu0 0.0
    %2999 = vmatpush.msra.mxu0 %v2969
    %3000 = vmatpush.msra.mxu0 %v2968
    %3001 = vmatpush.msra.mxu0 %v2967
    %3002 = vmatpush.msra.mxu0 %v2966
    %3003 = vmatmul.f32.gmra.mxu0 %v2976
    %v3004 = vpop.f32.mrf.mxu0
    %v3005 = vadd.f32 %v2973, %v3004
    %3006 = vmatmul.f32.gmra.mxu0 %v2979
    %v3007 = vpop.f32.mrf.mxu0
    %v3008 = vadd.f32 %v2973, %v3007
    %3009 = vmatmul.f32.gmra.mxu0 %v2982
    %v3010 = vpop.f32.mrf.mxu0
    %v3011 = vadd.f32 %v2973, %v3010
    %3012 = vmatmul.f32.gmra.mxu0 %v2985
    %v3013 = vpop.f32.mrf.mxu0
    %v3014 = vadd.f32 %v2973, %v3013
    %3015 = vdwg.mxu0
    %v3016 = vmul.f32 %v3005, %v3005
    %v3017 = vmul.f32 %v3008, %v3008
    %v3018 = vmul.f32 %v3011, %v3011
    %v3019 = vmul.f32 %v3014, %v3014
    %v3020 = vmul.f32 %v3005, %v3016
    %v3021 = vmul.f32 %v3008, %v3017
    %v3022 = vmul.f32 %v3011, %v3018
    %v3023 = vmul.f32 %v3014, %v3019
    %v3024 = vmul.f32 %v3020, 0.044715
    %v3025 = vmul.f32 %v3021, 0.044715
    %v3026 = vmul.f32 %v3022, 0.044715
    %v3027 = vmul.f32 %v3023, 0.044715
    %v3028 = vadd.f32 %v3005, %v3024
    %v3029 = vadd.f32 %v3008, %v3025
    %v3030 = vadd.f32 %v3011, %v3026
    %v3031 = vadd.f32 %v3014, %v3027
    %v3032 = vmul.f32 %v3028, 0.7978846
    %v3033 = vmul.f32 %v3029, 0.7978846
    %v3034 = vmul.f32 %v3030, 0.7978846
    %v3035 = vmul.f32 %v3031, 0.7978846
    %v3036 = vtanh.pop %v3032
    %v3037 = vtanh.pop %v3033
    %v3038 = vtanh.pop %v3034
    %v3039 = vtanh.pop %v3035
    %v3040 = vadd.f32 %v3036, 1.0
    %v3041 = vadd.f32 %v3037, 1.0
    %v3042 = vadd.f32 %v3038, 1.0
    %v3043 = vadd.f32 %v3039, 1.0
    %v3044 = vmul.f32 %v3040, 0.5
    %v3045 = vmul.f32 %v3041, 0.5
    %v3046 = vmul.f32 %v3042, 0.5
    %v3047 = vmul.f32 %v3043, 0.5
    %v3048 = vmul.f32 %v3005, %v3044
    %v3049 = vmul.f32 %v3008, %v3045
    %v3050 = vmul.f32 %v3011, %v3046
    %v3051 = vmul.f32 %v3014, %v3047
    %s3052 = scalar_lea.vmem %s15, 128
    %v3053 = vld [vmem:[%s3052] sm:$0xff]
    %v3054 = vld [vmem:[%s3052 + $0x8] sm:$0xff]
    %v3055 = vld [vmem:[%s3052 + $0x10] sm:$0xff]
    %v3056 = vld [vmem:[%s3052 + $0x18] sm:$0xff]
    %v3057 = vld [vmem:[%s3052 + $0x20] sm:$0xff]
    %v3058 = vld [vmem:[%s3052 + $0x28] sm:$0xff]
    %v3059 = vld [vmem:[%s3052 + $0x30] sm:$0xff]
    %v3060 = vld [vmem:[%s3052 + $0x38] sm:$0xff]
    %s3061 = scalar_lea.vmem [#allocation10], 2
    %v3062 = vld [vmem:[%s3061] sm:$0x1]
    %v3064 = vperm.slane %v3062, 0
    %v3067 = vsel %vm1397, %v3048, 0
    %v3070 = vsel %vm1397, %v3049, 0
    %v3073 = vsel %vm1397, %v3050, 0
    %v3076 = vsel %vm1397, %v3051, 0
    %3078 = vmatpush.msra.mxu0 0.0
    %3079 = vmatpush.msra.mxu0 0.0
    %3080 = vmatpush.msra.mxu0 0.0
    %3081 = vmatpush.msra.mxu0 0.0
    %3082 = vmatpush.msra.mxu0 0.0
    %3083 = vmatpush.msra.mxu0 0.0
    %3084 = vmatpush.msra.mxu0 0.0
    %3085 = vmatpush.msra.mxu0 0.0
    %3086 = vmatpush.msra.mxu0 %v3060
    %3087 = vmatpush.msra.mxu0 %v3059
    %3088 = vmatpush.msra.mxu0 %v3058
    %3089 = vmatpush.msra.mxu0 %v3057
    %3090 = vmatpush.msra.mxu0 %v3056
    %3091 = vmatpush.msra.mxu0 %v3055
    %3092 = vmatpush.msra.mxu0 %v3054
    %3093 = vmatpush.msra.mxu0 %v3053
    %3094 = vmatmul.f32.gmra.mxu0 %v3067
    %v3095 = vpop.f32.mrf.mxu0
    %3096 = vmatmul.f32.gmra.mxu0 %v3070
    %v3097 = vpop.f32.mrf.mxu0
    %v3098 = vadd.f32 %v3064, %v3097
    %3099 = vmatmul.f32.gmra.mxu0 %v3073
    %v3100 = vpop.f32.mrf.mxu0
    %3101 = vmatmul.f32.gmra.mxu0 %v3076
    %v3102 = vpop.f32.mrf.mxu0
    %v3103 = vadd.f32 %v3064, %v3102
    %3104 = vdwg.mxu0
    %v3105 = vadd.f32 %v2962, %v3098
    %v3106 = vadd.f32 %v2964, %v3103
    %s3107 = scalar_lea.vmem [#allocation15], 2
    %v3108 = vld [vmem:[%s3107] sm:$0x1]
    %s3109 = scalar_lea.vmem [#allocation16], 2
    %v3110 = vld [vmem:[%s3109] sm:$0x1]
    %v3111 = vsel %vm619, %v3105, 0.0
    %3112 = vadd.xlane.f32.xlu0 %v3111
    %v3113 = vpop.xlane.xlu0 %3112
    %v3114 = vsel %vm619, %v3106, 0.0
    %3115 = vadd.xlane.f32.xlu0 %v3114
    %v3116 = vpop.xlane.xlu0 %3115
    %v3117 = vmul.f32 %v3113, %v1201
    %v3118 = vmul.f32 %v3116, %v1201
    %v3119 = vmul.f32 %v3105, %v3105
    %v3120 = vmul.f32 %v3106, %v3106
    %v3121 = vsel %vm619, %v3119, 0.0
    %3122 = vadd.xlane.f32.xlu0 %v3121
    %v3123 = vpop.xlane.xlu0 %3122
    %v3124 = vsel %vm619, %v3120, 0.0
    %3125 = vadd.xlane.f32.xlu0 %v3124
    %v3126 = vpop.xlane.xlu0 %3125
    %v3127 = vmul.f32 %v3123, %v1201
    %v3128 = vmul.f32 %v3126, %v1201
    %v3129 = vmul.f32 %v3117, %v3117
    %v3130 = vmul.f32 %v3118, %v3118
    %v3131 = vsub.f32 %v3127, %v3129
    %v3132 = vsub.f32 %v3128, %v3130
    %v3133 = vadd.f32 %v3131, 1e-05
    %v3134 = vadd.f32 %v3132, 1e-05
    %v3135 = vrsqrt.pop %v3133
    %v3136 = vmul.f32 %v3135, %v3133
    %v3137 = vmul.f32 %v3136, %v3135
    %v3138 = vmul.f32 0.5, %v3137
    %v3139 = vsub.f32 1.5, %v3138
    %v3140 = vmul.f32 %v3135, %v3139
    %vm3141 = vweird.f32 %v3133
    %vm3142 = vweird.f32 %v3135
    %vm3143 = vmor %vm3141, %vm3142
    %v3144 = vsel %vm3143, %v3135, %v3140
    %v3145 = vrsqrt.pop %v3134
    %v3146 = vmul.f32 %v3145, %v3134
    %v3147 = vmul.f32 %v3146, %v3145
    %v3148 = vmul.f32 0.5, %v3147
    %v3149 = vsub.f32 1.5, %v3148
    %v3150 = vmul.f32 %v3145, %v3149
    %vm3151 = vweird.f32 %v3134
    %vm3152 = vweird.f32 %v3145
    %vm3153 = vmor %vm3151, %vm3152
    %v3154 = vsel %vm3153, %v3145, %v3150
    %v3155 = vsub.f32 %v3105, %v3117
    %v3156 = vsub.f32 %v3106, %v3118
    %v3158 = vperm.slane %v3108, 0
    %v3160 = vmul.f32 %v3144, %v3158
    %v3161 = vmul.f32 %v3154, %v3158
    %v3162 = vmul.f32 %v3155, %v3160
    %v3163 = vmul.f32 %v3156, %v3161
    %v3165 = vperm.slane %v3110, 0
    %v3167 = vadd.f32 %v3162, %v3165
    %v3168 = vadd.f32 %v3163, %v3165
    %v3169 = vld [vmem:[#allocation18] sm:$0x1]
    %v3170 = vld [vmem:[#allocation19] sm:$0x1]
    %v3171 = vsel %vm619, %v3167, 0.0
    %3172 = vadd.xlane.f32.xlu0 %v3171
    %v3173 = vpop.xlane.xlu0 %3172
    %v3174 = vsel %vm619, %v3168, 0.0
    %3175 = vadd.xlane.f32.xlu0 %v3174
    %v3176 = vpop.xlane.xlu0 %3175
    %v3177 = vmul.f32 %v3173, %v1201
    %v3178 = vmul.f32 %v3176, %v1201
    %v3179 = vmul.f32 %v3167, %v3167
    %v3180 = vmul.f32 %v3168, %v3168
    %v3181 = vsel %vm619, %v3179, 0.0
    %3182 = vadd.xlane.f32.xlu0 %v3181
    %v3183 = vpop.xlane.xlu0 %3182
    %v3184 = vsel %vm619, %v3180, 0.0
    %3185 = vadd.xlane.f32.xlu0 %v3184
    %v3186 = vpop.xlane.xlu0 %3185
    %v3187 = vmul.f32 %v3183, %v1201
    %v3188 = vmul.f32 %v3186, %v1201
    %v3189 = vmul.f32 %v3177, %v3177
    %v3190 = vmul.f32 %v3178, %v3178
    %v3191 = vsub.f32 %v3187, %v3189
    %v3192 = vsub.f32 %v3188, %v3190
    %v3193 = vadd.f32 %v3191, 1e-05
    %v3194 = vadd.f32 %v3192, 1e-05
    %v3195 = vrsqrt.pop %v3193
    %v3196 = vmul.f32 %v3195, %v3193
    %v3197 = vmul.f32 %v3196, %v3195
    %v3198 = vmul.f32 0.5, %v3197
    %v3199 = vsub.f32 1.5, %v3198
    %v3200 = vmul.f32 %v3195, %v3199
    %vm3201 = vweird.f32 %v3193
    %vm3202 = vweird.f32 %v3195
    %vm3203 = vmor %vm3201, %vm3202
    %v3204 = vsel %vm3203, %v3195, %v3200
    %v3205 = vrsqrt.pop %v3194
    %v3206 = vmul.f32 %v3205, %v3194
    %v3207 = vmul.f32 %v3206, %v3205
    %v3208 = vmul.f32 0.5, %v3207
    %v3209 = vsub.f32 1.5, %v3208
    %v3210 = vmul.f32 %v3205, %v3209
    %vm3211 = vweird.f32 %v3194
    %vm3212 = vweird.f32 %v3205
    %vm3213 = vmor %vm3211, %vm3212
    %v3214 = vsel %vm3213, %v3205, %v3210
    %v3215 = vsub.f32 %v3167, %v3177
    %v3216 = vsub.f32 %v3168, %v3178
    %v3218 = vperm.slane %v3169, 0
    %v3220 = vmul.f32 %v3204, %v3218
    %v3221 = vmul.f32 %v3214, %v3218
    %v3222 = vmul.f32 %v3215, %v3220
    %v3223 = vmul.f32 %v3216, %v3221
    %v3225 = vperm.slane %v3170, 0
    %v3227 = vadd.f32 %v3222, %v3225
    %v3228 = vadd.f32 %v3223, %v3225
    %v3229 = vld [vmem:[%s23] sm:$0xff]
    %v3230 = vld [vmem:[%s23 + $0x8] sm:$0xff]
    %v3231 = vld [vmem:[%s23 + $0x10] sm:$0xff]
    %v3232 = vld [vmem:[%s23 + $0x18] sm:$0xff]
    %v3233 = vld [vmem:[#allocation21] sm:$0x1]
    %v3235 = vperm.slane %v3233, 0
    %v3238 = vsel %vm619, %v3227, 0
    %v3241 = vsel %vm619, %v3228, 0
    %3243 = vmatpush.msra.mxu0 0.0
    %3244 = vmatpush.msra.mxu0 0.0
    %3245 = vmatpush.msra.mxu0 0.0
    %3246 = vmatpush.msra.mxu0 0.0
    %3247 = vmatpush.msra.mxu0 0.0
    %3248 = vmatpush.msra.mxu0 0.0
    %3249 = vmatpush.msra.mxu0 0.0
    %3250 = vmatpush.msra.mxu0 0.0
    %3251 = vmatpush.msra.mxu0 0.0
    %3252 = vmatpush.msra.mxu0 0.0
    %3253 = vmatpush.msra.mxu0 0.0
    %3254 = vmatpush.msra.mxu0 0.0
    %3255 = vmatpush.msra.mxu0 %v3232
    %3256 = vmatpush.msra.mxu0 %v3231
    %3257 = vmatpush.msra.mxu0 %v3230
    %3258 = vmatpush.msra.mxu0 %v3229
    %3259 = vmatmul.f32.gmra.mxu0 %v3238
    %v3260 = vpop.f32.mrf.mxu0
    %v3261 = vadd.f32 %v3235, %v3260
    %3262 = vmatmul.f32.gmra.mxu0 %v3241
    %v3263 = vpop.f32.mrf.mxu0
    %v3264 = vadd.f32 %v3235, %v3263
    %3265 = vdwg.mxu0
    %3266 = vst [vmem:[%s25] sm:$0xff] %v3261
    %3267 = vst [vmem:[%s25 + $0x8] sm:$0xff] %v3264
    // Predicated region
    $region154: #{informer_forward.1} parent=1 // pred_check
      _
    $region155: #{informer_forward.1} parent=1 // pred_check_branch
      %3269 = sbr.rel (0) target = $region157
    $region156: #{informer_forward.1} parent=1 // pred_region
      _
    $region157: #{informer_forward.1} parent=1 // pred_fallthru
      _
    // Predicated region
    $region158: #{informer_forward.1} parent=1 // pred_check
      _
    $region159: #{informer_forward.1} parent=1 // pred_check_branch
      %3271 = sbr.rel (0) target = $region161
    $region160: #{informer_forward.1} parent=1 // pred_region
      _
    $region161: #{informer_forward.1} parent=1 // pred_fallthru
      _
    %3272 = vsyncpa [#allocation3], 1
    %3273 = vsyncpa [#allocation5], 1
    %3274 = vsyncpa [#allocation8], 1
    %3275 = vsyncpa [#allocation11], 1
    %3276 = vsyncpa [#allocation14], 1
    %3277 = vsyncpa [#allocation17], 1
    %3278 = vsyncpa [#allocation20], 1

</llo_original>
